<compile_context>
chip_gen: v7x
topology: tpu7x:2x2x1
jax: 0.10.0
libtpu: 0.0.40
codegen_flags: <defaults>
</compile_context>

<pallas_src>
import math
import functools

import jax
import jax.numpy as jnp
from jax import lax
from jax.experimental import pallas as pl
from jax.experimental.pallas import tpu as pltpu


def _round_up(n, m):
    return ((n + m - 1) // m) * m


def _layernorm(h, gamma, beta, eps=1e-5):
    # one-pass variance: E[x^2] - mean^2
    mean = jnp.mean(h, axis=-1, keepdims=True)
    msq = jnp.mean(h * h, axis=-1, keepdims=True)
    var = jnp.maximum(msq - mean * mean, 0.0)
    return (h - mean) * lax.rsqrt(var + eps) * gamma + beta


def dual_rgat_kernel(ids_ref, xn_ref, x_ref, adj_ref,
                     wqkv_ref, bq_ref, wo_ref, vecs_ref,
                     w1_ref, b1_ref, w2_ref, out_ref,
                     qadd_sc, vadd_sc,
                     *, num_heads, d_k, attn_dim, npad):
    b = pl.program_id(0)                      # 0 = node graph block, 1 = line graph block
    x = x_ref[...]                            # [Npad, D]
    adj = adj_ref[...]                        # [Npad, Npad], adj[dst, src] in {0,1}

    # ---- in-kernel gather of src_x / dst_x (edge block ONLY), via one-hot matmul ----
    @pl.when(b == 0)
    def _():
        qadd_sc[...] = jnp.zeros_like(qadd_sc)
        vadd_sc[...] = jnp.zeros_like(vadd_sc)

    @pl.when(b == 1)
    def _():
        ids = ids_ref[...]                    # [Npad, 2] int32: (src_id, dst_id) per edge
        niota = lax.broadcasted_iota(jnp.int32, (npad, npad), 1)
        onehot_src = (ids[:, 0:1] == niota).astype(jnp.float32)
        onehot_dst = (ids[:, 1:2] == niota).astype(jnp.float32)
        xn = xn_ref[...]                      # [Npad, D] node features (gather source)
        qadd_sc[...] = jnp.dot(onehot_src, xn, preferred_element_type=jnp.float32)
        vadd_sc[...] = jnp.dot(onehot_dst, xn, preferred_element_type=jnp.float32)

    # ---- fused QKV projection (one MXU push), scale folded into q once ----
    A = attn_dim
    qkv = jnp.dot(x, wqkv_ref[...], preferred_element_type=jnp.float32)   # [Npad, 3A]
    scale = 1.0 / math.sqrt(d_k)
    q = (qkv[:, 0:A] + bq_ref[...] + qadd_sc[...]) * scale   # affine_q has bias; k/v do not
    k = qkv[:, A:2 * A]
    v = qkv[:, 2 * A:3 * A] + vadd_sc[...]

    # ---- multi-head masked attention over the dense graph (per-head lane slices) ----
    o_parts = []
    for h in range(num_heads):                # static unroll over heads
        lo, hi = h * d_k, (h + 1) * d_k
        qh = q[:, lo:hi]                      # [Npad, d_k]
        kh = k[:, lo:hi]
        vh = v[:, lo:hi]
        # s[i, j] = <q_dst[i], k_src[j]> / sqrt(d_k)   (per head; scale already in q)
        s = lax.dot_general(qh, kh, (((1,), (1,)), ((), ())),
                            preferred_element_type=jnp.float32)
        s = jnp.exp(jnp.clip(s, -10.0, 10.0)) * adj
        z = jnp.sum(s, axis=1, keepdims=True)          # [Npad, 1] per-head denominator
        o_parts.append(jnp.dot(s, vh, preferred_element_type=jnp.float32)
                       * pl.reciprocal(z, approx=True))
    o = jnp.concatenate(o_parts, axis=1)      # [Npad, A]

    # ---- output projection + LayerNorm + FFN ----
    vecs = vecs_ref[...]                      # [6, D]: bo, ln1_g, ln1_b, b2, ln2_g, ln2_b
    h1 = _layernorm(
        x + jnp.dot(o, wo_ref[...], preferred_element_type=jnp.float32) + vecs[0:1, :],
        vecs[1:2, :], vecs[2:3, :])
    ff = jnp.maximum(
        jnp.dot(h1, w1_ref[...], preferred_element_type=jnp.float32) + b1_ref[...], 0.0)
    ff = jnp.dot(ff, w2_ref[...], preferred_element_type=jnp.float32) + vecs[3:4, :]
    out_ref[...] = _layernorm(h1 + ff, vecs[4:5, :], vecs[5:6, :])


@functools.partial(jax.jit, static_argnames=("num_heads",))
def dual_rgat_forward(x, local_lgx, adj_g, adj_lg, src_ids, dst_ids, packed, num_heads=8):
    n_nodes, ndim = x.shape
    n_edges, edim = local_lgx.shape
    # TODO(synk): fused two-block path assumes ndim == edim (LGESQL shares the GNN hidden size).
    assert ndim == edim
    D = ndim
    A = packed["wqkv"].shape[-1] // 3
    H = packed["w1"].shape[-1]
    assert A % num_heads == 0
    d_k = A // num_heads
    npad = max(_round_up(n_nodes, 8), _round_up(n_edges, 8))

    def pad2(a):
        return jnp.zeros((npad, D), a.dtype).at[:a.shape[0], :].set(a)

    def pad_adj(adj, n):
        a = jnp.zeros((npad, npad), jnp.float32).at[:n, :n].set(adj)
        # self-loop on padded rows so their denominator is never 0 (outputs are sliced off)
        return a + jnp.diag((jnp.arange(npad) >= n).astype(jnp.float32))

    x_sl = jnp.stack([pad2(x), pad2(local_lgx)])                     # [2, Npad, D]
    adj_sl = jnp.stack([pad_adj(adj_g, n_nodes), pad_adj(adj_lg, n_edges)])
    ids = jnp.zeros((npad, 2), jnp.int32)
    ids = ids.at[:n_edges, 0].set(src_ids.astype(jnp.int32))
    ids = ids.at[:n_edges, 1].set(dst_ids.astype(jnp.int32))
    x_nodes = x_sl[0]

    kernel = functools.partial(dual_rgat_kernel, num_heads=num_heads, d_k=d_k,
                               attn_dim=A, npad=npad)
    full = lambda s0, s1: pl.BlockSpec((s0, s1), lambda b: (0, 0))          # same block each step
    blk = lambda s1, s2: pl.BlockSpec((None, s1, s2), lambda b: (b, 0, 0))  # per-block slab

    out = pl.pallas_call(
        kernel,
        out_shape=jax.ShapeDtypeStruct((2, npad, D), jnp.float32),
        grid=(2,),
        in_specs=[
            full(npad, 2),        # (src_id, dst_id) per line-graph row
            full(npad, D),        # node features (gather source)
            blk(npad, D),         # stacked node / line-graph features
            blk(npad, npad),      # stacked dense adjacency masks
            blk(D, 3 * A),        # fused QKV weight
            blk(1, A),            # q bias
            blk(A, D),            # output projection weight
            blk(6, D),            # packed bo / ln1_g / ln1_b / b2 / ln2_g / ln2_b
            blk(D, H),            # FFN W1
            blk(1, H),            # FFN b1
            blk(H, D),            # FFN W2
        ],
        out_specs=blk(npad, D),
        scratch_shapes=[pltpu.VMEM((npad, D), jnp.float32),   # src_x gather (edge block)
                        pltpu.VMEM((npad, D), jnp.float32)],  # dst_x gather (edge block)
        compiler_params=pltpu.CompilerParams(dimension_semantics=("parallel",)),
    )(ids, x_nodes, x_sl, adj_sl, packed["wqkv"], packed["bq"], packed["wo"],
      packed["vecs"], packed["w1"], packed["b1"], packed["w2"])

    return out[0, :n_nodes], out[1, :n_edges]


def init_rgat_params(key, in_dim, attn_dim):
    ks = jax.random.split(key, 10)
    s = 0.1

    def w(k, shape):
        return jax.random.normal(k, shape, jnp.float32) * s

    return dict(
        wq=w(ks[0], (in_dim, attn_dim)), bq=w(ks[1], (1, attn_dim)),
        wk=w(ks[2], (in_dim, attn_dim)),
        wv=w(ks[3], (in_dim, attn_dim)),
        wo=w(ks[4], (attn_dim, in_dim)), bo=w(ks[5], (1, in_dim)),
        ln1_g=jnp.ones((1, in_dim), jnp.float32),
        ln1_b=jnp.zeros((1, in_dim), jnp.float32),
        w1=w(ks[6], (in_dim, 4 * in_dim)), b1=w(ks[7], (1, 4 * in_dim)),
        w2=w(ks[8], (4 * in_dim, in_dim)), b2=w(ks[9], (1, in_dim)),
        ln2_g=jnp.ones((1, in_dim), jnp.float32),
        ln2_b=jnp.zeros((1, in_dim), jnp.float32),
    )


def pack_dual_rgat_params(node_params, edge_params):
    """Pack the 2x18 small parameter tensors into 7 stacked slabs (done once)."""
    def qkv(p):
        return jnp.concatenate([p["wq"], p["wk"], p["wv"]], axis=1)

    def vecs(p):
        return jnp.concatenate([p["bo"], p["ln1_g"], p["ln1_b"],
                                p["b2"], p["ln2_g"], p["ln2_b"]], axis=0)

    pn, pe = node_params, edge_params
    return dict(
        wqkv=jnp.stack([qkv(pn), qkv(pe)]),
        bq=jnp.stack([pn["bq"], pe["bq"]]),
        wo=jnp.stack([pn["wo"], pe["wo"]]),
        vecs=jnp.stack([vecs(pn), vecs(pe)]),
        w1=jnp.stack([pn["w1"], pe["w1"]]),
        b1=jnp.stack([pn["b1"], pe["b1"]]),
        w2=jnp.stack([pn["w2"], pe["w2"]]),
    )


def rgat_reference(x, q_add, v_add, adj, p, num_heads):
    """Pure-JAX reference (exact division) mirroring the PyTorch semantics."""
    dn = p["wq"].shape[1]
    d_k = dn // num_heads
    n = x.shape[0]
    q = x @ p["wq"] + p["bq"] + q_add
    k = x @ p["wk"]
    v = x @ p["wv"] + v_add
    qh = q.reshape(n, num_heads, d_k)
    kh = k.reshape(n, num_heads, d_k)
    vh = v.reshape(n, num_heads, d_k)
    s = jnp.einsum("ihd,jhd->hij", qh, kh) / math.sqrt(d_k)
    s = jnp.exp(jnp.clip(s, -10.0, 10.0)) * adj[None]
    wv = jnp.einsum("hij,jhd->ihd", s, vh)
    z = jnp.sum(s, axis=2).T[:, :, None]
    o = (wv / z).reshape(n, dn)

    def ln(h, g, b):
        m = h.mean(-1, keepdims=True)
        var = ((h - m) ** 2).mean(-1, keepdims=True)
        return (h - m) / jnp.sqrt(var + 1e-5) * g + b

    h1 = ln(x + o @ p["wo"] + p["bo"], p["ln1_g"], p["ln1_b"])
    ff = jnp.maximum(h1 @ p["w1"] + p["b1"], 0.0) @ p["w2"] + p["b2"]
    return ln(h1 + ff, p["ln2_g"], p["ln2_b"])


if __name__ == "__main__":
    key = jax.random.PRNGKey(0)
    ndim = edim = 32
    num_heads = 8
    n_nodes, n_edges = 16, 24

    k1, k2, k3, k4, k5, k6 = jax.random.split(key, 6)
    x = jax.random.normal(k1, (n_nodes, ndim), jnp.float32)
    local_lgx = jax.random.normal(k2, (n_edges, edim), jnp.float32)
    src_ids = jax.random.randint(k3, (n_edges,), 0, n_nodes, dtype=jnp.int32)
    dst_ids = jax.random.randint(k4, (n_edges,), 0, n_nodes, dtype=jnp.int32)

    # Dense graph masks: adj[dst, src] = 1 for each edge; self-loops so every row has
    # in-degree >= 1 (otherwise DGL's div_by_z would also produce 0/0).
    adj_g = jnp.eye(n_nodes, dtype=jnp.float32)
    adj_g = adj_g.at[dst_ids, src_ids].set(1.0)
    # Line graph: edge a -> edge b iff dst(a) == src(b);  adj_lg[b, a].
    adj_lg = (src_ids[:, None] == dst_ids[None, :]).astype(jnp.float32)
    adj_lg = jnp.maximum(adj_lg, jnp.eye(n_edges, dtype=jnp.float32))

    node_params = init_rgat_params(k5, ndim, ndim)   # RGATLayer: ndim -> ndim
    edge_params = init_rgat_params(k6, edim, ndim)   # EdgeRGATLayer: edim -> ndim -> edim
    packed = pack_dual_rgat_params(node_params, edge_params)

    out_x, out_local_lgx = dual_rgat_forward(
        x, local_lgx, adj_g, adj_lg, src_ids, dst_ids, packed, num_heads=num_heads)
    out_x = jax.block_until_ready(out_x)
    out_local_lgx = jax.block_until_ready(out_local_lgx)

    assert out_x.shape == (n_nodes, ndim)
    assert out_local_lgx.shape == (n_edges, edim)
    assert bool(jnp.all(jnp.isfinite(out_x))) and bool(jnp.all(jnp.isfinite(out_local_lgx)))

    # Numerical sanity check against the pure-JAX reference (loose tolerance to allow
    # for the approximate EUP reciprocal used in the kernel).
    zeros_n = jnp.zeros_like(x)
    ref_x = rgat_reference(x, zeros_n, zeros_n, adj_g, node_params, num_heads)
    ref_lg = rgat_reference(local_lgx, x[src_ids], x[dst_ids], adj_lg, edge_params, num_heads)
    err = max(float(jnp.max(jnp.abs(out_x - ref_x))),
              float(jnp.max(jnp.abs(out_local_lgx - ref_lg))))
    assert err < 2e-2, f"kernel/reference mismatch: {err}"

    print("KERNEL_OK")
</pallas_src>

<mosaic_0001>
module attributes {stable_mosaic.version = 11 : i64} {
  func.func @dual_rgat_kernel(%arg0: i32, %arg1: memref<24x2xi32, #tpu.memory_space<vmem>>, %arg2: memref<24x32xf32, #tpu.memory_space<vmem>>, %arg3: memref<1x24x32xf32, #tpu.memory_space<vmem>>, %arg4: memref<1x24x24xf32, #tpu.memory_space<vmem>>, %arg5: memref<1x32x96xf32, #tpu.memory_space<vmem>>, %arg6: memref<1x1x32xf32, #tpu.memory_space<vmem>>, %arg7: memref<1x32x32xf32, #tpu.memory_space<vmem>>, %arg8: memref<1x6x32xf32, #tpu.memory_space<vmem>>, %arg9: memref<1x32x128xf32, #tpu.memory_space<vmem>>, %arg10: memref<1x1x128xf32, #tpu.memory_space<vmem>>, %arg11: memref<1x128x32xf32, #tpu.memory_space<vmem>>, %arg12: memref<1x24x32xf32, #tpu.memory_space<vmem>>, %arg13: memref<24x32xf32, #tpu.memory_space<vmem>>, %arg14: memref<24x32xf32, #tpu.memory_space<vmem>>) attributes {dimension_semantics = [#tpu.dimension_semantics<parallel>], iteration_bounds = array<i64: 2>, scalar_prefetch = 0 : i64, scratch_operands = 2 : i64, tpu.core_type = #tpu.core_type<tc>, window_params = [{pipeline_mode = #tpu.pipeline_mode<synchronous>, transform_indices = @transform_0, window_bounds = array<i64: 24, 2>}, {pipeline_mode = #tpu.pipeline_mode<synchronous>, transform_indices = @transform_1, window_bounds = array<i64: 24, 32>}, {transform_indices = @transform_2, window_bounds = array<i64: 1, 24, 32>}, {transform_indices = @transform_3, window_bounds = array<i64: 1, 24, 24>}, {transform_indices = @transform_4, window_bounds = array<i64: 1, 32, 96>}, {transform_indices = @transform_5, window_bounds = array<i64: 1, 1, 32>}, {transform_indices = @transform_6, window_bounds = array<i64: 1, 32, 32>}, {transform_indices = @transform_7, window_bounds = array<i64: 1, 6, 32>}, {transform_indices = @transform_8, window_bounds = array<i64: 1, 32, 128>}, {transform_indices = @transform_9, window_bounds = array<i64: 1, 1, 128>}, {transform_indices = @transform_10, window_bounds = array<i64: 1, 128, 32>}, {transform_indices = @transform_11, window_bounds = array<i64: 1, 24, 32>}]} {
    %c0 = arith.constant 0 : index
    %c0_0 = arith.constant 0 : index
    %c0_1 = arith.constant 0 : index
    %0 = vector.load %arg3[%c0, %c0_0, %c0_1] : memref<1x24x32xf32, #tpu.memory_space<vmem>>, vector<1x24x32xf32>
    %1 = vector.shape_cast %0 : vector<1x24x32xf32> to vector<24x32xf32>
    %c0_2 = arith.constant 0 : index
    %c0_3 = arith.constant 0 : index
    %c0_4 = arith.constant 0 : index
    %2 = vector.load %arg4[%c0_2, %c0_3, %c0_4] : memref<1x24x24xf32, #tpu.memory_space<vmem>>, vector<1x24x24xf32>
    %3 = vector.shape_cast %2 : vector<1x24x24xf32> to vector<24x24xf32>
    %c0_i32 = arith.constant 0 : i32
    %4 = arith.cmpi eq, %arg0, %c0_i32 : i32
    %5 = arith.extui %4 : i1 to i32
    %c0_i32_5 = arith.constant 0 : i32
    %6 = arith.cmpi ne, %5, %c0_i32_5 : i32
    scf.if %6 {
      %cst_92 = arith.constant 0.000000e+00 : f32
      %235 = vector.broadcast %cst_92 : f32 to vector<24x32xf32>
      %c0_93 = arith.constant 0 : index
      %c0_94 = arith.constant 0 : index
      %236 = vector.load %arg13[%c0_93, %c0_94] : memref<24x32xf32, #tpu.memory_space<vmem>>, vector<24x32xf32>
      tpu.vector_store %arg13[%c0_93, %c0_94], %235 {strides = array<i32>} : memref<24x32xf32, #tpu.memory_space<vmem>>, vector<24x32xf32>,
      %cst_95 = arith.constant 0.000000e+00 : f32
      %237 = vector.broadcast %cst_95 : f32 to vector<24x32xf32>
      %c0_96 = arith.constant 0 : index
      %c0_97 = arith.constant 0 : index
      %238 = vector.load %arg14[%c0_96, %c0_97] : memref<24x32xf32, #tpu.memory_space<vmem>>, vector<24x32xf32>
      tpu.vector_store %arg14[%c0_96, %c0_97], %237 {strides = array<i32>} : memref<24x32xf32, #tpu.memory_space<vmem>>, vector<24x32xf32>,
    } else {
    }
    %c1_i32 = arith.constant 1 : i32
    %7 = arith.cmpi eq, %arg0, %c1_i32 : i32
    %8 = arith.extui %7 : i1 to i32
    %c0_i32_6 = arith.constant 0 : i32
    %9 = arith.cmpi ne, %8, %c0_i32_6 : i32
    scf.if %9 {
      %c0_92 = arith.constant 0 : index
      %c0_93 = arith.constant 0 : index
      %235 = vector.load %arg1[%c0_92, %c0_93] : memref<24x2xi32, #tpu.memory_space<vmem>>, vector<24x2xi32>
      %236 = tpu.iota {dimensions = array<i32: 1>} : vector<24x24xi32>
      %237 = vector.extract_strided_slice %235 {offsets = [0, 0], sizes = [24, 1], strides = [1, 1]} : vector<24x2xi32> to vector<24x1xi32>
      %238 = vector.broadcast %237 : vector<24x1xi32> to vector<24x24xi32>
      %239 = arith.cmpi eq, %238, %236 : vector<24x24xi32>
      %240 = arith.extui %239 : vector<24x24xi1> to vector<24x24xi32>
      %241 = arith.sitofp %240 : vector<24x24xi32> to vector<24x24xf32>
      %242 = vector.extract_strided_slice %235 {offsets = [0, 1], sizes = [24, 1], strides = [1, 1]} : vector<24x2xi32> to vector<24x1xi32>
      %243 = vector.broadcast %242 : vector<24x1xi32> to vector<24x24xi32>
      %244 = arith.cmpi eq, %243, %236 : vector<24x24xi32>
      %245 = arith.extui %244 : vector<24x24xi1> to vector<24x24xi32>
      %246 = arith.sitofp %245 : vector<24x24xi32> to vector<24x24xf32>
      %c0_94 = arith.constant 0 : index
      %c0_95 = arith.constant 0 : index
      %247 = vector.load %arg2[%c0_94, %c0_95] : memref<24x32xf32, #tpu.memory_space<vmem>>, vector<24x32xf32>
      %cst_96 = arith.constant dense<0.000000e+00> : vector<24x32xf32>
      %248 = tpu.matmul %241, %247, %cst_96 {dimension_numbers = #tpu.dot_dimension_numbers<[1], [0], [0], [1], [0, 0, 1, 1], [], []>} : vector<24x24xf32>, vector<24x32xf32>, vector<24x32xf32> -> vector<24x32xf32>
      %c0_97 = arith.constant 0 : index
      %c0_98 = arith.constant 0 : index
      %249 = vector.load %arg13[%c0_97, %c0_98] : memref<24x32xf32, #tpu.memory_space<vmem>>, vector<24x32xf32>
      tpu.vector_store %arg13[%c0_97, %c0_98], %248 {strides = array<i32>} : memref<24x32xf32, #tpu.memory_space<vmem>>, vector<24x32xf32>,
      %cst_99 = arith.constant dense<0.000000e+00> : vector<24x32xf32>
      %250 = tpu.matmul %246, %247, %cst_99 {dimension_numbers = #tpu.dot_dimension_numbers<[1], [0], [0], [1], [0, 0, 1, 1], [], []>} : vector<24x24xf32>, vector<24x32xf32>, vector<24x32xf32> -> vector<24x32xf32>
      %c0_100 = arith.constant 0 : index
      %c0_101 = arith.constant 0 : index
      %251 = vector.load %arg14[%c0_100, %c0_101] : memref<24x32xf32, #tpu.memory_space<vmem>>, vector<24x32xf32>
      tpu.vector_store %arg14[%c0_100, %c0_101], %250 {strides = array<i32>} : memref<24x32xf32, #tpu.memory_space<vmem>>, vector<24x32xf32>,
    } else {
    }
    %c0_7 = arith.constant 0 : index
    %c0_8 = arith.constant 0 : index
    %c0_9 = arith.constant 0 : index
    %10 = vector.load %arg5[%c0_7, %c0_8, %c0_9] : memref<1x32x96xf32, #tpu.memory_space<vmem>>, vector<1x32x96xf32>
    %11 = vector.shape_cast %10 : vector<1x32x96xf32> to vector<32x96xf32>
    %cst = arith.constant dense<0.000000e+00> : vector<24x96xf32>
    %12 = tpu.matmul %1, %11, %cst {dimension_numbers = #tpu.dot_dimension_numbers<[1], [0], [0], [1], [0, 0, 1, 1], [], []>} : vector<24x32xf32>, vector<32x96xf32>, vector<24x96xf32> -> vector<24x96xf32>
    %13 = vector.extract_strided_slice %12 {offsets = [0, 0], sizes = [24, 32], strides = [1, 1]} : vector<24x96xf32> to vector<24x32xf32>
    %c0_10 = arith.constant 0 : index
    %c0_11 = arith.constant 0 : index
    %c0_12 = arith.constant 0 : index
    %14 = vector.load %arg6[%c0_10, %c0_11, %c0_12] : memref<1x1x32xf32, #tpu.memory_space<vmem>>, vector<1x1x32xf32>
    %15 = vector.shape_cast %14 : vector<1x1x32xf32> to vector<1x32xf32>
    %16 = vector.broadcast %15 : vector<1x32xf32> to vector<24x32xf32>
    %17 = arith.addf %13, %16 : vector<24x32xf32>
    %c0_13 = arith.constant 0 : index
    %c0_14 = arith.constant 0 : index
    %18 = vector.load %arg13[%c0_13, %c0_14] : memref<24x32xf32, #tpu.memory_space<vmem>>, vector<24x32xf32>
    %19 = arith.addf %17, %18 : vector<24x32xf32>
    %cst_15 = arith.constant 5.000000e-01 : f32
    %20 = vector.broadcast %cst_15 : f32 to vector<24x32xf32>
    %21 = arith.mulf %19, %20 : vector<24x32xf32>
    %22 = vector.extract_strided_slice %12 {offsets = [0, 32], sizes = [24, 32], strides = [1, 1]} : vector<24x96xf32> to vector<24x32xf32>
    %23 = vector.extract_strided_slice %12 {offsets = [0, 64], sizes = [24, 32], strides = [1, 1]} : vector<24x96xf32> to vector<24x32xf32>
    %c0_16 = arith.constant 0 : index
    %c0_17 = arith.constant 0 : index
    %24 = vector.load %arg14[%c0_16, %c0_17] : memref<24x32xf32, #tpu.memory_space<vmem>>, vector<24x32xf32>
    %25 = arith.addf %23, %24 : vector<24x32xf32>
    %26 = vector.extract_strided_slice %21 {offsets = [0, 0], sizes = [24, 4], strides = [1, 1]} : vector<24x32xf32> to vector<24x4xf32>
    %27 = vector.extract_strided_slice %22 {offsets = [0, 0], sizes = [24, 4], strides = [1, 1]} : vector<24x32xf32> to vector<24x4xf32>
    %28 = vector.extract_strided_slice %25 {offsets = [0, 0], sizes = [24, 4], strides = [1, 1]} : vector<24x32xf32> to vector<24x4xf32>
    %cst_18 = arith.constant dense<0.000000e+00> : vector<24x24xf32>
    %29 = tpu.matmul %26, %27, %cst_18 {dimension_numbers = #tpu.dot_dimension_numbers<[1], [1], [0], [0], [0, 0, 1, 0], [], []>} : vector<24x4xf32>, vector<24x4xf32>, vector<24x24xf32> -> vector<24x24xf32>
    %cst_19 = arith.constant -1.000000e+01 : f32
    %cst_20 = arith.constant 1.000000e+01 : f32
    %30 = vector.broadcast %cst_19 : f32 to vector<24x24xf32>
    %31 = arith.maximumf %30, %29 : vector<24x24xf32>
    %32 = vector.broadcast %cst_20 : f32 to vector<24x24xf32>
    %33 = arith.minimumf %32, %31 : vector<24x24xf32>
    %34 = math.exp %33 : vector<24x24xf32>
    %35 = arith.mulf %34, %3 : vector<24x24xf32>
    %cst_21 = arith.constant dense<0.000000e+00> : vector<24xf32>
    %36 = vector.multi_reduction <add>, %35, %cst_21 [1] : vector<24x24xf32> to vector<24xf32>
    %37 = vector.shape_cast %36 : vector<24xf32> to vector<24x1xf32>
    %cst_22 = arith.constant dense<0.000000e+00> : vector<24x4xf32>
    %38 = tpu.matmul %35, %28, %cst_22 {dimension_numbers = #tpu.dot_dimension_numbers<[1], [0], [0], [1], [0, 0, 1, 1], [], []>} : vector<24x24xf32>, vector<24x4xf32>, vector<24x4xf32> -> vector<24x4xf32>
    %39 = tpu.reciprocal %37 {approx = true} : vector<24x1xf32> -> vector<24x1xf32>
    %40 = vector.broadcast %39 : vector<24x1xf32> to vector<24x4xf32>
    %41 = arith.mulf %38, %40 : vector<24x4xf32>
    %42 = vector.extract_strided_slice %21 {offsets = [0, 4], sizes = [24, 4], strides = [1, 1]} : vector<24x32xf32> to vector<24x4xf32>
    %43 = vector.extract_strided_slice %22 {offsets = [0, 4], sizes = [24, 4], strides = [1, 1]} : vector<24x32xf32> to vector<24x4xf32>
    %44 = vector.extract_strided_slice %25 {offsets = [0, 4], sizes = [24, 4], strides = [1, 1]} : vector<24x32xf32> to vector<24x4xf32>
    %cst_23 = arith.constant dense<0.000000e+00> : vector<24x24xf32>
    %45 = tpu.matmul %42, %43, %cst_23 {dimension_numbers = #tpu.dot_dimension_numbers<[1], [1], [0], [0], [0, 0, 1, 0], [], []>} : vector<24x4xf32>, vector<24x4xf32>, vector<24x24xf32> -> vector<24x24xf32>
    %cst_24 = arith.constant -1.000000e+01 : f32
    %cst_25 = arith.constant 1.000000e+01 : f32
    %46 = vector.broadcast %cst_24 : f32 to vector<24x24xf32>
    %47 = arith.maximumf %46, %45 : vector<24x24xf32>
    %48 = vector.broadcast %cst_25 : f32 to vector<24x24xf32>
    %49 = arith.minimumf %48, %47 : vector<24x24xf32>
    %50 = math.exp %49 : vector<24x24xf32>
    %51 = arith.mulf %50, %3 : vector<24x24xf32>
    %cst_26 = arith.constant dense<0.000000e+00> : vector<24xf32>
    %52 = vector.multi_reduction <add>, %51, %cst_26 [1] : vector<24x24xf32> to vector<24xf32>
    %53 = vector.shape_cast %52 : vector<24xf32> to vector<24x1xf32>
    %cst_27 = arith.constant dense<0.000000e+00> : vector<24x4xf32>
    %54 = tpu.matmul %51, %44, %cst_27 {dimension_numbers = #tpu.dot_dimension_numbers<[1], [0], [0], [1], [0, 0, 1, 1], [], []>} : vector<24x24xf32>, vector<24x4xf32>, vector<24x4xf32> -> vector<24x4xf32>
    %55 = tpu.reciprocal %53 {approx = true} : vector<24x1xf32> -> vector<24x1xf32>
    %56 = vector.broadcast %55 : vector<24x1xf32> to vector<24x4xf32>
    %57 = arith.mulf %54, %56 : vector<24x4xf32>
    %58 = vector.extract_strided_slice %21 {offsets = [0, 8], sizes = [24, 4], strides = [1, 1]} : vector<24x32xf32> to vector<24x4xf32>
    %59 = vector.extract_strided_slice %22 {offsets = [0, 8], sizes = [24, 4], strides = [1, 1]} : vector<24x32xf32> to vector<24x4xf32>
    %60 = vector.extract_strided_slice %25 {offsets = [0, 8], sizes = [24, 4], strides = [1, 1]} : vector<24x32xf32> to vector<24x4xf32>
    %cst_28 = arith.constant dense<0.000000e+00> : vector<24x24xf32>
    %61 = tpu.matmul %58, %59, %cst_28 {dimension_numbers = #tpu.dot_dimension_numbers<[1], [1], [0], [0], [0, 0, 1, 0], [], []>} : vector<24x4xf32>, vector<24x4xf32>, vector<24x24xf32> -> vector<24x24xf32>
    %cst_29 = arith.constant -1.000000e+01 : f32
    %cst_30 = arith.constant 1.000000e+01 : f32
    %62 = vector.broadcast %cst_29 : f32 to vector<24x24xf32>
    %63 = arith.maximumf %62, %61 : vector<24x24xf32>
    %64 = vector.broadcast %cst_30 : f32 to vector<24x24xf32>
    %65 = arith.minimumf %64, %63 : vector<24x24xf32>
    %66 = math.exp %65 : vector<24x24xf32>
    %67 = arith.mulf %66, %3 : vector<24x24xf32>
    %cst_31 = arith.constant dense<0.000000e+00> : vector<24xf32>
    %68 = vector.multi_reduction <add>, %67, %cst_31 [1] : vector<24x24xf32> to vector<24xf32>
    %69 = vector.shape_cast %68 : vector<24xf32> to vector<24x1xf32>
    %cst_32 = arith.constant dense<0.000000e+00> : vector<24x4xf32>
    %70 = tpu.matmul %67, %60, %cst_32 {dimension_numbers = #tpu.dot_dimension_numbers<[1], [0], [0], [1], [0, 0, 1, 1], [], []>} : vector<24x24xf32>, vector<24x4xf32>, vector<24x4xf32> -> vector<24x4xf32>
    %71 = tpu.reciprocal %69 {approx = true} : vector<24x1xf32> -> vector<24x1xf32>
    %72 = vector.broadcast %71 : vector<24x1xf32> to vector<24x4xf32>
    %73 = arith.mulf %70, %72 : vector<24x4xf32>
    %74 = vector.extract_strided_slice %21 {offsets = [0, 12], sizes = [24, 4], strides = [1, 1]} : vector<24x32xf32> to vector<24x4xf32>
    %75 = vector.extract_strided_slice %22 {offsets = [0, 12], sizes = [24, 4], strides = [1, 1]} : vector<24x32xf32> to vector<24x4xf32>
    %76 = vector.extract_strided_slice %25 {offsets = [0, 12], sizes = [24, 4], strides = [1, 1]} : vector<24x32xf32> to vector<24x4xf32>
    %cst_33 = arith.constant dense<0.000000e+00> : vector<24x24xf32>
    %77 = tpu.matmul %74, %75, %cst_33 {dimension_numbers = #tpu.dot_dimension_numbers<[1], [1], [0], [0], [0, 0, 1, 0], [], []>} : vector<24x4xf32>, vector<24x4xf32>, vector<24x24xf32> -> vector<24x24xf32>
    %cst_34 = arith.constant -1.000000e+01 : f32
    %cst_35 = arith.constant 1.000000e+01 : f32
    %78 = vector.broadcast %cst_34 : f32 to vector<24x24xf32>
    %79 = arith.maximumf %78, %77 : vector<24x24xf32>
    %80 = vector.broadcast %cst_35 : f32 to vector<24x24xf32>
    %81 = arith.minimumf %80, %79 : vector<24x24xf32>
    %82 = math.exp %81 : vector<24x24xf32>
    %83 = arith.mulf %82, %3 : vector<24x24xf32>
    %cst_36 = arith.constant dense<0.000000e+00> : vector<24xf32>
    %84 = vector.multi_reduction <add>, %83, %cst_36 [1] : vector<24x24xf32> to vector<24xf32>
    %85 = vector.shape_cast %84 : vector<24xf32> to vector<24x1xf32>
    %cst_37 = arith.constant dense<0.000000e+00> : vector<24x4xf32>
    %86 = tpu.matmul %83, %76, %cst_37 {dimension_numbers = #tpu.dot_dimension_numbers<[1], [0], [0], [1], [0, 0, 1, 1], [], []>} : vector<24x24xf32>, vector<24x4xf32>, vector<24x4xf32> -> vector<24x4xf32>
    %87 = tpu.reciprocal %85 {approx = true} : vector<24x1xf32> -> vector<24x1xf32>
    %88 = vector.broadcast %87 : vector<24x1xf32> to vector<24x4xf32>
    %89 = arith.mulf %86, %88 : vector<24x4xf32>
    %90 = vector.extract_strided_slice %21 {offsets = [0, 16], sizes = [24, 4], strides = [1, 1]} : vector<24x32xf32> to vector<24x4xf32>
    %91 = vector.extract_strided_slice %22 {offsets = [0, 16], sizes = [24, 4], strides = [1, 1]} : vector<24x32xf32> to vector<24x4xf32>
    %92 = vector.extract_strided_slice %25 {offsets = [0, 16], sizes = [24, 4], strides = [1, 1]} : vector<24x32xf32> to vector<24x4xf32>
    %cst_38 = arith.constant dense<0.000000e+00> : vector<24x24xf32>
    %93 = tpu.matmul %90, %91, %cst_38 {dimension_numbers = #tpu.dot_dimension_numbers<[1], [1], [0], [0], [0, 0, 1, 0], [], []>} : vector<24x4xf32>, vector<24x4xf32>, vector<24x24xf32> -> vector<24x24xf32>
    %cst_39 = arith.constant -1.000000e+01 : f32
    %cst_40 = arith.constant 1.000000e+01 : f32
    %94 = vector.broadcast %cst_39 : f32 to vector<24x24xf32>
    %95 = arith.maximumf %94, %93 : vector<24x24xf32>
    %96 = vector.broadcast %cst_40 : f32 to vector<24x24xf32>
    %97 = arith.minimumf %96, %95 : vector<24x24xf32>
    %98 = math.exp %97 : vector<24x24xf32>
    %99 = arith.mulf %98, %3 : vector<24x24xf32>
    %cst_41 = arith.constant dense<0.000000e+00> : vector<24xf32>
    %100 = vector.multi_reduction <add>, %99, %cst_41 [1] : vector<24x24xf32> to vector<24xf32>
    %101 = vector.shape_cast %100 : vector<24xf32> to vector<24x1xf32>
    %cst_42 = arith.constant dense<0.000000e+00> : vector<24x4xf32>
    %102 = tpu.matmul %99, %92, %cst_42 {dimension_numbers = #tpu.dot_dimension_numbers<[1], [0], [0], [1], [0, 0, 1, 1], [], []>} : vector<24x24xf32>, vector<24x4xf32>, vector<24x4xf32> -> vector<24x4xf32>
    %103 = tpu.reciprocal %101 {approx = true} : vector<24x1xf32> -> vector<24x1xf32>
    %104 = vector.broadcast %103 : vector<24x1xf32> to vector<24x4xf32>
    %105 = arith.mulf %102, %104 : vector<24x4xf32>
    %106 = vector.extract_strided_slice %21 {offsets = [0, 20], sizes = [24, 4], strides = [1, 1]} : vector<24x32xf32> to vector<24x4xf32>
    %107 = vector.extract_strided_slice %22 {offsets = [0, 20], sizes = [24, 4], strides = [1, 1]} : vector<24x32xf32> to vector<24x4xf32>
    %108 = vector.extract_strided_slice %25 {offsets = [0, 20], sizes = [24, 4], strides = [1, 1]} : vector<24x32xf32> to vector<24x4xf32>
    %cst_43 = arith.constant dense<0.000000e+00> : vector<24x24xf32>
    %109 = tpu.matmul %106, %107, %cst_43 {dimension_numbers = #tpu.dot_dimension_numbers<[1], [1], [0], [0], [0, 0, 1, 0], [], []>} : vector<24x4xf32>, vector<24x4xf32>, vector<24x24xf32> -> vector<24x24xf32>
    %cst_44 = arith.constant -1.000000e+01 : f32
    %cst_45 = arith.constant 1.000000e+01 : f32
    %110 = vector.broadcast %cst_44 : f32 to vector<24x24xf32>
    %111 = arith.maximumf %110, %109 : vector<24x24xf32>
    %112 = vector.broadcast %cst_45 : f32 to vector<24x24xf32>
    %113 = arith.minimumf %112, %111 : vector<24x24xf32>
    %114 = math.exp %113 : vector<24x24xf32>
    %115 = arith.mulf %114, %3 : vector<24x24xf32>
    %cst_46 = arith.constant dense<0.000000e+00> : vector<24xf32>
    %116 = vector.multi_reduction <add>, %115, %cst_46 [1] : vector<24x24xf32> to vector<24xf32>
    %117 = vector.shape_cast %116 : vector<24xf32> to vector<24x1xf32>
    %cst_47 = arith.constant dense<0.000000e+00> : vector<24x4xf32>
    %118 = tpu.matmul %115, %108, %cst_47 {dimension_numbers = #tpu.dot_dimension_numbers<[1], [0], [0], [1], [0, 0, 1, 1], [], []>} : vector<24x24xf32>, vector<24x4xf32>, vector<24x4xf32> -> vector<24x4xf32>
    %119 = tpu.reciprocal %117 {approx = true} : vector<24x1xf32> -> vector<24x1xf32>
    %120 = vector.broadcast %119 : vector<24x1xf32> to vector<24x4xf32>
    %121 = arith.mulf %118, %120 : vector<24x4xf32>
    %122 = vector.extract_strided_slice %21 {offsets = [0, 24], sizes = [24, 4], strides = [1, 1]} : vector<24x32xf32> to vector<24x4xf32>
    %123 = vector.extract_strided_slice %22 {offsets = [0, 24], sizes = [24, 4], strides = [1, 1]} : vector<24x32xf32> to vector<24x4xf32>
    %124 = vector.extract_strided_slice %25 {offsets = [0, 24], sizes = [24, 4], strides = [1, 1]} : vector<24x32xf32> to vector<24x4xf32>
    %cst_48 = arith.constant dense<0.000000e+00> : vector<24x24xf32>
    %125 = tpu.matmul %122, %123, %cst_48 {dimension_numbers = #tpu.dot_dimension_numbers<[1], [1], [0], [0], [0, 0, 1, 0], [], []>} : vector<24x4xf32>, vector<24x4xf32>, vector<24x24xf32> -> vector<24x24xf32>
    %cst_49 = arith.constant -1.000000e+01 : f32
    %cst_50 = arith.constant 1.000000e+01 : f32
    %126 = vector.broadcast %cst_49 : f32 to vector<24x24xf32>
    %127 = arith.maximumf %126, %125 : vector<24x24xf32>
    %128 = vector.broadcast %cst_50 : f32 to vector<24x24xf32>
    %129 = arith.minimumf %128, %127 : vector<24x24xf32>
    %130 = math.exp %129 : vector<24x24xf32>
    %131 = arith.mulf %130, %3 : vector<24x24xf32>
    %cst_51 = arith.constant dense<0.000000e+00> : vector<24xf32>
    %132 = vector.multi_reduction <add>, %131, %cst_51 [1] : vector<24x24xf32> to vector<24xf32>
    %133 = vector.shape_cast %132 : vector<24xf32> to vector<24x1xf32>
    %cst_52 = arith.constant dense<0.000000e+00> : vector<24x4xf32>
    %134 = tpu.matmul %131, %124, %cst_52 {dimension_numbers = #tpu.dot_dimension_numbers<[1], [0], [0], [1], [0, 0, 1, 1], [], []>} : vector<24x24xf32>, vector<24x4xf32>, vector<24x4xf32> -> vector<24x4xf32>
    %135 = tpu.reciprocal %133 {approx = true} : vector<24x1xf32> -> vector<24x1xf32>
    %136 = vector.broadcast %135 : vector<24x1xf32> to vector<24x4xf32>
    %137 = arith.mulf %134, %136 : vector<24x4xf32>
    %138 = vector.extract_strided_slice %21 {offsets = [0, 28], sizes = [24, 4], strides = [1, 1]} : vector<24x32xf32> to vector<24x4xf32>
    %139 = vector.extract_strided_slice %22 {offsets = [0, 28], sizes = [24, 4], strides = [1, 1]} : vector<24x32xf32> to vector<24x4xf32>
    %140 = vector.extract_strided_slice %25 {offsets = [0, 28], sizes = [24, 4], strides = [1, 1]} : vector<24x32xf32> to vector<24x4xf32>
    %cst_53 = arith.constant dense<0.000000e+00> : vector<24x24xf32>
    %141 = tpu.matmul %138, %139, %cst_53 {dimension_numbers = #tpu.dot_dimension_numbers<[1], [1], [0], [0], [0, 0, 1, 0], [], []>} : vector<24x4xf32>, vector<24x4xf32>, vector<24x24xf32> -> vector<24x24xf32>
    %cst_54 = arith.constant -1.000000e+01 : f32
    %cst_55 = arith.constant 1.000000e+01 : f32
    %142 = vector.broadcast %cst_54 : f32 to vector<24x24xf32>
    %143 = arith.maximumf %142, %141 : vector<24x24xf32>
    %144 = vector.broadcast %cst_55 : f32 to vector<24x24xf32>
    %145 = arith.minimumf %144, %143 : vector<24x24xf32>
    %146 = math.exp %145 : vector<24x24xf32>
    %147 = arith.mulf %146, %3 : vector<24x24xf32>
    %cst_56 = arith.constant dense<0.000000e+00> : vector<24xf32>
    %148 = vector.multi_reduction <add>, %147, %cst_56 [1] : vector<24x24xf32> to vector<24xf32>
    %149 = vector.shape_cast %148 : vector<24xf32> to vector<24x1xf32>
    %cst_57 = arith.constant dense<0.000000e+00> : vector<24x4xf32>
    %150 = tpu.matmul %147, %140, %cst_57 {dimension_numbers = #tpu.dot_dimension_numbers<[1], [0], [0], [1], [0, 0, 1, 1], [], []>} : vector<24x24xf32>, vector<24x4xf32>, vector<24x4xf32> -> vector<24x4xf32>
    %151 = tpu.reciprocal %149 {approx = true} : vector<24x1xf32> -> vector<24x1xf32>
    %152 = vector.broadcast %151 : vector<24x1xf32> to vector<24x4xf32>
    %153 = arith.mulf %150, %152 : vector<24x4xf32>
    %154 = tpu.concatenate %41, %57, %73, %89, %105, %121, %137, %153 in 1 : vector<24x4xf32>, vector<24x4xf32>, vector<24x4xf32>, vector<24x4xf32>, vector<24x4xf32>, vector<24x4xf32>, vector<24x4xf32>, vector<24x4xf32> -> vector<24x32xf32>
    %c0_58 = arith.constant 0 : index
    %c0_59 = arith.constant 0 : index
    %c0_60 = arith.constant 0 : index
    %155 = vector.load %arg8[%c0_58, %c0_59, %c0_60] : memref<1x6x32xf32, #tpu.memory_space<vmem>>, vector<1x6x32xf32>
    %156 = vector.shape_cast %155 : vector<1x6x32xf32> to vector<6x32xf32>
    %c0_61 = arith.constant 0 : index
    %c0_62 = arith.constant 0 : index
    %c0_63 = arith.constant 0 : index
    %157 = vector.load %arg7[%c0_61, %c0_62, %c0_63] : memref<1x32x32xf32, #tpu.memory_space<vmem>>, vector<1x32x32xf32>
    %158 = vector.shape_cast %157 : vector<1x32x32xf32> to vector<32x32xf32>
    %cst_64 = arith.constant dense<0.000000e+00> : vector<24x32xf32>
    %159 = tpu.matmul %154, %158, %cst_64 {dimension_numbers = #tpu.dot_dimension_numbers<[1], [0], [0], [1], [0, 0, 1, 1], [], []>} : vector<24x32xf32>, vector<32x32xf32>, vector<24x32xf32> -> vector<24x32xf32>
    %160 = arith.addf %1, %159 : vector<24x32xf32>
    %161 = vector.extract_strided_slice %156 {offsets = [0, 0], sizes = [1, 32], strides = [1, 1]} : vector<6x32xf32> to vector<1x32xf32>
    %162 = vector.broadcast %161 : vector<1x32xf32> to vector<24x32xf32>
    %163 = arith.addf %160, %162 : vector<24x32xf32>
    %164 = vector.extract_strided_slice %156 {offsets = [1, 0], sizes = [1, 32], strides = [1, 1]} : vector<6x32xf32> to vector<1x32xf32>
    %165 = vector.extract_strided_slice %156 {offsets = [2, 0], sizes = [1, 32], strides = [1, 1]} : vector<6x32xf32> to vector<1x32xf32>
    %cst_65 = arith.constant dense<0.000000e+00> : vector<24xf32>
    %166 = vector.multi_reduction <add>, %163, %cst_65 [1] : vector<24x32xf32> to vector<24xf32>
    %167 = vector.shape_cast %166 : vector<24xf32> to vector<24x1xf32>
    %cst_66 = arith.constant 3.200000e+01 : f32
    %168 = vector.broadcast %cst_66 : f32 to vector<24x1xf32>
    %169 = arith.divf %167, %168 : vector<24x1xf32>
    %170 = arith.mulf %163, %163 : vector<24x32xf32>
    %cst_67 = arith.constant dense<0.000000e+00> : vector<24xf32>
    %171 = vector.multi_reduction <add>, %170, %cst_67 [1] : vector<24x32xf32> to vector<24xf32>
    %172 = vector.shape_cast %171 : vector<24xf32> to vector<24x1xf32>
    %cst_68 = arith.constant 3.200000e+01 : f32
    %173 = vector.broadcast %cst_68 : f32 to vector<24x1xf32>
    %174 = arith.divf %172, %173 : vector<24x1xf32>
    %175 = arith.mulf %169, %169 : vector<24x1xf32>
    %176 = arith.subf %174, %175 : vector<24x1xf32>
    %cst_69 = arith.constant 0.000000e+00 : f32
    %177 = vector.broadcast %cst_69 : f32 to vector<24x1xf32>
    %178 = arith.maximumf %176, %177 : vector<24x1xf32>
    %179 = vector.broadcast %169 : vector<24x1xf32> to vector<24x32xf32>
    %180 = arith.subf %163, %179 : vector<24x32xf32>
    %cst_70 = arith.constant 9.99999974E-6 : f32
    %181 = vector.broadcast %cst_70 : f32 to vector<24x1xf32>
    %182 = arith.addf %178, %181 : vector<24x1xf32>
    %183 = math.rsqrt %182 : vector<24x1xf32>
    %184 = vector.broadcast %183 : vector<24x1xf32> to vector<24x32xf32>
    %185 = arith.mulf %180, %184 : vector<24x32xf32>
    %186 = vector.broadcast %164 : vector<1x32xf32> to vector<24x32xf32>
    %187 = arith.mulf %185, %186 : vector<24x32xf32>
    %188 = vector.broadcast %165 : vector<1x32xf32> to vector<24x32xf32>
    %189 = arith.addf %187, %188 : vector<24x32xf32>
    %c0_71 = arith.constant 0 : index
    %c0_72 = arith.constant 0 : index
    %c0_73 = arith.constant 0 : index
    %190 = vector.load %arg9[%c0_71, %c0_72, %c0_73] : memref<1x32x128xf32, #tpu.memory_space<vmem>>, vector<1x32x128xf32>
    %191 = vector.shape_cast %190 : vector<1x32x128xf32> to vector<32x128xf32>
    %cst_74 = arith.constant dense<0.000000e+00> : vector<24x128xf32>
    %192 = tpu.matmul %189, %191, %cst_74 {dimension_numbers = #tpu.dot_dimension_numbers<[1], [0], [0], [1], [0, 0, 1, 1], [], []>} : vector<24x32xf32>, vector<32x128xf32>, vector<24x128xf32> -> vector<24x128xf32>
    %c0_75 = arith.constant 0 : index
    %c0_76 = arith.constant 0 : index
    %c0_77 = arith.constant 0 : index
    %193 = vector.load %arg10[%c0_75, %c0_76, %c0_77] : memref<1x1x128xf32, #tpu.memory_space<vmem>>, vector<1x1x128xf32>
    %194 = vector.shape_cast %193 : vector<1x1x128xf32> to vector<1x128xf32>
    %195 = vector.broadcast %194 : vector<1x128xf32> to vector<24x128xf32>
    %196 = arith.addf %192, %195 : vector<24x128xf32>
    %cst_78 = arith.constant 0.000000e+00 : f32
    %197 = vector.broadcast %cst_78 : f32 to vector<24x128xf32>
    %198 = arith.maximumf %196, %197 : vector<24x128xf32>
    %c0_79 = arith.constant 0 : index
    %c0_80 = arith.constant 0 : index
    %c0_81 = arith.constant 0 : index
    %199 = vector.load %arg11[%c0_79, %c0_80, %c0_81] : memref<1x128x32xf32, #tpu.memory_space<vmem>>, vector<1x128x32xf32>
    %200 = vector.shape_cast %199 : vector<1x128x32xf32> to vector<128x32xf32>
    %cst_82 = arith.constant dense<0.000000e+00> : vector<24x32xf32>
    %201 = tpu.matmul %198, %200, %cst_82 {dimension_numbers = #tpu.dot_dimension_numbers<[1], [0], [0], [1], [0, 0, 1, 1], [], []>} : vector<24x128xf32>, vector<128x32xf32>, vector<24x32xf32> -> vector<24x32xf32>
    %202 = vector.extract_strided_slice %156 {offsets = [3, 0], sizes = [1, 32], strides = [1, 1]} : vector<6x32xf32> to vector<1x32xf32>
    %203 = vector.broadcast %202 : vector<1x32xf32> to vector<24x32xf32>
    %204 = arith.addf %201, %203 : vector<24x32xf32>
    %205 = arith.addf %189, %204 : vector<24x32xf32>
    %206 = vector.extract_strided_slice %156 {offsets = [4, 0], sizes = [1, 32], strides = [1, 1]} : vector<6x32xf32> to vector<1x32xf32>
    %207 = vector.extract_strided_slice %156 {offsets = [5, 0], sizes = [1, 32], strides = [1, 1]} : vector<6x32xf32> to vector<1x32xf32>
    %cst_83 = arith.constant dense<0.000000e+00> : vector<24xf32>
    %208 = vector.multi_reduction <add>, %205, %cst_83 [1] : vector<24x32xf32> to vector<24xf32>
    %209 = vector.shape_cast %208 : vector<24xf32> to vector<24x1xf32>
    %cst_84 = arith.constant 3.200000e+01 : f32
    %210 = vector.broadcast %cst_84 : f32 to vector<24x1xf32>
    %211 = arith.divf %209, %210 : vector<24x1xf32>
    %212 = arith.mulf %205, %205 : vector<24x32xf32>
    %cst_85 = arith.constant dense<0.000000e+00> : vector<24xf32>
    %213 = vector.multi_reduction <add>, %212, %cst_85 [1] : vector<24x32xf32> to vector<24xf32>
    %214 = vector.shape_cast %213 : vector<24xf32> to vector<24x1xf32>
    %cst_86 = arith.constant 3.200000e+01 : f32
    %215 = vector.broadcast %cst_86 : f32 to vector<24x1xf32>
    %216 = arith.divf %214, %215 : vector<24x1xf32>
    %217 = arith.mulf %211, %211 : vector<24x1xf32>
    %218 = arith.subf %216, %217 : vector<24x1xf32>
    %cst_87 = arith.constant 0.000000e+00 : f32
    %219 = vector.broadcast %cst_87 : f32 to vector<24x1xf32>
    %220 = arith.maximumf %218, %219 : vector<24x1xf32>
    %221 = vector.broadcast %211 : vector<24x1xf32> to vector<24x32xf32>
    %222 = arith.subf %205, %221 : vector<24x32xf32>
    %cst_88 = arith.constant 9.99999974E-6 : f32
    %223 = vector.broadcast %cst_88 : f32 to vector<24x1xf32>
    %224 = arith.addf %220, %223 : vector<24x1xf32>
    %225 = math.rsqrt %224 : vector<24x1xf32>
    %226 = vector.broadcast %225 : vector<24x1xf32> to vector<24x32xf32>
    %227 = arith.mulf %222, %226 : vector<24x32xf32>
    %228 = vector.broadcast %206 : vector<1x32xf32> to vector<24x32xf32>
    %229 = arith.mulf %227, %228 : vector<24x32xf32>
    %230 = vector.broadcast %207 : vector<1x32xf32> to vector<24x32xf32>
    %231 = arith.addf %229, %230 : vector<24x32xf32>
    %c0_89 = arith.constant 0 : index
    %c0_90 = arith.constant 0 : index
    %c0_91 = arith.constant 0 : index
    %232 = vector.load %arg12[%c0_89, %c0_90, %c0_91] : memref<1x24x32xf32, #tpu.memory_space<vmem>>, vector<1x24x32xf32>
    %233 = vector.shape_cast %232 : vector<1x24x32xf32> to vector<24x32xf32>
    %234 = vector.shape_cast %231 : vector<24x32xf32> to vector<1x24x32xf32>
    tpu.vector_store %arg12[%c0_89, %c0_90, %c0_91], %234 {strides = array<i32>} : memref<1x24x32xf32, #tpu.memory_space<vmem>>, vector<1x24x32xf32>,
    return
  }
  func.func @transform_0(%arg0: i32) -> (i32, i32) {
    %c0_i32 = arith.constant 0 : i32
    %c0_i32_0 = arith.constant 0 : i32
    %c0_i32_1 = arith.constant 0 : i32
    return %c0_i32, %c0_i32_0 : i32, i32
  }
  func.func @transform_1(%arg0: i32) -> (i32, i32) {
    %c0_i32 = arith.constant 0 : i32
    %c0_i32_0 = arith.constant 0 : i32
    %c0_i32_1 = arith.constant 0 : i32
    return %c0_i32, %c0_i32_0 : i32, i32
  }
  func.func @transform_2(%arg0: i32) -> (i32, i32, i32) {
    %c0_i32 = arith.constant 0 : i32
    %c0_i32_0 = arith.constant 0 : i32
    %c0_i32_1 = arith.constant 0 : i32
    return %arg0, %c0_i32, %c0_i32_0 : i32, i32, i32
  }
  func.func @transform_3(%arg0: i32) -> (i32, i32, i32) {
    %c0_i32 = arith.constant 0 : i32
    %c0_i32_0 = arith.constant 0 : i32
    %c0_i32_1 = arith.constant 0 : i32
    return %arg0, %c0_i32, %c0_i32_0 : i32, i32, i32
  }
  func.func @transform_4(%arg0: i32) -> (i32, i32, i32) {
    %c0_i32 = arith.constant 0 : i32
    %c0_i32_0 = arith.constant 0 : i32
    %c0_i32_1 = arith.constant 0 : i32
    return %arg0, %c0_i32, %c0_i32_0 : i32, i32, i32
  }
  func.func @transform_5(%arg0: i32) -> (i32, i32, i32) {
    %c0_i32 = arith.constant 0 : i32
    %c0_i32_0 = arith.constant 0 : i32
    %c0_i32_1 = arith.constant 0 : i32
    return %arg0, %c0_i32, %c0_i32_0 : i32, i32, i32
  }
  func.func @transform_6(%arg0: i32) -> (i32, i32, i32) {
    %c0_i32 = arith.constant 0 : i32
    %c0_i32_0 = arith.constant 0 : i32
    %c0_i32_1 = arith.constant 0 : i32
    return %arg0, %c0_i32, %c0_i32_0 : i32, i32, i32
  }
  func.func @transform_7(%arg0: i32) -> (i32, i32, i32) {
    %c0_i32 = arith.constant 0 : i32
    %c0_i32_0 = arith.constant 0 : i32
    %c0_i32_1 = arith.constant 0 : i32
    return %arg0, %c0_i32, %c0_i32_0 : i32, i32, i32
  }
  func.func @transform_8(%arg0: i32) -> (i32, i32, i32) {
    %c0_i32 = arith.constant 0 : i32
    %c0_i32_0 = arith.constant 0 : i32
    %c0_i32_1 = arith.constant 0 : i32
    return %arg0, %c0_i32, %c0_i32_0 : i32, i32, i32
  }
  func.func @transform_9(%arg0: i32) -> (i32, i32, i32) {
    %c0_i32 = arith.constant 0 : i32
    %c0_i32_0 = arith.constant 0 : i32
    %c0_i32_1 = arith.constant 0 : i32
    return %arg0, %c0_i32, %c0_i32_0 : i32, i32, i32
  }
  func.func @transform_10(%arg0: i32) -> (i32, i32, i32) {
    %c0_i32 = arith.constant 0 : i32
    %c0_i32_0 = arith.constant 0 : i32
    %c0_i32_1 = arith.constant 0 : i32
    return %arg0, %c0_i32, %c0_i32_0 : i32, i32, i32
  }
  func.func @transform_11(%arg0: i32) -> (i32, i32, i32) {
    %c0_i32 = arith.constant 0 : i32
    %c0_i32_0 = arith.constant 0 : i32
    %c0_i32_1 = arith.constant 0 : i32
    return %arg0, %c0_i32, %c0_i32_0 : i32, i32, i32
  }
}

</mosaic_0001>

<llo_original>
// kernel: dual_rgat_forward.1
$region0: #{dual_rgat_forward.1}
  #allocation0 [shape = 'u32[]', space=smem, size = 0x4, offset = 0x4, fixed_abs, tag = 'smem constant byte address 0x4 - core index']
  #allocation1 [shape = 'u32[144,128]{1,0:T(1,128)}', space=vmem, size = 0x12000, scoped, tag = 'internal scratch']
  #allocation2 [shape = 'f32[24,32]{1,0:T(8,128)}', space=vmem, size = 0x3000, scoped, tag = 'scratch operand']
  #allocation3 [shape = 'f32[24,32]{1,0:T(8,128)}', space=vmem, size = 0x3000, scoped, tag = 'scratch operand']
  %s0 = inlined_call_operand.vmem [shape: s32[24,2], index: 0, kind: input, shape index: {}]
  %s1 = inlined_call_operand.vmem [shape: f32[24,32], index: 1, kind: input, shape index: {}]
  %s2 = inlined_call_operand.vmem [shape: f32[2,24,32], index: 2, kind: input, shape index: {}]
  %s3 = inlined_call_operand.vmem [shape: f32[2,24,24], index: 3, kind: input, shape index: {}]
  %s4 = inlined_call_operand.vmem [shape: f32[2,32,96], index: 4, kind: input, shape index: {}]
  %s5 = inlined_call_operand.vmem [shape: f32[2,1,32], index: 5, kind: input, shape index: {}]
  %s6 = inlined_call_operand.vmem [shape: f32[2,32,32], index: 6, kind: input, shape index: {}]
  %s7 = inlined_call_operand.vmem [shape: f32[2,6,32], index: 7, kind: input, shape index: {}]
  %s8 = inlined_call_operand.vmem [shape: f32[2,32,128], index: 8, kind: input, shape index: {}]
  %s9 = inlined_call_operand.vmem [shape: f32[2,1,128], index: 9, kind: input, shape index: {}]
  %s10 = inlined_call_operand.vmem [shape: f32[2,128,32], index: 10, kind: input, shape index: {}]
  %s11 = inlined_call_operand.vmem [shape: f32[2,24,32], index: 11, kind: output, shape index: {}]
  %s12 = sld [smem:[#allocation0]]
  $region85: #{dual_rgat_forward.1} parent=0
    _
  %s14 = ssub.s32 1, %s12
  %s15 = scalar_select 0, %s14, %s12
  loop: start=0, step=1, limit=4
  $region2: #{dual_rgat_forward.1} parent=0 // loop_pre_header
    _
  $region3: #{dual_rgat_forward.1} parent=0 // loop_header
    %s17 = sphi 0, %s21
    %p18 = scmp.ge.s32.totalorder %s17, 4
    %s25 = sphi 0, %s25
    %s27 = sphi 0, %s25
    %s28 = sphi 0, %s27
    %s42 = sphi 0, %s28
    %s46 = sphi 0, %s46
    %s48 = sphi 0, %s46
    %s49 = sphi 0, %s48
    %s63 = sphi 0, %s49
    %s69 = sphi 0, %s71
    %s72 = sphi 0, %s69
    %s73 = sphi 0, %s72
    %s89 = sphi 0, %s73
    %s95 = sphi 0, %s97
    %s98 = sphi 0, %s95
    %s99 = sphi 0, %s98
    %s115 = sphi 0, %s99
    %s121 = sphi 0, %s123
    %s124 = sphi 0, %s121
    %s125 = sphi 0, %s124
    %s141 = sphi 0, %s125
    %s147 = sphi 0, %s149
    %s150 = sphi 0, %s147
    %s151 = sphi 0, %s150
    %s167 = sphi 0, %s151
    %s173 = sphi 0, %s175
    %s176 = sphi 0, %s173
    %s177 = sphi 0, %s176
    %s193 = sphi 0, %s177
    %s199 = sphi 0, %s201
    %s202 = sphi 0, %s199
    %s203 = sphi 0, %s202
    %s219 = sphi 0, %s203
    %s225 = sphi 0, %s227
    %s228 = sphi 0, %s225
    %s229 = sphi 0, %s228
    %s245 = sphi 0, %s229
    %s251 = sphi 0, %s253
    %s254 = sphi 0, %s251
    %s255 = sphi 0, %s254
    %s271 = sphi 0, %s255
    %s277 = sphi 0, %s279
    %s280 = sphi 0, %s277
    %s281 = sphi 0, %s280
    %s297 = sphi 0, %s281
    %s303 = sphi 0, %s305
    %s306 = sphi 0, %s303
    %s307 = sphi 0, %s306
    %s323 = sphi 0, %s307
  $region4: #{dual_rgat_forward.1} parent=0 // loop_header_branch
    %20 = sbr.rel (%p18) target = $region8
  $region5: #{dual_rgat_forward.1} parent=0 // loop_body
    %s22 = ssub.s32 %s17, 1
    %s23 = ssub.s32 %s17, 2
    %s24 = sadd.s32 %s17, 1
    %s26 = sadd.s32 %s25, 1
    %p29 = scmp.eq.s32.totalorder %s17, 1
    %p30 = scmp.ne.s32.totalorder %s25, %s27
    %p31 = scmp.eq.s32.totalorder %s17, 0
    %p32 = por %p30, %p31
    %p33 = scmp.ne.s32.totalorder %s25, %s27
    %p34 = scmp.eq.s32.totalorder %s22, 1
    %p35 = por %p33, %p34
    %p36 = scmp.ne.s32.totalorder %s27, %s28
    %p37 = scmp.eq.s32.totalorder %s22, 0
    %p38 = por %p36, %p37
    %p39 = scmp.ne.s32.totalorder %s27, %s28
    %p40 = scmp.eq.s32.totalorder %s23, 1
    %p41 = por %p39, %p40
    %p43 = scmp.ne.s32.totalorder %s28, %s42
    %p44 = scmp.eq.s32.totalorder %s23, 0
    %p45 = por %p43, %p44
    %s47 = sadd.s32 %s46, 1
    %p50 = scmp.eq.s32.totalorder %s17, 1
    %p51 = scmp.ne.s32.totalorder %s46, %s48
    %p52 = scmp.eq.s32.totalorder %s17, 0
    %p53 = por %p51, %p52
    %p54 = scmp.ne.s32.totalorder %s46, %s48
    %p55 = scmp.eq.s32.totalorder %s22, 1
    %p56 = por %p54, %p55
    %p57 = scmp.ne.s32.totalorder %s48, %s49
    %p58 = scmp.eq.s32.totalorder %s22, 0
    %p59 = por %p57, %p58
    %p60 = scmp.ne.s32.totalorder %s48, %s49
    %p61 = scmp.eq.s32.totalorder %s23, 1
    %p62 = por %p60, %p61
    %p64 = scmp.ne.s32.totalorder %s49, %s63
    %p65 = scmp.eq.s32.totalorder %s23, 0
    %p66 = por %p64, %p65
    %s67 = ssub.s32 %s17, %s24
    %p68 = scmp.eq.s32.totalorder %s67, 0
    %s70 = sadd.s32 %s69, 1
    %s71 = scalar_select %p68, %s69, %s70
    %p74 = pneg %p68
    %p75 = scmp.eq.s32.totalorder %s17, 1
    %p76 = por %p74, %p75
    %p77 = scmp.ne.s32.totalorder %s69, %s72
    %p78 = scmp.eq.s32.totalorder %s17, 0
    %p79 = por %p77, %p78
    %p80 = scmp.ne.s32.totalorder %s69, %s72
    %p81 = scmp.eq.s32.totalorder %s22, 1
    %p82 = por %p80, %p81
    %p83 = scmp.ne.s32.totalorder %s72, %s73
    %p84 = scmp.eq.s32.totalorder %s22, 0
    %p85 = por %p83, %p84
    %p86 = scmp.ne.s32.totalorder %s72, %s73
    %p87 = scmp.eq.s32.totalorder %s23, 1
    %p88 = por %p86, %p87
    %p90 = scmp.ne.s32.totalorder %s73, %s89
    %p91 = scmp.eq.s32.totalorder %s23, 0
    %p92 = por %p90, %p91
    %s93 = ssub.s32 %s17, %s24
    %p94 = scmp.eq.s32.totalorder %s93, 0
    %s96 = sadd.s32 %s95, 1
    %s97 = scalar_select %p94, %s95, %s96
    %p100 = pneg %p94
    %p101 = scmp.eq.s32.totalorder %s17, 1
    %p102 = por %p100, %p101
    %p103 = scmp.ne.s32.totalorder %s95, %s98
    %p104 = scmp.eq.s32.totalorder %s17, 0
    %p105 = por %p103, %p104
    %p106 = scmp.ne.s32.totalorder %s95, %s98
    %p107 = scmp.eq.s32.totalorder %s22, 1
    %p108 = por %p106, %p107
    %p109 = scmp.ne.s32.totalorder %s98, %s99
    %p110 = scmp.eq.s32.totalorder %s22, 0
    %p111 = por %p109, %p110
    %p112 = scmp.ne.s32.totalorder %s98, %s99
    %p113 = scmp.eq.s32.totalorder %s23, 1
    %p114 = por %p112, %p113
    %p116 = scmp.ne.s32.totalorder %s99, %s115
    %p117 = scmp.eq.s32.totalorder %s23, 0
    %p118 = por %p116, %p117
    %s119 = ssub.s32 %s17, %s24
    %p120 = scmp.eq.s32.totalorder %s119, 0
    %s122 = sadd.s32 %s121, 1
    %s123 = scalar_select %p120, %s121, %s122
    %p126 = pneg %p120
    %p127 = scmp.eq.s32.totalorder %s17, 1
    %p128 = por %p126, %p127
    %p129 = scmp.ne.s32.totalorder %s121, %s124
    %p130 = scmp.eq.s32.totalorder %s17, 0
    %p131 = por %p129, %p130
    %p132 = scmp.ne.s32.totalorder %s121, %s124
    %p133 = scmp.eq.s32.totalorder %s22, 1
    %p134 = por %p132, %p133
    %p135 = scmp.ne.s32.totalorder %s124, %s125
    %p136 = scmp.eq.s32.totalorder %s22, 0
    %p137 = por %p135, %p136
    %p138 = scmp.ne.s32.totalorder %s124, %s125
    %p139 = scmp.eq.s32.totalorder %s23, 1
    %p140 = por %p138, %p139
    %p142 = scmp.ne.s32.totalorder %s125, %s141
    %p143 = scmp.eq.s32.totalorder %s23, 0
    %p144 = por %p142, %p143
    %s145 = ssub.s32 %s17, %s24
    %p146 = scmp.eq.s32.totalorder %s145, 0
    %s148 = sadd.s32 %s147, 1
    %s149 = scalar_select %p146, %s147, %s148
    %p152 = pneg %p146
    %p153 = scmp.eq.s32.totalorder %s17, 1
    %p154 = por %p152, %p153
    %p155 = scmp.ne.s32.totalorder %s147, %s150
    %p156 = scmp.eq.s32.totalorder %s17, 0
    %p157 = por %p155, %p156
    %p158 = scmp.ne.s32.totalorder %s147, %s150
    %p159 = scmp.eq.s32.totalorder %s22, 1
    %p160 = por %p158, %p159
    %p161 = scmp.ne.s32.totalorder %s150, %s151
    %p162 = scmp.eq.s32.totalorder %s22, 0
    %p163 = por %p161, %p162
    %p164 = scmp.ne.s32.totalorder %s150, %s151
    %p165 = scmp.eq.s32.totalorder %s23, 1
    %p166 = por %p164, %p165
    %p168 = scmp.ne.s32.totalorder %s151, %s167
    %p169 = scmp.eq.s32.totalorder %s23, 0
    %p170 = por %p168, %p169
    %s171 = ssub.s32 %s17, %s24
    %p172 = scmp.eq.s32.totalorder %s171, 0
    %s174 = sadd.s32 %s173, 1
    %s175 = scalar_select %p172, %s173, %s174
    %p178 = pneg %p172
    %p179 = scmp.eq.s32.totalorder %s17, 1
    %p180 = por %p178, %p179
    %p181 = scmp.ne.s32.totalorder %s173, %s176
    %p182 = scmp.eq.s32.totalorder %s17, 0
    %p183 = por %p181, %p182
    %p184 = scmp.ne.s32.totalorder %s173, %s176
    %p185 = scmp.eq.s32.totalorder %s22, 1
    %p186 = por %p184, %p185
    %p187 = scmp.ne.s32.totalorder %s176, %s177
    %p188 = scmp.eq.s32.totalorder %s22, 0
    %p189 = por %p187, %p188
    %p190 = scmp.ne.s32.totalorder %s176, %s177
    %p191 = scmp.eq.s32.totalorder %s23, 1
    %p192 = por %p190, %p191
    %p194 = scmp.ne.s32.totalorder %s177, %s193
    %p195 = scmp.eq.s32.totalorder %s23, 0
    %p196 = por %p194, %p195
    %s197 = ssub.s32 %s17, %s24
    %p198 = scmp.eq.s32.totalorder %s197, 0
    %s200 = sadd.s32 %s199, 1
    %s201 = scalar_select %p198, %s199, %s200
    %p204 = pneg %p198
    %p205 = scmp.eq.s32.totalorder %s17, 1
    %p206 = por %p204, %p205
    %p207 = scmp.ne.s32.totalorder %s199, %s202
    %p208 = scmp.eq.s32.totalorder %s17, 0
    %p209 = por %p207, %p208
    %p210 = scmp.ne.s32.totalorder %s199, %s202
    %p211 = scmp.eq.s32.totalorder %s22, 1
    %p212 = por %p210, %p211
    %p213 = scmp.ne.s32.totalorder %s202, %s203
    %p214 = scmp.eq.s32.totalorder %s22, 0
    %p215 = por %p213, %p214
    %p216 = scmp.ne.s32.totalorder %s202, %s203
    %p217 = scmp.eq.s32.totalorder %s23, 1
    %p218 = por %p216, %p217
    %p220 = scmp.ne.s32.totalorder %s203, %s219
    %p221 = scmp.eq.s32.totalorder %s23, 0
    %p222 = por %p220, %p221
    %s223 = ssub.s32 %s17, %s24
    %p224 = scmp.eq.s32.totalorder %s223, 0
    %s226 = sadd.s32 %s225, 1
    %s227 = scalar_select %p224, %s225, %s226
    %p230 = pneg %p224
    %p231 = scmp.eq.s32.totalorder %s17, 1
    %p232 = por %p230, %p231
    %p233 = scmp.ne.s32.totalorder %s225, %s228
    %p234 = scmp.eq.s32.totalorder %s17, 0
    %p235 = por %p233, %p234
    %p236 = scmp.ne.s32.totalorder %s225, %s228
    %p237 = scmp.eq.s32.totalorder %s22, 1
    %p238 = por %p236, %p237
    %p239 = scmp.ne.s32.totalorder %s228, %s229
    %p240 = scmp.eq.s32.totalorder %s22, 0
    %p241 = por %p239, %p240
    %p242 = scmp.ne.s32.totalorder %s228, %s229
    %p243 = scmp.eq.s32.totalorder %s23, 1
    %p244 = por %p242, %p243
    %p246 = scmp.ne.s32.totalorder %s229, %s245
    %p247 = scmp.eq.s32.totalorder %s23, 0
    %p248 = por %p246, %p247
    %s249 = ssub.s32 %s17, %s24
    %p250 = scmp.eq.s32.totalorder %s249, 0
    %s252 = sadd.s32 %s251, 1
    %s253 = scalar_select %p250, %s251, %s252
    %p256 = pneg %p250
    %p257 = scmp.eq.s32.totalorder %s17, 1
    %p258 = por %p256, %p257
    %p259 = scmp.ne.s32.totalorder %s251, %s254
    %p260 = scmp.eq.s32.totalorder %s17, 0
    %p261 = por %p259, %p260
    %p262 = scmp.ne.s32.totalorder %s251, %s254
    %p263 = scmp.eq.s32.totalorder %s22, 1
    %p264 = por %p262, %p263
    %p265 = scmp.ne.s32.totalorder %s254, %s255
    %p266 = scmp.eq.s32.totalorder %s22, 0
    %p267 = por %p265, %p266
    %p268 = scmp.ne.s32.totalorder %s254, %s255
    %p269 = scmp.eq.s32.totalorder %s23, 1
    %p270 = por %p268, %p269
    %p272 = scmp.ne.s32.totalorder %s255, %s271
    %p273 = scmp.eq.s32.totalorder %s23, 0
    %p274 = por %p272, %p273
    %s275 = ssub.s32 %s17, %s24
    %p276 = scmp.eq.s32.totalorder %s275, 0
    %s278 = sadd.s32 %s277, 1
    %s279 = scalar_select %p276, %s277, %s278
    %p282 = pneg %p276
    %p283 = scmp.eq.s32.totalorder %s17, 1
    %p284 = por %p282, %p283
    %p285 = scmp.ne.s32.totalorder %s277, %s280
    %p286 = scmp.eq.s32.totalorder %s17, 0
    %p287 = por %p285, %p286
    %p288 = scmp.ne.s32.totalorder %s277, %s280
    %p289 = scmp.eq.s32.totalorder %s22, 1
    %p290 = por %p288, %p289
    %p291 = scmp.ne.s32.totalorder %s280, %s281
    %p292 = scmp.eq.s32.totalorder %s22, 0
    %p293 = por %p291, %p292
    %p294 = scmp.ne.s32.totalorder %s280, %s281
    %p295 = scmp.eq.s32.totalorder %s23, 1
    %p296 = por %p294, %p295
    %p298 = scmp.ne.s32.totalorder %s281, %s297
    %p299 = scmp.eq.s32.totalorder %s23, 0
    %p300 = por %p298, %p299
    %s301 = ssub.s32 %s17, %s24
    %p302 = scmp.eq.s32.totalorder %s301, 0
    %s304 = sadd.s32 %s303, 1
    %s305 = scalar_select %p302, %s303, %s304
    %p308 = pneg %p302
    %p309 = scmp.eq.s32.totalorder %s17, 1
    %p310 = por %p308, %p309
    %p311 = scmp.ne.s32.totalorder %s303, %s306
    %p312 = scmp.eq.s32.totalorder %s17, 0
    %p313 = por %p311, %p312
    %p314 = scmp.ne.s32.totalorder %s303, %s306
    %p315 = scmp.eq.s32.totalorder %s22, 1
    %p316 = por %p314, %p315
    %p317 = scmp.ne.s32.totalorder %s306, %s307
    %p318 = scmp.eq.s32.totalorder %s22, 0
    %p319 = por %p317, %p318
    %p320 = scmp.ne.s32.totalorder %s306, %s307
    %p321 = scmp.eq.s32.totalorder %s23, 1
    %p322 = por %p320, %p321
    %p324 = scmp.ne.s32.totalorder %s307, %s323
    %p325 = scmp.eq.s32.totalorder %s23, 0
    %p326 = por %p324, %p325
    %p327 = scmp.le.s32.totalorder 1, %s17
    %p328 = scmp.lt.s32.totalorder %s17, 3
    %p329 = pnand %p327, %p328
    %p330 = pneg %p329
    // Predicated region
    $region9: #{dual_rgat_forward.1} parent=5 // pred_check
      _
    $region10: #{dual_rgat_forward.1} parent=5 // pred_check_branch
      %332 = sbr.rel (%p329) target = $region12
    $region11: #{dual_rgat_forward.1} parent=5 // pred_region
      %s333 = ssub.s32 %s17, 1
      // Predicated region
      $region13: #{dual_rgat_forward.1} parent=11 // pred_check
        %p334 = pneg %p38
      $region14: #{dual_rgat_forward.1} parent=11 // pred_check_branch
        %336 = sbr.rel (%p334) target = $region16
      $region15: #{dual_rgat_forward.1} parent=11 // pred_region
        _
      $region16: #{dual_rgat_forward.1} parent=11 // pred_fallthru
        _
      // Predicated region
      $region17: #{dual_rgat_forward.1} parent=11 // pred_check
        %p337 = pneg %p59
      $region18: #{dual_rgat_forward.1} parent=11 // pred_check_branch
        %339 = sbr.rel (%p337) target = $region20
      $region19: #{dual_rgat_forward.1} parent=11 // pred_region
        _
      $region20: #{dual_rgat_forward.1} parent=11 // pred_fallthru
        _
    $region12: #{dual_rgat_forward.1} parent=5 // pred_fallthru
      _
    %p340 = scmp.lt.s32.totalorder %s17, 2
    // Predicated region
    $region21: #{dual_rgat_forward.1} parent=5 // pred_check
      %p341 = pneg %p340
    $region22: #{dual_rgat_forward.1} parent=5 // pred_check_branch
      %343 = sbr.rel (%p341) target = $region24
    $region23: #{dual_rgat_forward.1} parent=5 // pred_region
      // Predicated region
      $region25: #{dual_rgat_forward.1} parent=23 // pred_check
        %p344 = pneg %p79
      $region26: #{dual_rgat_forward.1} parent=23 // pred_check_branch
        %346 = sbr.rel (%p344) target = $region28
      $region27: #{dual_rgat_forward.1} parent=23 // pred_region
        %p347 = scmp.lt.s32.totalorder %s17, 1
        %s348 = scalar_select %p347, %s17, 1
        %s349 = smul.addr %s348, 3
        %s350 = smul.addr %s349, 8
        %s351 = scalar_lea.vmem %s2, %s350
      $region28: #{dual_rgat_forward.1} parent=23 // pred_fallthru
        _
      // Predicated region
      $region29: #{dual_rgat_forward.1} parent=23 // pred_check
        %p352 = pneg %p105
      $region30: #{dual_rgat_forward.1} parent=23 // pred_check_branch
        %354 = sbr.rel (%p352) target = $region32
      $region31: #{dual_rgat_forward.1} parent=23 // pred_region
        %p355 = scmp.lt.s32.totalorder %s17, 1
        %s356 = scalar_select %p355, %s17, 1
        %s357 = smul.addr %s356, 3
        %s358 = smul.addr %s357, 8
        %s359 = scalar_lea.vmem %s3, %s358
      $region32: #{dual_rgat_forward.1} parent=23 // pred_fallthru
        _
      // Predicated region
      $region33: #{dual_rgat_forward.1} parent=23 // pred_check
        %p360 = pneg %p131
      $region34: #{dual_rgat_forward.1} parent=23 // pred_check_branch
        %362 = sbr.rel (%p360) target = $region36
      $region35: #{dual_rgat_forward.1} parent=23 // pred_region
        %p363 = scmp.lt.s32.totalorder %s17, 1
        %s364 = scalar_select %p363, %s17, 1
        %s365 = smul.addr %s364, 4
        %s366 = smul.addr %s365, 8
        %s367 = scalar_lea.vmem %s4, %s366
      $region36: #{dual_rgat_forward.1} parent=23 // pred_fallthru
        _
      // Predicated region
      $region37: #{dual_rgat_forward.1} parent=23 // pred_check
        %p368 = pneg %p157
      $region38: #{dual_rgat_forward.1} parent=23 // pred_check_branch
        %370 = sbr.rel (%p368) target = $region40
      $region39: #{dual_rgat_forward.1} parent=23 // pred_region
        %p371 = scmp.lt.s32.totalorder %s17, 1
        %s372 = scalar_select %p371, %s17, 1
        %s373 = scalar_lea.vmem %s5, %s372
      $region40: #{dual_rgat_forward.1} parent=23 // pred_fallthru
        _
      // Predicated region
      $region41: #{dual_rgat_forward.1} parent=23 // pred_check
        %p374 = pneg %p183
      $region42: #{dual_rgat_forward.1} parent=23 // pred_check_branch
        %376 = sbr.rel (%p374) target = $region44
      $region43: #{dual_rgat_forward.1} parent=23 // pred_region
        %p377 = scmp.lt.s32.totalorder %s17, 1
        %s378 = scalar_select %p377, %s17, 1
        %s379 = smul.addr %s378, 4
        %s380 = smul.addr %s379, 8
        %s381 = scalar_lea.vmem %s6, %s380
      $region44: #{dual_rgat_forward.1} parent=23 // pred_fallthru
        _
      // Predicated region
      $region45: #{dual_rgat_forward.1} parent=23 // pred_check
        %p382 = pneg %p209
      $region46: #{dual_rgat_forward.1} parent=23 // pred_check_branch
        %384 = sbr.rel (%p382) target = $region48
      $region47: #{dual_rgat_forward.1} parent=23 // pred_region
        %p385 = scmp.lt.s32.totalorder %s17, 1
        %s386 = scalar_select %p385, %s17, 1
        %s387 = smul.addr %s386, 8
        %s388 = scalar_lea.vmem %s7, %s387
      $region48: #{dual_rgat_forward.1} parent=23 // pred_fallthru
        _
      // Predicated region
      $region49: #{dual_rgat_forward.1} parent=23 // pred_check
        %p389 = pneg %p235
      $region50: #{dual_rgat_forward.1} parent=23 // pred_check_branch
        %391 = sbr.rel (%p389) target = $region52
      $region51: #{dual_rgat_forward.1} parent=23 // pred_region
        %p392 = scmp.lt.s32.totalorder %s17, 1
        %s393 = scalar_select %p392, %s17, 1
        %s394 = smul.addr %s393, 4
        %s395 = smul.addr %s394, 8
        %s396 = scalar_lea.vmem %s8, %s395
      $region52: #{dual_rgat_forward.1} parent=23 // pred_fallthru
        _
      // Predicated region
      $region53: #{dual_rgat_forward.1} parent=23 // pred_check
        %p397 = pneg %p261
      $region54: #{dual_rgat_forward.1} parent=23 // pred_check_branch
        %399 = sbr.rel (%p397) target = $region56
      $region55: #{dual_rgat_forward.1} parent=23 // pred_region
        %p400 = scmp.lt.s32.totalorder %s17, 1
        %s401 = scalar_select %p400, %s17, 1
        %s402 = scalar_lea.vmem %s9, %s401
      $region56: #{dual_rgat_forward.1} parent=23 // pred_fallthru
        _
      // Predicated region
      $region57: #{dual_rgat_forward.1} parent=23 // pred_check
        %p403 = pneg %p287
      $region58: #{dual_rgat_forward.1} parent=23 // pred_check_branch
        %405 = sbr.rel (%p403) target = $region60
      $region59: #{dual_rgat_forward.1} parent=23 // pred_region
        %p406 = scmp.lt.s32.totalorder %s17, 1
        %s407 = scalar_select %p406, %s17, 1
        %s408 = smul.addr %s407, 16
        %s409 = smul.addr %s408, 8
        %s410 = scalar_lea.vmem %s10, %s409
      $region60: #{dual_rgat_forward.1} parent=23 // pred_fallthru
        _
    $region24: #{dual_rgat_forward.1} parent=5 // pred_fallthru
      _
    %p411 = scmp.le.s32.totalorder 1, %s17
    %p412 = scmp.lt.s32.totalorder %s17, 3
    %p413 = pnand %p411, %p412
    %p414 = pneg %p413
    // Predicated region
    $region61: #{dual_rgat_forward.1} parent=5 // pred_check
      _
    $region62: #{dual_rgat_forward.1} parent=5 // pred_check_branch
      %416 = sbr.rel (%p413) target = $region64
    $region63: #{dual_rgat_forward.1} parent=5 // pred_region
      %s417 = ssub.s32 %s17, 1
      %p418 = pneg %p38
      %p419 = pneg %p35
      %p420 = pneg %p59
      %p421 = pneg %p56
      %p422 = scmp.lt.s32.totalorder %s22, 1
      %s423 = scalar_select %p422, %s22, 1
      %s424 = smul.addr %s423, 3
      %s425 = smul.addr %s424, 8
      %s426 = scalar_lea.vmem %s2, %s425
      %p427 = pneg %p85
      %p428 = pneg %p82
      %p429 = scmp.lt.s32.totalorder %s22, 1
      %s430 = scalar_select %p429, %s22, 1
      %s431 = smul.addr %s430, 3
      %s432 = smul.addr %s431, 8
      %s433 = scalar_lea.vmem %s3, %s432
      %p434 = pneg %p111
      %p435 = pneg %p108
      %p436 = scmp.lt.s32.totalorder %s22, 1
      %s437 = scalar_select %p436, %s22, 1
      %s438 = smul.addr %s437, 4
      %s439 = smul.addr %s438, 8
      %s440 = scalar_lea.vmem %s4, %s439
      %p441 = pneg %p137
      %p442 = pneg %p134
      %p443 = scmp.lt.s32.totalorder %s22, 1
      %s444 = scalar_select %p443, %s22, 1
      %s445 = scalar_lea.vmem %s5, %s444
      %p446 = pneg %p163
      %p447 = pneg %p160
      %p448 = scmp.lt.s32.totalorder %s22, 1
      %s449 = scalar_select %p448, %s22, 1
      %s450 = smul.addr %s449, 4
      %s451 = smul.addr %s450, 8
      %s452 = scalar_lea.vmem %s6, %s451
      %p453 = pneg %p189
      %p454 = pneg %p186
      %p455 = scmp.lt.s32.totalorder %s22, 1
      %s456 = scalar_select %p455, %s22, 1
      %s457 = smul.addr %s456, 8
      %s458 = scalar_lea.vmem %s7, %s457
      %p459 = pneg %p215
      %p460 = pneg %p212
      %p461 = scmp.lt.s32.totalorder %s22, 1
      %s462 = scalar_select %p461, %s22, 1
      %s463 = smul.addr %s462, 4
      %s464 = smul.addr %s463, 8
      %s465 = scalar_lea.vmem %s8, %s464
      %p466 = pneg %p241
      %p467 = pneg %p238
      %p468 = scmp.lt.s32.totalorder %s22, 1
      %s469 = scalar_select %p468, %s22, 1
      %s470 = scalar_lea.vmem %s9, %s469
      %p471 = pneg %p267
      %p472 = pneg %p264
      %p473 = scmp.lt.s32.totalorder %s22, 1
      %s474 = scalar_select %p473, %s22, 1
      %s475 = smul.addr %s474, 16
      %s476 = smul.addr %s475, 8
      %s477 = scalar_lea.vmem %s10, %s476
      %p478 = pneg %p293
      %p479 = pneg %p290
      %p480 = pneg %p319
      %p481 = pneg %p316
      %p482 = scmp.lt.s32.totalorder %s22, 1
      %s483 = scalar_select %p482, %s22, 1
      %s484 = smul.addr %s483, 3
      %s485 = smul.addr %s484, 8
      %s486 = scalar_lea.vmem %s11, %s485
      %p487 = scmp.lt.s32.totalorder %s22, 1
      %s488 = scalar_select %p487, %s22, 1
      %s489 = smul.addr %s488, 3
      %s490 = smul.addr %s489, 8
      %s491 = scalar_lea.vmem %s2, %s490
      %p492 = scmp.lt.s32.totalorder %s22, 1
      %s493 = scalar_select %p492, %s22, 1
      %s494 = smul.addr %s493, 3
      %s495 = smul.addr %s494, 8
      %s496 = scalar_lea.vmem %s3, %s495
      %p497 = scmp.lt.s32.totalorder %s22, 1
      %s498 = scalar_select %p497, %s22, 1
      %s499 = smul.addr %s498, 4
      %s500 = smul.addr %s499, 8
      %s501 = scalar_lea.vmem %s4, %s500
      %p502 = scmp.lt.s32.totalorder %s22, 1
      %s503 = scalar_select %p502, %s22, 1
      %s504 = scalar_lea.vmem %s5, %s503
      %p505 = scmp.lt.s32.totalorder %s22, 1
      %s506 = scalar_select %p505, %s22, 1
      %s507 = smul.addr %s506, 4
      %s508 = smul.addr %s507, 8
      %s509 = scalar_lea.vmem %s6, %s508
      %p510 = scmp.lt.s32.totalorder %s22, 1
      %s511 = scalar_select %p510, %s22, 1
      %s512 = smul.addr %s511, 8
      %s513 = scalar_lea.vmem %s7, %s512
      %p514 = scmp.lt.s32.totalorder %s22, 1
      %s515 = scalar_select %p514, %s22, 1
      %s516 = smul.addr %s515, 4
      %s517 = smul.addr %s516, 8
      %s518 = scalar_lea.vmem %s8, %s517
      %p519 = scmp.lt.s32.totalorder %s22, 1
      %s520 = scalar_select %p519, %s22, 1
      %s521 = scalar_lea.vmem %s9, %s520
      %p522 = scmp.lt.s32.totalorder %s22, 1
      %s523 = scalar_select %p522, %s22, 1
      %s524 = smul.addr %s523, 16
      %s525 = smul.addr %s524, 8
      %s526 = scalar_lea.vmem %s10, %s525
      %p527 = scmp.lt.s32.totalorder %s22, 1
      %s528 = scalar_select %p527, %s22, 1
      %s529 = smul.addr %s528, 3
      %s530 = smul.addr %s529, 8
      %s531 = scalar_lea.vmem %s11, %s530
      %v532 = vld [vmem:[%s491] sm:$0xff]
      %v533 = vld [vmem:[%s491 + $0x8] sm:$0xff]
      %v534 = vld [vmem:[%s491 + $0x10] sm:$0xff]
      %v535 = vld [vmem:[%s496] sm:$0xff]
      %v536 = vld [vmem:[%s496 + $0x8] sm:$0xff]
      %v537 = vld [vmem:[%s496 + $0x10] sm:$0xff]
      %p538 = scmp.eq.s32.totalorder %s22, 0
      // Predicated region
      $region65: #{dual_rgat_forward.1} parent=63 // pred_check
        %p539 = pneg %p538
      $region66: #{dual_rgat_forward.1} parent=63 // pred_check_branch
        %541 = sbr.rel (%p539) target = $region68
      $region67: #{dual_rgat_forward.1} parent=63 // pred_region
        %vm542 = vcmask 261120
        %543 = vst.msk [vmem:[#allocation2] sm:$0xff] %vm542, 0.0
        %544 = vst.msk [vmem:[#allocation2 + $0x8] sm:$0xff] %vm542, 0.0
        %545 = vst.msk [vmem:[#allocation2 + $0x10] sm:$0xff] %vm542, 0.0
        %546 = vst.msk [vmem:[#allocation3] sm:$0xff] %vm542, 0.0
        %547 = vst.msk [vmem:[#allocation3 + $0x8] sm:$0xff] %vm542, 0.0
        %548 = vst.msk [vmem:[#allocation3 + $0x10] sm:$0xff] %vm542, 0.0
      $region68: #{dual_rgat_forward.1} parent=63 // pred_fallthru
        _
      %p549 = scmp.eq.s32.totalorder %s22, 1
      // Predicated region
      $region69: #{dual_rgat_forward.1} parent=63 // pred_check
        %p550 = pneg %p549
      $region70: #{dual_rgat_forward.1} parent=63 // pred_check_branch
        %552 = sbr.rel (%p550) target = $region72
      $region71: #{dual_rgat_forward.1} parent=63 // pred_region
        %v553 = vld [vmem:[%s0] sm:$0xff]
        %v554 = vld [vmem:[%s0 + $0x8] sm:$0xff]
        %v555 = vld [vmem:[%s0 + $0x10] sm:$0xff]
        %v556 = vlaneseq
        %v557 = vand.u32 %v556, 127
        %558 = vset.pattern.permute.xlu0 0
        %559 = vperm.xlu0 %558, %v553
        %v560 = vpop.permute.xlu0 %559
        %561 = vset.pattern.permute.xlu0 0
        %562 = vperm.xlu0 %561, %v554
        %v563 = vpop.permute.xlu0 %562
        %564 = vset.pattern.permute.xlu0 0
        %565 = vperm.xlu0 %564, %v555
        %v566 = vpop.permute.xlu0 %565
        %vm567 = vcmp.eq.s32.totalorder %v560, %v557
        %vm568 = vcmp.eq.s32.totalorder %v563, %v557
        %vm569 = vcmp.eq.s32.totalorder %v566, %v557
        %v570 = vsel %vm567, 1, 0
        %v571 = vsel %vm568, 1, 0
        %v572 = vsel %vm569, 1, 0
        %v573 = vcvt.s32.f32 %v570
        %v574 = vcvt.s32.f32 %v571
        %v575 = vcvt.s32.f32 %v572
        %576 = vset.pattern.permute.xlu0 1
        %577 = vperm.xlu0 %576, %v553
        %v578 = vpop.permute.xlu0 %577
        %579 = vset.pattern.permute.xlu0 1
        %580 = vperm.xlu0 %579, %v554
        %v581 = vpop.permute.xlu0 %580
        %582 = vset.pattern.permute.xlu0 1
        %583 = vperm.xlu0 %582, %v555
        %v584 = vpop.permute.xlu0 %583
        %vm585 = vcmp.eq.s32.totalorder %v578, %v557
        %vm586 = vcmp.eq.s32.totalorder %v581, %v557
        %vm587 = vcmp.eq.s32.totalorder %v584, %v557
        %v588 = vsel %vm585, 1, 0
        %v589 = vsel %vm586, 1, 0
        %v590 = vsel %vm587, 1, 0
        %v591 = vcvt.s32.f32 %v588
        %v592 = vcvt.s32.f32 %v589
        %v593 = vcvt.s32.f32 %v590
        %v594 = vld [vmem:[%s1] sm:$0xff]
        %v595 = vld [vmem:[%s1 + $0x8] sm:$0xff]
        %v596 = vld [vmem:[%s1 + $0x10] sm:$0xff]
        %vm597 = vcmask 195584
        %v599 = vsel %vm597, %v573, 0
        %v602 = vsel %vm597, %v574, 0
        %v605 = vsel %vm597, %v575, 0
        %607 = vmatprep.subr.mxu0 0.0
        %608 = vmatpush1.msra.mxu0 %v594
        %609 = vmatprep.subr.mxu0 0.0
        %610 = vmatpush1.msra.mxu0 %v595
        %611 = vmatprep.subr.mxu0 0.0
        %612 = vmatpush1.msra.mxu0 %v596
        %613 = vmatprep.subr.mxu0 0.0
        %614 = vmatpush1.msra.mxu0 0.0
        %615 = vmatprep.subr.mxu0 0.0
        %616 = vmatpush1.msra.mxu0 0.0
        %617 = vmatprep.subr.mxu0 0.0
        %618 = vmatpush1.msra.mxu0 0.0
        %619 = vmatprep.subr.mxu0 0.0
        %620 = vmatpush1.msra.mxu0 0.0
        %621 = vmatprep.subr.mxu0 0.0
        %622 = vmatpush1.msra.mxu0 0.0
        %623 = vmatprep.subr.mxu0 0.0
        %624 = vmatpush1.msra.mxu0 0.0
        %625 = vmatprep.subr.mxu0 0.0
        %626 = vmatpush1.msra.mxu0 0.0
        %627 = vmatprep.subr.mxu0 0.0
        %628 = vmatpush1.msra.mxu0 0.0
        %629 = vmatprep.subr.mxu0 0.0
        %630 = vmatpush1.msra.mxu0 0.0
        %631 = vmatprep.subr.mxu0 0.0
        %632 = vmatpush1.msra.mxu0 0.0
        %633 = vmatprep.subr.mxu0 0.0
        %634 = vmatpush1.msra.mxu0 0.0
        %635 = vmatprep.subr.mxu0 0.0
        %636 = vmatpush1.msra.mxu0 0.0
        %637 = vmatprep.subr.mxu0 0.0
        %638 = vmatpush1.msra.mxu0 0.0
        %639 = vmatprep.subr.mxu0 0.0
        %640 = vmatpush1.msra.mxu0 0.0
        %641 = vmatprep.subr.mxu0 0.0
        %642 = vmatpush1.msra.mxu0 0.0
        %643 = vmatprep.subr.mxu0 0.0
        %644 = vmatpush1.msra.mxu0 0.0
        %645 = vmatprep.subr.mxu0 0.0
        %646 = vmatpush1.msra.mxu0 0.0
        %647 = vmatprep.subr.mxu0 0.0
        %648 = vmatpush1.msra.mxu0 0.0
        %649 = vmatprep.subr.mxu0 0.0
        %650 = vmatpush1.msra.mxu0 0.0
        %651 = vmatprep.subr.mxu0 0.0
        %652 = vmatpush1.msra.mxu0 0.0
        %653 = vmatprep.subr.mxu0 0.0
        %654 = vmatpush1.msra.mxu0 0.0
        %655 = vmatprep.subr.mxu0 0.0
        %656 = vmatpush1.msra.mxu0 0.0
        %657 = vmatprep.subr.mxu0 0.0
        %658 = vmatpush1.msra.mxu0 0.0
        %659 = vmatprep.subr.mxu0 0.0
        %660 = vmatpush1.msra.mxu0 0.0
        %661 = vmatprep.subr.mxu0 0.0
        %662 = vmatpush1.msra.mxu0 0.0
        %663 = vmatprep.subr.mxu0 0.0
        %664 = vmatpush1.msra.mxu0 0.0
        %665 = vmatprep.subr.mxu0 0.0
        %666 = vmatpush1.msra.mxu0 0.0
        %667 = vmatprep.subr.mxu0 0.0
        %668 = vmatpush1.msra.mxu0 0.0
        %669 = vmatprep.subr.mxu0 0.0
        %670 = vmatpush1.msra.mxu0 0.0
        %671 = vmatprep.mubr.f32.mxu0 0.0
        %672 = vmatmul.mubr.f32.gmra.mrb[0].mxu0 %v599
        %v673 = vpop.f32.mrb[0].mxu0
        %v674 = vadd.f32 0.0, %v673
        %v675 = vpop.f32.mrb[0].mxu0
        %676 = vmatprep.mubr.f32.mxu0 0.0
        %677 = vmatmul.mubr.f32.gmra.mrb[0].mxu0 %v602
        %v678 = vpop.f32.mrb[0].mxu0
        %v679 = vadd.f32 0.0, %v678
        %v680 = vpop.f32.mrb[0].mxu0
        %681 = vmatprep.mubr.f32.mxu0 0.0
        %682 = vmatmul.mubr.f32.gmra.mrb[0].mxu0 %v605
        %v683 = vpop.f32.mrb[0].mxu0
        %v684 = vadd.f32 0.0, %v683
        %v685 = vpop.f32.mrb[0].mxu0
        %686 = vdwg.mxu0
        %vm687 = vcmask 261120
        %688 = vst.msk [vmem:[#allocation2] sm:$0xff] %vm687, %v674
        %689 = vst.msk [vmem:[#allocation2 + $0x8] sm:$0xff] %vm687, %v679
        %690 = vst.msk [vmem:[#allocation2 + $0x10] sm:$0xff] %vm687, %v684
        %v692 = vsel %vm597, %v591, 0
        %v695 = vsel %vm597, %v592, 0
        %v698 = vsel %vm597, %v593, 0
        %700 = vmatprep.subr.mxu0 0.0
        %701 = vmatpush1.msra.mxu0 %v594
        %702 = vmatprep.subr.mxu0 0.0
        %703 = vmatpush1.msra.mxu0 %v595
        %704 = vmatprep.subr.mxu0 0.0
        %705 = vmatpush1.msra.mxu0 %v596
        %706 = vmatprep.subr.mxu0 0.0
        %707 = vmatpush1.msra.mxu0 0.0
        %708 = vmatprep.subr.mxu0 0.0
        %709 = vmatpush1.msra.mxu0 0.0
        %710 = vmatprep.subr.mxu0 0.0
        %711 = vmatpush1.msra.mxu0 0.0
        %712 = vmatprep.subr.mxu0 0.0
        %713 = vmatpush1.msra.mxu0 0.0
        %714 = vmatprep.subr.mxu0 0.0
        %715 = vmatpush1.msra.mxu0 0.0
        %716 = vmatprep.subr.mxu0 0.0
        %717 = vmatpush1.msra.mxu0 0.0
        %718 = vmatprep.subr.mxu0 0.0
        %719 = vmatpush1.msra.mxu0 0.0
        %720 = vmatprep.subr.mxu0 0.0
        %721 = vmatpush1.msra.mxu0 0.0
        %722 = vmatprep.subr.mxu0 0.0
        %723 = vmatpush1.msra.mxu0 0.0
        %724 = vmatprep.subr.mxu0 0.0
        %725 = vmatpush1.msra.mxu0 0.0
        %726 = vmatprep.subr.mxu0 0.0
        %727 = vmatpush1.msra.mxu0 0.0
        %728 = vmatprep.subr.mxu0 0.0
        %729 = vmatpush1.msra.mxu0 0.0
        %730 = vmatprep.subr.mxu0 0.0
        %731 = vmatpush1.msra.mxu0 0.0
        %732 = vmatprep.subr.mxu0 0.0
        %733 = vmatpush1.msra.mxu0 0.0
        %734 = vmatprep.subr.mxu0 0.0
        %735 = vmatpush1.msra.mxu0 0.0
        %736 = vmatprep.subr.mxu0 0.0
        %737 = vmatpush1.msra.mxu0 0.0
        %738 = vmatprep.subr.mxu0 0.0
        %739 = vmatpush1.msra.mxu0 0.0
        %740 = vmatprep.subr.mxu0 0.0
        %741 = vmatpush1.msra.mxu0 0.0
        %742 = vmatprep.subr.mxu0 0.0
        %743 = vmatpush1.msra.mxu0 0.0
        %744 = vmatprep.subr.mxu0 0.0
        %745 = vmatpush1.msra.mxu0 0.0
        %746 = vmatprep.subr.mxu0 0.0
        %747 = vmatpush1.msra.mxu0 0.0
        %748 = vmatprep.subr.mxu0 0.0
        %749 = vmatpush1.msra.mxu0 0.0
        %750 = vmatprep.subr.mxu0 0.0
        %751 = vmatpush1.msra.mxu0 0.0
        %752 = vmatprep.subr.mxu0 0.0
        %753 = vmatpush1.msra.mxu0 0.0
        %754 = vmatprep.subr.mxu0 0.0
        %755 = vmatpush1.msra.mxu0 0.0
        %756 = vmatprep.subr.mxu0 0.0
        %757 = vmatpush1.msra.mxu0 0.0
        %758 = vmatprep.subr.mxu0 0.0
        %759 = vmatpush1.msra.mxu0 0.0
        %760 = vmatprep.subr.mxu0 0.0
        %761 = vmatpush1.msra.mxu0 0.0
        %762 = vmatprep.subr.mxu0 0.0
        %763 = vmatpush1.msra.mxu0 0.0
        %764 = vmatprep.mubr.f32.mxu0 0.0
        %765 = vmatmul.mubr.f32.gmra.mrb[0].mxu0 %v692
        %v766 = vpop.f32.mrb[0].mxu0
        %v767 = vadd.f32 0.0, %v766
        %v768 = vpop.f32.mrb[0].mxu0
        %769 = vmatprep.mubr.f32.mxu0 0.0
        %770 = vmatmul.mubr.f32.gmra.mrb[0].mxu0 %v695
        %v771 = vpop.f32.mrb[0].mxu0
        %v772 = vadd.f32 0.0, %v771
        %v773 = vpop.f32.mrb[0].mxu0
        %774 = vmatprep.mubr.f32.mxu0 0.0
        %775 = vmatmul.mubr.f32.gmra.mrb[0].mxu0 %v698
        %v776 = vpop.f32.mrb[0].mxu0
        %v777 = vadd.f32 0.0, %v776
        %v778 = vpop.f32.mrb[0].mxu0
        %779 = vdwg.mxu0
        %780 = vst.msk [vmem:[#allocation3] sm:$0xff] %vm687, %v767
        %781 = vst.msk [vmem:[#allocation3 + $0x8] sm:$0xff] %vm687, %v772
        %782 = vst.msk [vmem:[#allocation3 + $0x10] sm:$0xff] %vm687, %v777
      $region72: #{dual_rgat_forward.1} parent=63 // pred_fallthru
        _
      %v783 = vld [vmem:[%s501] sm:$0xff]
      %v784 = vld [vmem:[%s501 + $0x8] sm:$0xff]
      %v785 = vld [vmem:[%s501 + $0x10] sm:$0xff]
      %v786 = vld [vmem:[%s501 + $0x18] sm:$0xff]
      %vm787 = vcmask 261120
      %v789 = vsel %vm787, %v532, 0
      %v792 = vsel %vm787, %v533, 0
      %v795 = vsel %vm787, %v534, 0
      %797 = vmatprep.subr.mxu0 0.0
      %798 = vmatpush1.msra.mxu0 %v783
      %799 = vmatprep.subr.mxu0 0.0
      %800 = vmatpush1.msra.mxu0 %v784
      %801 = vmatprep.subr.mxu0 0.0
      %802 = vmatpush1.msra.mxu0 %v785
      %803 = vmatprep.subr.mxu0 0.0
      %804 = vmatpush1.msra.mxu0 %v786
      %805 = vmatprep.subr.mxu0 0.0
      %806 = vmatpush1.msra.mxu0 0.0
      %807 = vmatprep.subr.mxu0 0.0
      %808 = vmatpush1.msra.mxu0 0.0
      %809 = vmatprep.subr.mxu0 0.0
      %810 = vmatpush1.msra.mxu0 0.0
      %811 = vmatprep.subr.mxu0 0.0
      %812 = vmatpush1.msra.mxu0 0.0
      %813 = vmatprep.subr.mxu0 0.0
      %814 = vmatpush1.msra.mxu0 0.0
      %815 = vmatprep.subr.mxu0 0.0
      %816 = vmatpush1.msra.mxu0 0.0
      %817 = vmatprep.subr.mxu0 0.0
      %818 = vmatpush1.msra.mxu0 0.0
      %819 = vmatprep.subr.mxu0 0.0
      %820 = vmatpush1.msra.mxu0 0.0
      %821 = vmatprep.subr.mxu0 0.0
      %822 = vmatpush1.msra.mxu0 0.0
      %823 = vmatprep.subr.mxu0 0.0
      %824 = vmatpush1.msra.mxu0 0.0
      %825 = vmatprep.subr.mxu0 0.0
      %826 = vmatpush1.msra.mxu0 0.0
      %827 = vmatprep.subr.mxu0 0.0
      %828 = vmatpush1.msra.mxu0 0.0
      %829 = vmatprep.subr.mxu0 0.0
      %830 = vmatpush1.msra.mxu0 0.0
      %831 = vmatprep.subr.mxu0 0.0
      %832 = vmatpush1.msra.mxu0 0.0
      %833 = vmatprep.subr.mxu0 0.0
      %834 = vmatpush1.msra.mxu0 0.0
      %835 = vmatprep.subr.mxu0 0.0
      %836 = vmatpush1.msra.mxu0 0.0
      %837 = vmatprep.subr.mxu0 0.0
      %838 = vmatpush1.msra.mxu0 0.0
      %839 = vmatprep.subr.mxu0 0.0
      %840 = vmatpush1.msra.mxu0 0.0
      %841 = vmatprep.subr.mxu0 0.0
      %842 = vmatpush1.msra.mxu0 0.0
      %843 = vmatprep.subr.mxu0 0.0
      %844 = vmatpush1.msra.mxu0 0.0
      %845 = vmatprep.subr.mxu0 0.0
      %846 = vmatpush1.msra.mxu0 0.0
      %847 = vmatprep.subr.mxu0 0.0
      %848 = vmatpush1.msra.mxu0 0.0
      %849 = vmatprep.subr.mxu0 0.0
      %850 = vmatpush1.msra.mxu0 0.0
      %851 = vmatprep.subr.mxu0 0.0
      %852 = vmatpush1.msra.mxu0 0.0
      %853 = vmatprep.subr.mxu0 0.0
      %854 = vmatpush1.msra.mxu0 0.0
      %855 = vmatprep.subr.mxu0 0.0
      %856 = vmatpush1.msra.mxu0 0.0
      %857 = vmatprep.subr.mxu0 0.0
      %858 = vmatpush1.msra.mxu0 0.0
      %859 = vmatprep.subr.mxu0 0.0
      %860 = vmatpush1.msra.mxu0 0.0
      %861 = vmatprep.mubr.f32.mxu0 0.0
      %862 = vmatmul.mubr.f32.gmra.mrb[0].mxu0 %v789
      %v863 = vpop.f32.mrb[0].mxu0
      %v864 = vadd.f32 0.0, %v863
      %v865 = vpop.f32.mrb[0].mxu0
      %866 = vmatprep.mubr.f32.mxu0 0.0
      %867 = vmatmul.mubr.f32.gmra.mrb[0].mxu0 %v792
      %v868 = vpop.f32.mrb[0].mxu0
      %v869 = vadd.f32 0.0, %v868
      %v870 = vpop.f32.mrb[0].mxu0
      %871 = vmatprep.mubr.f32.mxu0 0.0
      %872 = vmatmul.mubr.f32.gmra.mrb[0].mxu0 %v795
      %v873 = vpop.f32.mrb[0].mxu0
      %v874 = vadd.f32 0.0, %v873
      %v875 = vpop.f32.mrb[0].mxu0
      %876 = vdwg.mxu0
      %v877 = vld [vmem:[%s504] sm:$0x1]
      %v879 = vlaneseq
      %v880 = vshrl.u32 %v879, 7
      %v881 = vsub.s32 0, %v880
      %v882 = vrot.slane %v877, %v881
      %v884 = vadd.f32 %v864, %v882
      %v885 = vadd.f32 %v869, %v882
      %v886 = vadd.f32 %v874, %v882
      %v887 = vld [vmem:[#allocation2] sm:$0xff]
      %v888 = vld [vmem:[#allocation2 + $0x8] sm:$0xff]
      %v889 = vld [vmem:[#allocation2 + $0x10] sm:$0xff]
      %v890 = vadd.f32 %v884, %v887
      %v891 = vadd.f32 %v885, %v888
      %v892 = vadd.f32 %v886, %v889
      %v893 = vmul.f32 %v890, 0.5
      %v894 = vmul.f32 %v891, 0.5
      %v895 = vmul.f32 %v892, 0.5
      %v896 = vld [vmem:[#allocation3] sm:$0xff]
      %v897 = vld [vmem:[#allocation3 + $0x8] sm:$0xff]
      %v898 = vld [vmem:[#allocation3 + $0x10] sm:$0xff]
      %902 = vrot.lane.b32.xlu0 %v896, 64
      %v903 = vpop.permute.xlu0 %902
      %904 = vrot.lane.b32.xlu0 %v897, 64
      %v905 = vpop.permute.xlu0 %904
      %906 = vrot.lane.b32.xlu0 %v898, 64
      %v907 = vpop.permute.xlu0 %906
      %v911 = vadd.f32 %v864, %v903
      %v912 = vadd.f32 %v869, %v905
      %v913 = vadd.f32 %v874, %v907
      %917 = vrot.lane.b32.xlu0 %v864, 96
      %v918 = vpop.permute.xlu0 %917
      %919 = vrot.lane.b32.xlu0 %v869, 96
      %v920 = vpop.permute.xlu0 %919
      %921 = vrot.lane.b32.xlu0 %v874, 96
      %v922 = vpop.permute.xlu0 %921
      %vm923 = vcmask 31744
      %v925 = vsel %vm923, %v893, 0
      %v928 = vsel %vm923, %v894, 0
      %v931 = vsel %vm923, %v895, 0
      %v933 = vsel %vm923, %v918, 0
      %v935 = vsel %vm923, %v920, 0
      %v937 = vsel %vm923, %v922, 0
      %939 = vmatprep.subr.mxu0 0.0
      %940 = vmatpush1.xpose.msra.mxu0 %v933
      %941 = vmatprep.subr.mxu0 0.0
      %942 = vmatpush1.xpose.msra.mxu0 %v935
      %943 = vmatprep.subr.mxu0 0.0
      %944 = vmatpush1.xpose.msra.mxu0 %v937
      %945 = vmatprep.subr.mxu0 0.0
      %946 = vmatpush1.xpose.msra.mxu0 0.0
      %947 = vmatprep.subr.mxu0 0.0
      %948 = vmatpush1.xpose.msra.mxu0 0.0
      %949 = vmatprep.subr.mxu0 0.0
      %950 = vmatpush1.xpose.msra.mxu0 0.0
      %951 = vmatprep.subr.mxu0 0.0
      %952 = vmatpush1.xpose.msra.mxu0 0.0
      %953 = vmatprep.subr.mxu0 0.0
      %954 = vmatpush1.xpose.msra.mxu0 0.0
      %955 = vmatprep.subr.mxu0 0.0
      %956 = vmatpush1.xpose.msra.mxu0 0.0
      %957 = vmatprep.subr.mxu0 0.0
      %958 = vmatpush1.xpose.msra.mxu0 0.0
      %959 = vmatprep.subr.mxu0 0.0
      %960 = vmatpush1.xpose.msra.mxu0 0.0
      %961 = vmatprep.subr.mxu0 0.0
      %962 = vmatpush1.xpose.msra.mxu0 0.0
      %963 = vmatprep.subr.mxu0 0.0
      %964 = vmatpush1.xpose.msra.mxu0 0.0
      %965 = vmatprep.subr.mxu0 0.0
      %966 = vmatpush1.xpose.msra.mxu0 0.0
      %967 = vmatprep.subr.mxu0 0.0
      %968 = vmatpush1.xpose.msra.mxu0 0.0
      %969 = vmatprep.subr.mxu0 0.0
      %970 = vmatpush1.xpose.msra.mxu0 0.0
      %971 = vmatprep.subr.mxu0 0.0
      %972 = vmatpush1.xpose.msra.mxu0 0.0
      %973 = vmatprep.subr.mxu0 0.0
      %974 = vmatpush1.xpose.msra.mxu0 0.0
      %975 = vmatprep.subr.mxu0 0.0
      %976 = vmatpush1.xpose.msra.mxu0 0.0
      %977 = vmatprep.subr.mxu0 0.0
      %978 = vmatpush1.xpose.msra.mxu0 0.0
      %979 = vmatprep.subr.mxu0 0.0
      %980 = vmatpush1.xpose.msra.mxu0 0.0
      %981 = vmatprep.subr.mxu0 0.0
      %982 = vmatpush1.xpose.msra.mxu0 0.0
      %983 = vmatprep.subr.mxu0 0.0
      %984 = vmatpush1.xpose.msra.mxu0 0.0
      %985 = vmatprep.subr.mxu0 0.0
      %986 = vmatpush1.xpose.msra.mxu0 0.0
      %987 = vmatprep.subr.mxu0 0.0
      %988 = vmatpush1.xpose.msra.mxu0 0.0
      %989 = vmatprep.subr.mxu0 0.0
      %990 = vmatpush1.xpose.msra.mxu0 0.0
      %991 = vmatprep.subr.mxu0 0.0
      %992 = vmatpush1.xpose.msra.mxu0 0.0
      %993 = vmatprep.subr.mxu0 0.0
      %994 = vmatpush1.xpose.msra.mxu0 0.0
      %995 = vmatprep.subr.mxu0 0.0
      %996 = vmatpush1.xpose.msra.mxu0 0.0
      %997 = vmatprep.subr.mxu0 0.0
      %998 = vmatpush1.xpose.msra.mxu0 0.0
      %999 = vmatprep.subr.mxu0 0.0
      %1000 = vmatpush1.xpose.msra.mxu0 0.0
      %1001 = vmatprep.subr.mxu0 0.0
      %1002 = vmatpush1.xpose.msra.mxu0 0.0
      %1003 = vmatprep.mubr.f32.mxu0 0.0
      %1004 = vmatmul.mubr.f32.gmra.mrb[0].mxu0 %v925
      %v1005 = vpop.f32.mrb[0].mxu0
      %v1006 = vadd.f32 0.0, %v1005
      %v1007 = vpop.f32.mrb[0].mxu0
      %1008 = vmatprep.mubr.f32.mxu0 0.0
      %1009 = vmatmul.mubr.f32.gmra.mrb[0].mxu0 %v928
      %v1010 = vpop.f32.mrb[0].mxu0
      %v1011 = vadd.f32 0.0, %v1010
      %v1012 = vpop.f32.mrb[0].mxu0
      %1013 = vmatprep.mubr.f32.mxu0 0.0
      %1014 = vmatmul.mubr.f32.gmra.mrb[0].mxu0 %v931
      %v1015 = vpop.f32.mrb[0].mxu0
      %v1016 = vadd.f32 0.0, %v1015
      %v1017 = vpop.f32.mrb[0].mxu0
      %1018 = vdwg.mxu0
      %v1019 = vmax.f32 %v1006, -10.0
      %v1020 = vmax.f32 %v1011, -10.0
      %v1021 = vmax.f32 %v1016, -10.0
      %v1022 = vmin.f32 %v1019, 10.0
      %v1023 = vmin.f32 %v1020, 10.0
      %v1024 = vmin.f32 %v1021, 10.0
      %v1025 = vmul.f32 %v1022, 1.442695
      %v1026 = vpow.pop %v1025
      %v1027 = vmul.f32 %v1023, 1.442695
      %v1028 = vpow.pop %v1027
      %v1029 = vmul.f32 %v1024, 1.442695
      %v1030 = vpow.pop %v1029
      %v1031 = vmul.f32 %v1026, %v535
      %v1032 = vmul.f32 %v1028, %v536
      %v1033 = vmul.f32 %v1030, %v537
      %vm1034 = vcmask 195584
      %v1035 = vsel %vm1034, %v1031, 0.0
      %1036 = vadd.xlane.f32.xlu0 %v1035
      %v1037 = vpop.xlane.xlu0 %1036
      %v1038 = vsel %vm1034, %v1032, 0.0
      %1039 = vadd.xlane.f32.xlu0 %v1038
      %v1040 = vpop.xlane.xlu0 %1039
      %v1041 = vsel %vm1034, %v1033, 0.0
      %1042 = vadd.xlane.f32.xlu0 %v1041
      %v1043 = vpop.xlane.xlu0 %1042
      %1047 = vrot.lane.b32.xlu0 %v911, 64
      %v1048 = vpop.permute.xlu0 %1047
      %1049 = vrot.lane.b32.xlu0 %v912, 64
      %v1050 = vpop.permute.xlu0 %1049
      %1051 = vrot.lane.b32.xlu0 %v913, 64
      %v1052 = vpop.permute.xlu0 %1051
      %v1057 = vsel %vm1034, %v1031, 0
      %v1060 = vsel %vm1034, %v1032, 0
      %v1063 = vsel %vm1034, %v1033, 0
      %1065 = vmatprep.subr.mxu0 0.0
      %1066 = vmatpush1.msra.mxu0 %v1048
      %1067 = vmatprep.subr.mxu0 0.0
      %1068 = vmatpush1.msra.mxu0 %v1050
      %1069 = vmatprep.subr.mxu0 0.0
      %1070 = vmatpush1.msra.mxu0 %v1052
      %1071 = vmatprep.subr.mxu0 0.0
      %1072 = vmatpush1.msra.mxu0 0.0
      %1073 = vmatprep.subr.mxu0 0.0
      %1074 = vmatpush1.msra.mxu0 0.0
      %1075 = vmatprep.subr.mxu0 0.0
      %1076 = vmatpush1.msra.mxu0 0.0
      %1077 = vmatprep.subr.mxu0 0.0
      %1078 = vmatpush1.msra.mxu0 0.0
      %1079 = vmatprep.subr.mxu0 0.0
      %1080 = vmatpush1.msra.mxu0 0.0
      %1081 = vmatprep.subr.mxu0 0.0
      %1082 = vmatpush1.msra.mxu0 0.0
      %1083 = vmatprep.subr.mxu0 0.0
      %1084 = vmatpush1.msra.mxu0 0.0
      %1085 = vmatprep.subr.mxu0 0.0
      %1086 = vmatpush1.msra.mxu0 0.0
      %1087 = vmatprep.subr.mxu0 0.0
      %1088 = vmatpush1.msra.mxu0 0.0
      %1089 = vmatprep.subr.mxu0 0.0
      %1090 = vmatpush1.msra.mxu0 0.0
      %1091 = vmatprep.subr.mxu0 0.0
      %1092 = vmatpush1.msra.mxu0 0.0
      %1093 = vmatprep.subr.mxu0 0.0
      %1094 = vmatpush1.msra.mxu0 0.0
      %1095 = vmatprep.subr.mxu0 0.0
      %1096 = vmatpush1.msra.mxu0 0.0
      %1097 = vmatprep.subr.mxu0 0.0
      %1098 = vmatpush1.msra.mxu0 0.0
      %1099 = vmatprep.subr.mxu0 0.0
      %1100 = vmatpush1.msra.mxu0 0.0
      %1101 = vmatprep.subr.mxu0 0.0
      %1102 = vmatpush1.msra.mxu0 0.0
      %1103 = vmatprep.subr.mxu0 0.0
      %1104 = vmatpush1.msra.mxu0 0.0
      %1105 = vmatprep.subr.mxu0 0.0
      %1106 = vmatpush1.msra.mxu0 0.0
      %1107 = vmatprep.subr.mxu0 0.0
      %1108 = vmatpush1.msra.mxu0 0.0
      %1109 = vmatprep.subr.mxu0 0.0
      %1110 = vmatpush1.msra.mxu0 0.0
      %1111 = vmatprep.subr.mxu0 0.0
      %1112 = vmatpush1.msra.mxu0 0.0
      %1113 = vmatprep.subr.mxu0 0.0
      %1114 = vmatpush1.msra.mxu0 0.0
      %1115 = vmatprep.subr.mxu0 0.0
      %1116 = vmatpush1.msra.mxu0 0.0
      %1117 = vmatprep.subr.mxu0 0.0
      %1118 = vmatpush1.msra.mxu0 0.0
      %1119 = vmatprep.subr.mxu0 0.0
      %1120 = vmatpush1.msra.mxu0 0.0
      %1121 = vmatprep.subr.mxu0 0.0
      %1122 = vmatpush1.msra.mxu0 0.0
      %1123 = vmatprep.subr.mxu0 0.0
      %1124 = vmatpush1.msra.mxu0 0.0
      %1125 = vmatprep.subr.mxu0 0.0
      %1126 = vmatpush1.msra.mxu0 0.0
      %1127 = vmatprep.subr.mxu0 0.0
      %1128 = vmatpush1.msra.mxu0 0.0
      %1129 = vmatprep.mubr.f32.mxu0 0.0
      %1130 = vmatmul.mubr.f32.gmra.mrb[0].mxu0 %v1057
      %v1131 = vpop.f32.mrb[0].mxu0
      %v1132 = vadd.f32 0.0, %v1131
      %v1133 = vpop.f32.mrb[0].mxu0
      %1134 = vmatprep.mubr.f32.mxu0 0.0
      %1135 = vmatmul.mubr.f32.gmra.mrb[0].mxu0 %v1060
      %v1136 = vpop.f32.mrb[0].mxu0
      %v1137 = vadd.f32 0.0, %v1136
      %v1138 = vpop.f32.mrb[0].mxu0
      %1139 = vmatprep.mubr.f32.mxu0 0.0
      %1140 = vmatmul.mubr.f32.gmra.mrb[0].mxu0 %v1063
      %v1141 = vpop.f32.mrb[0].mxu0
      %v1142 = vadd.f32 0.0, %v1141
      %v1143 = vpop.f32.mrb[0].mxu0
      %1144 = vdwg.mxu0
      %v1145 = vrcp.pop %v1037
      %v1146 = vrcp.pop %v1040
      %v1147 = vrcp.pop %v1043
      %v1148 = vmul.f32 %v1132, %v1145
      %v1149 = vmul.f32 %v1137, %v1146
      %v1150 = vmul.f32 %v1142, %v1147
      %1151 = vrot.lane.b32.xlu0 %v893, 124
      %v1152 = vpop.permute.xlu0 %1151
      %1153 = vrot.lane.b32.xlu0 %v894, 124
      %v1154 = vpop.permute.xlu0 %1153
      %1155 = vrot.lane.b32.xlu0 %v895, 124
      %v1156 = vpop.permute.xlu0 %1155
      %1157 = vrot.lane.b32.xlu0 %v864, 92
      %v1158 = vpop.permute.xlu0 %1157
      %1159 = vrot.lane.b32.xlu0 %v869, 92
      %v1160 = vpop.permute.xlu0 %1159
      %1161 = vrot.lane.b32.xlu0 %v874, 92
      %v1162 = vpop.permute.xlu0 %1161
      %v1163 = vsel %vm923, %v1152, 0
      %v1165 = vsel %vm923, %v1154, 0
      %v1167 = vsel %vm923, %v1156, 0
      %v1169 = vsel %vm923, %v1158, 0
      %v1171 = vsel %vm923, %v1160, 0
      %v1173 = vsel %vm923, %v1162, 0
      %1175 = vmatprep.subr.mxu0 0.0
      %1176 = vmatpush1.xpose.msra.mxu0 %v1169
      %1177 = vmatprep.subr.mxu0 0.0
      %1178 = vmatpush1.xpose.msra.mxu0 %v1171
      %1179 = vmatprep.subr.mxu0 0.0
      %1180 = vmatpush1.xpose.msra.mxu0 %v1173
      %1181 = vmatprep.subr.mxu0 0.0
      %1182 = vmatpush1.xpose.msra.mxu0 0.0
      %1183 = vmatprep.subr.mxu0 0.0
      %1184 = vmatpush1.xpose.msra.mxu0 0.0
      %1185 = vmatprep.subr.mxu0 0.0
      %1186 = vmatpush1.xpose.msra.mxu0 0.0
      %1187 = vmatprep.subr.mxu0 0.0
      %1188 = vmatpush1.xpose.msra.mxu0 0.0
      %1189 = vmatprep.subr.mxu0 0.0
      %1190 = vmatpush1.xpose.msra.mxu0 0.0
      %1191 = vmatprep.subr.mxu0 0.0
      %1192 = vmatpush1.xpose.msra.mxu0 0.0
      %1193 = vmatprep.subr.mxu0 0.0
      %1194 = vmatpush1.xpose.msra.mxu0 0.0
      %1195 = vmatprep.subr.mxu0 0.0
      %1196 = vmatpush1.xpose.msra.mxu0 0.0
      %1197 = vmatprep.subr.mxu0 0.0
      %1198 = vmatpush1.xpose.msra.mxu0 0.0
      %1199 = vmatprep.subr.mxu0 0.0
      %1200 = vmatpush1.xpose.msra.mxu0 0.0
      %1201 = vmatprep.subr.mxu0 0.0
      %1202 = vmatpush1.xpose.msra.mxu0 0.0
      %1203 = vmatprep.subr.mxu0 0.0
      %1204 = vmatpush1.xpose.msra.mxu0 0.0
      %1205 = vmatprep.subr.mxu0 0.0
      %1206 = vmatpush1.xpose.msra.mxu0 0.0
      %1207 = vmatprep.subr.mxu0 0.0
      %1208 = vmatpush1.xpose.msra.mxu0 0.0
      %1209 = vmatprep.subr.mxu0 0.0
      %1210 = vmatpush1.xpose.msra.mxu0 0.0
      %1211 = vmatprep.subr.mxu0 0.0
      %1212 = vmatpush1.xpose.msra.mxu0 0.0
      %1213 = vmatprep.subr.mxu0 0.0
      %1214 = vmatpush1.xpose.msra.mxu0 0.0
      %1215 = vmatprep.subr.mxu0 0.0
      %1216 = vmatpush1.xpose.msra.mxu0 0.0
      %1217 = vmatprep.subr.mxu0 0.0
      %1218 = vmatpush1.xpose.msra.mxu0 0.0
      %1219 = vmatprep.subr.mxu0 0.0
      %1220 = vmatpush1.xpose.msra.mxu0 0.0
      %1221 = vmatprep.subr.mxu0 0.0
      %1222 = vmatpush1.xpose.msra.mxu0 0.0
      %1223 = vmatprep.subr.mxu0 0.0
      %1224 = vmatpush1.xpose.msra.mxu0 0.0
      %1225 = vmatprep.subr.mxu0 0.0
      %1226 = vmatpush1.xpose.msra.mxu0 0.0
      %1227 = vmatprep.subr.mxu0 0.0
      %1228 = vmatpush1.xpose.msra.mxu0 0.0
      %1229 = vmatprep.subr.mxu0 0.0
      %1230 = vmatpush1.xpose.msra.mxu0 0.0
      %1231 = vmatprep.subr.mxu0 0.0
      %1232 = vmatpush1.xpose.msra.mxu0 0.0
      %1233 = vmatprep.subr.mxu0 0.0
      %1234 = vmatpush1.xpose.msra.mxu0 0.0
      %1235 = vmatprep.subr.mxu0 0.0
      %1236 = vmatpush1.xpose.msra.mxu0 0.0
      %1237 = vmatprep.subr.mxu0 0.0
      %1238 = vmatpush1.xpose.msra.mxu0 0.0
      %1239 = vmatprep.mubr.f32.mxu0 0.0
      %1240 = vmatmul.mubr.f32.gmra.mrb[0].mxu0 %v1163
      %v1241 = vpop.f32.mrb[0].mxu0
      %v1242 = vadd.f32 0.0, %v1241
      %v1243 = vpop.f32.mrb[0].mxu0
      %1244 = vmatprep.mubr.f32.mxu0 0.0
      %1245 = vmatmul.mubr.f32.gmra.mrb[0].mxu0 %v1165
      %v1246 = vpop.f32.mrb[0].mxu0
      %v1247 = vadd.f32 0.0, %v1246
      %v1248 = vpop.f32.mrb[0].mxu0
      %1249 = vmatprep.mubr.f32.mxu0 0.0
      %1250 = vmatmul.mubr.f32.gmra.mrb[0].mxu0 %v1167
      %v1251 = vpop.f32.mrb[0].mxu0
      %v1252 = vadd.f32 0.0, %v1251
      %v1253 = vpop.f32.mrb[0].mxu0
      %1254 = vdwg.mxu0
      %v1255 = vmax.f32 %v1242, -10.0
      %v1256 = vmax.f32 %v1247, -10.0
      %v1257 = vmax.f32 %v1252, -10.0
      %v1258 = vmin.f32 %v1255, 10.0
      %v1259 = vmin.f32 %v1256, 10.0
      %v1260 = vmin.f32 %v1257, 10.0
      %v1261 = vmul.f32 %v1258, 1.442695
      %v1262 = vpow.pop %v1261
      %v1263 = vmul.f32 %v1259, 1.442695
      %v1264 = vpow.pop %v1263
      %v1265 = vmul.f32 %v1260, 1.442695
      %v1266 = vpow.pop %v1265
      %v1267 = vmul.f32 %v1262, %v535
      %v1268 = vmul.f32 %v1264, %v536
      %v1269 = vmul.f32 %v1266, %v537
      %v1270 = vsel %vm1034, %v1267, 0.0
      %1271 = vadd.xlane.f32.xlu0 %v1270
      %v1272 = vpop.xlane.xlu0 %1271
      %v1273 = vsel %vm1034, %v1268, 0.0
      %1274 = vadd.xlane.f32.xlu0 %v1273
      %v1275 = vpop.xlane.xlu0 %1274
      %v1276 = vsel %vm1034, %v1269, 0.0
      %1277 = vadd.xlane.f32.xlu0 %v1276
      %v1278 = vpop.xlane.xlu0 %1277
      %1279 = vrot.lane.b32.xlu0 %v911, 60
      %v1280 = vpop.permute.xlu0 %1279
      %1281 = vrot.lane.b32.xlu0 %v912, 60
      %v1282 = vpop.permute.xlu0 %1281
      %1283 = vrot.lane.b32.xlu0 %v913, 60
      %v1284 = vpop.permute.xlu0 %1283
      %v1289 = vsel %vm1034, %v1267, 0
      %v1292 = vsel %vm1034, %v1268, 0
      %v1295 = vsel %vm1034, %v1269, 0
      %1297 = vmatprep.subr.mxu0 0.0
      %1298 = vmatpush1.msra.mxu0 %v1280
      %1299 = vmatprep.subr.mxu0 0.0
      %1300 = vmatpush1.msra.mxu0 %v1282
      %1301 = vmatprep.subr.mxu0 0.0
      %1302 = vmatpush1.msra.mxu0 %v1284
      %1303 = vmatprep.subr.mxu0 0.0
      %1304 = vmatpush1.msra.mxu0 0.0
      %1305 = vmatprep.subr.mxu0 0.0
      %1306 = vmatpush1.msra.mxu0 0.0
      %1307 = vmatprep.subr.mxu0 0.0
      %1308 = vmatpush1.msra.mxu0 0.0
      %1309 = vmatprep.subr.mxu0 0.0
      %1310 = vmatpush1.msra.mxu0 0.0
      %1311 = vmatprep.subr.mxu0 0.0
      %1312 = vmatpush1.msra.mxu0 0.0
      %1313 = vmatprep.subr.mxu0 0.0
      %1314 = vmatpush1.msra.mxu0 0.0
      %1315 = vmatprep.subr.mxu0 0.0
      %1316 = vmatpush1.msra.mxu0 0.0
      %1317 = vmatprep.subr.mxu0 0.0
      %1318 = vmatpush1.msra.mxu0 0.0
      %1319 = vmatprep.subr.mxu0 0.0
      %1320 = vmatpush1.msra.mxu0 0.0
      %1321 = vmatprep.subr.mxu0 0.0
      %1322 = vmatpush1.msra.mxu0 0.0
      %1323 = vmatprep.subr.mxu0 0.0
      %1324 = vmatpush1.msra.mxu0 0.0
      %1325 = vmatprep.subr.mxu0 0.0
      %1326 = vmatpush1.msra.mxu0 0.0
      %1327 = vmatprep.subr.mxu0 0.0
      %1328 = vmatpush1.msra.mxu0 0.0
      %1329 = vmatprep.subr.mxu0 0.0
      %1330 = vmatpush1.msra.mxu0 0.0
      %1331 = vmatprep.subr.mxu0 0.0
      %1332 = vmatpush1.msra.mxu0 0.0
      %1333 = vmatprep.subr.mxu0 0.0
      %1334 = vmatpush1.msra.mxu0 0.0
      %1335 = vmatprep.subr.mxu0 0.0
      %1336 = vmatpush1.msra.mxu0 0.0
      %1337 = vmatprep.subr.mxu0 0.0
      %1338 = vmatpush1.msra.mxu0 0.0
      %1339 = vmatprep.subr.mxu0 0.0
      %1340 = vmatpush1.msra.mxu0 0.0
      %1341 = vmatprep.subr.mxu0 0.0
      %1342 = vmatpush1.msra.mxu0 0.0
      %1343 = vmatprep.subr.mxu0 0.0
      %1344 = vmatpush1.msra.mxu0 0.0
      %1345 = vmatprep.subr.mxu0 0.0
      %1346 = vmatpush1.msra.mxu0 0.0
      %1347 = vmatprep.subr.mxu0 0.0
      %1348 = vmatpush1.msra.mxu0 0.0
      %1349 = vmatprep.subr.mxu0 0.0
      %1350 = vmatpush1.msra.mxu0 0.0
      %1351 = vmatprep.subr.mxu0 0.0
      %1352 = vmatpush1.msra.mxu0 0.0
      %1353 = vmatprep.subr.mxu0 0.0
      %1354 = vmatpush1.msra.mxu0 0.0
      %1355 = vmatprep.subr.mxu0 0.0
      %1356 = vmatpush1.msra.mxu0 0.0
      %1357 = vmatprep.subr.mxu0 0.0
      %1358 = vmatpush1.msra.mxu0 0.0
      %1359 = vmatprep.subr.mxu0 0.0
      %1360 = vmatpush1.msra.mxu0 0.0
      %1361 = vmatprep.mubr.f32.mxu0 0.0
      %1362 = vmatmul.mubr.f32.gmra.mrb[0].mxu0 %v1289
      %v1363 = vpop.f32.mrb[0].mxu0
      %v1364 = vadd.f32 0.0, %v1363
      %v1365 = vpop.f32.mrb[0].mxu0
      %1366 = vmatprep.mubr.f32.mxu0 0.0
      %1367 = vmatmul.mubr.f32.gmra.mrb[0].mxu0 %v1292
      %v1368 = vpop.f32.mrb[0].mxu0
      %v1369 = vadd.f32 0.0, %v1368
      %v1370 = vpop.f32.mrb[0].mxu0
      %1371 = vmatprep.mubr.f32.mxu0 0.0
      %1372 = vmatmul.mubr.f32.gmra.mrb[0].mxu0 %v1295
      %v1373 = vpop.f32.mrb[0].mxu0
      %v1374 = vadd.f32 0.0, %v1373
      %v1375 = vpop.f32.mrb[0].mxu0
      %1376 = vdwg.mxu0
      %v1377 = vrcp.pop %v1272
      %v1378 = vrcp.pop %v1275
      %v1379 = vrcp.pop %v1278
      %v1380 = vmul.f32 %v1364, %v1377
      %v1381 = vmul.f32 %v1369, %v1378
      %v1382 = vmul.f32 %v1374, %v1379
      %1383 = vrot.lane.b32.xlu0 %v893, 120
      %v1384 = vpop.permute.xlu0 %1383
      %1385 = vrot.lane.b32.xlu0 %v894, 120
      %v1386 = vpop.permute.xlu0 %1385
      %1387 = vrot.lane.b32.xlu0 %v895, 120
      %v1388 = vpop.permute.xlu0 %1387
      %1389 = vrot.lane.b32.xlu0 %v864, 88
      %v1390 = vpop.permute.xlu0 %1389
      %1391 = vrot.lane.b32.xlu0 %v869, 88
      %v1392 = vpop.permute.xlu0 %1391
      %1393 = vrot.lane.b32.xlu0 %v874, 88
      %v1394 = vpop.permute.xlu0 %1393
      %v1395 = vsel %vm923, %v1384, 0
      %v1397 = vsel %vm923, %v1386, 0
      %v1399 = vsel %vm923, %v1388, 0
      %v1401 = vsel %vm923, %v1390, 0
      %v1403 = vsel %vm923, %v1392, 0
      %v1405 = vsel %vm923, %v1394, 0
      %1407 = vmatprep.subr.mxu0 0.0
      %1408 = vmatpush1.xpose.msra.mxu0 %v1401
      %1409 = vmatprep.subr.mxu0 0.0
      %1410 = vmatpush1.xpose.msra.mxu0 %v1403
      %1411 = vmatprep.subr.mxu0 0.0
      %1412 = vmatpush1.xpose.msra.mxu0 %v1405
      %1413 = vmatprep.subr.mxu0 0.0
      %1414 = vmatpush1.xpose.msra.mxu0 0.0
      %1415 = vmatprep.subr.mxu0 0.0
      %1416 = vmatpush1.xpose.msra.mxu0 0.0
      %1417 = vmatprep.subr.mxu0 0.0
      %1418 = vmatpush1.xpose.msra.mxu0 0.0
      %1419 = vmatprep.subr.mxu0 0.0
      %1420 = vmatpush1.xpose.msra.mxu0 0.0
      %1421 = vmatprep.subr.mxu0 0.0
      %1422 = vmatpush1.xpose.msra.mxu0 0.0
      %1423 = vmatprep.subr.mxu0 0.0
      %1424 = vmatpush1.xpose.msra.mxu0 0.0
      %1425 = vmatprep.subr.mxu0 0.0
      %1426 = vmatpush1.xpose.msra.mxu0 0.0
      %1427 = vmatprep.subr.mxu0 0.0
      %1428 = vmatpush1.xpose.msra.mxu0 0.0
      %1429 = vmatprep.subr.mxu0 0.0
      %1430 = vmatpush1.xpose.msra.mxu0 0.0
      %1431 = vmatprep.subr.mxu0 0.0
      %1432 = vmatpush1.xpose.msra.mxu0 0.0
      %1433 = vmatprep.subr.mxu0 0.0
      %1434 = vmatpush1.xpose.msra.mxu0 0.0
      %1435 = vmatprep.subr.mxu0 0.0
      %1436 = vmatpush1.xpose.msra.mxu0 0.0
      %1437 = vmatprep.subr.mxu0 0.0
      %1438 = vmatpush1.xpose.msra.mxu0 0.0
      %1439 = vmatprep.subr.mxu0 0.0
      %1440 = vmatpush1.xpose.msra.mxu0 0.0
      %1441 = vmatprep.subr.mxu0 0.0
      %1442 = vmatpush1.xpose.msra.mxu0 0.0
      %1443 = vmatprep.subr.mxu0 0.0
      %1444 = vmatpush1.xpose.msra.mxu0 0.0
      %1445 = vmatprep.subr.mxu0 0.0
      %1446 = vmatpush1.xpose.msra.mxu0 0.0
      %1447 = vmatprep.subr.mxu0 0.0
      %1448 = vmatpush1.xpose.msra.mxu0 0.0
      %1449 = vmatprep.subr.mxu0 0.0
      %1450 = vmatpush1.xpose.msra.mxu0 0.0
      %1451 = vmatprep.subr.mxu0 0.0
      %1452 = vmatpush1.xpose.msra.mxu0 0.0
      %1453 = vmatprep.subr.mxu0 0.0
      %1454 = vmatpush1.xpose.msra.mxu0 0.0
      %1455 = vmatprep.subr.mxu0 0.0
      %1456 = vmatpush1.xpose.msra.mxu0 0.0
      %1457 = vmatprep.subr.mxu0 0.0
      %1458 = vmatpush1.xpose.msra.mxu0 0.0
      %1459 = vmatprep.subr.mxu0 0.0
      %1460 = vmatpush1.xpose.msra.mxu0 0.0
      %1461 = vmatprep.subr.mxu0 0.0
      %1462 = vmatpush1.xpose.msra.mxu0 0.0
      %1463 = vmatprep.subr.mxu0 0.0
      %1464 = vmatpush1.xpose.msra.mxu0 0.0
      %1465 = vmatprep.subr.mxu0 0.0
      %1466 = vmatpush1.xpose.msra.mxu0 0.0
      %1467 = vmatprep.subr.mxu0 0.0
      %1468 = vmatpush1.xpose.msra.mxu0 0.0
      %1469 = vmatprep.subr.mxu0 0.0
      %1470 = vmatpush1.xpose.msra.mxu0 0.0
      %1471 = vmatprep.mubr.f32.mxu0 0.0
      %1472 = vmatmul.mubr.f32.gmra.mrb[0].mxu0 %v1395
      %v1473 = vpop.f32.mrb[0].mxu0
      %v1474 = vadd.f32 0.0, %v1473
      %v1475 = vpop.f32.mrb[0].mxu0
      %1476 = vmatprep.mubr.f32.mxu0 0.0
      %1477 = vmatmul.mubr.f32.gmra.mrb[0].mxu0 %v1397
      %v1478 = vpop.f32.mrb[0].mxu0
      %v1479 = vadd.f32 0.0, %v1478
      %v1480 = vpop.f32.mrb[0].mxu0
      %1481 = vmatprep.mubr.f32.mxu0 0.0
      %1482 = vmatmul.mubr.f32.gmra.mrb[0].mxu0 %v1399
      %v1483 = vpop.f32.mrb[0].mxu0
      %v1484 = vadd.f32 0.0, %v1483
      %v1485 = vpop.f32.mrb[0].mxu0
      %1486 = vdwg.mxu0
      %v1487 = vmax.f32 %v1474, -10.0
      %v1488 = vmax.f32 %v1479, -10.0
      %v1489 = vmax.f32 %v1484, -10.0
      %v1490 = vmin.f32 %v1487, 10.0
      %v1491 = vmin.f32 %v1488, 10.0
      %v1492 = vmin.f32 %v1489, 10.0
      %v1493 = vmul.f32 %v1490, 1.442695
      %v1494 = vpow.pop %v1493
      %v1495 = vmul.f32 %v1491, 1.442695
      %v1496 = vpow.pop %v1495
      %v1497 = vmul.f32 %v1492, 1.442695
      %v1498 = vpow.pop %v1497
      %v1499 = vmul.f32 %v1494, %v535
      %v1500 = vmul.f32 %v1496, %v536
      %v1501 = vmul.f32 %v1498, %v537
      %v1502 = vsel %vm1034, %v1499, 0.0
      %1503 = vadd.xlane.f32.xlu0 %v1502
      %v1504 = vpop.xlane.xlu0 %1503
      %v1505 = vsel %vm1034, %v1500, 0.0
      %1506 = vadd.xlane.f32.xlu0 %v1505
      %v1507 = vpop.xlane.xlu0 %1506
      %v1508 = vsel %vm1034, %v1501, 0.0
      %1509 = vadd.xlane.f32.xlu0 %v1508
      %v1510 = vpop.xlane.xlu0 %1509
      %1511 = vrot.lane.b32.xlu0 %v911, 56
      %v1512 = vpop.permute.xlu0 %1511
      %1513 = vrot.lane.b32.xlu0 %v912, 56
      %v1514 = vpop.permute.xlu0 %1513
      %1515 = vrot.lane.b32.xlu0 %v913, 56
      %v1516 = vpop.permute.xlu0 %1515
      %v1521 = vsel %vm1034, %v1499, 0
      %v1524 = vsel %vm1034, %v1500, 0
      %v1527 = vsel %vm1034, %v1501, 0
      %1529 = vmatprep.subr.mxu0 0.0
      %1530 = vmatpush1.msra.mxu0 %v1512
      %1531 = vmatprep.subr.mxu0 0.0
      %1532 = vmatpush1.msra.mxu0 %v1514
      %1533 = vmatprep.subr.mxu0 0.0
      %1534 = vmatpush1.msra.mxu0 %v1516
      %1535 = vmatprep.subr.mxu0 0.0
      %1536 = vmatpush1.msra.mxu0 0.0
      %1537 = vmatprep.subr.mxu0 0.0
      %1538 = vmatpush1.msra.mxu0 0.0
      %1539 = vmatprep.subr.mxu0 0.0
      %1540 = vmatpush1.msra.mxu0 0.0
      %1541 = vmatprep.subr.mxu0 0.0
      %1542 = vmatpush1.msra.mxu0 0.0
      %1543 = vmatprep.subr.mxu0 0.0
      %1544 = vmatpush1.msra.mxu0 0.0
      %1545 = vmatprep.subr.mxu0 0.0
      %1546 = vmatpush1.msra.mxu0 0.0
      %1547 = vmatprep.subr.mxu0 0.0
      %1548 = vmatpush1.msra.mxu0 0.0
      %1549 = vmatprep.subr.mxu0 0.0
      %1550 = vmatpush1.msra.mxu0 0.0
      %1551 = vmatprep.subr.mxu0 0.0
      %1552 = vmatpush1.msra.mxu0 0.0
      %1553 = vmatprep.subr.mxu0 0.0
      %1554 = vmatpush1.msra.mxu0 0.0
      %1555 = vmatprep.subr.mxu0 0.0
      %1556 = vmatpush1.msra.mxu0 0.0
      %1557 = vmatprep.subr.mxu0 0.0
      %1558 = vmatpush1.msra.mxu0 0.0
      %1559 = vmatprep.subr.mxu0 0.0
      %1560 = vmatpush1.msra.mxu0 0.0
      %1561 = vmatprep.subr.mxu0 0.0
      %1562 = vmatpush1.msra.mxu0 0.0
      %1563 = vmatprep.subr.mxu0 0.0
      %1564 = vmatpush1.msra.mxu0 0.0
      %1565 = vmatprep.subr.mxu0 0.0
      %1566 = vmatpush1.msra.mxu0 0.0
      %1567 = vmatprep.subr.mxu0 0.0
      %1568 = vmatpush1.msra.mxu0 0.0
      %1569 = vmatprep.subr.mxu0 0.0
      %1570 = vmatpush1.msra.mxu0 0.0
      %1571 = vmatprep.subr.mxu0 0.0
      %1572 = vmatpush1.msra.mxu0 0.0
      %1573 = vmatprep.subr.mxu0 0.0
      %1574 = vmatpush1.msra.mxu0 0.0
      %1575 = vmatprep.subr.mxu0 0.0
      %1576 = vmatpush1.msra.mxu0 0.0
      %1577 = vmatprep.subr.mxu0 0.0
      %1578 = vmatpush1.msra.mxu0 0.0
      %1579 = vmatprep.subr.mxu0 0.0
      %1580 = vmatpush1.msra.mxu0 0.0
      %1581 = vmatprep.subr.mxu0 0.0
      %1582 = vmatpush1.msra.mxu0 0.0
      %1583 = vmatprep.subr.mxu0 0.0
      %1584 = vmatpush1.msra.mxu0 0.0
      %1585 = vmatprep.subr.mxu0 0.0
      %1586 = vmatpush1.msra.mxu0 0.0
      %1587 = vmatprep.subr.mxu0 0.0
      %1588 = vmatpush1.msra.mxu0 0.0
      %1589 = vmatprep.subr.mxu0 0.0
      %1590 = vmatpush1.msra.mxu0 0.0
      %1591 = vmatprep.subr.mxu0 0.0
      %1592 = vmatpush1.msra.mxu0 0.0
      %1593 = vmatprep.mubr.f32.mxu0 0.0
      %1594 = vmatmul.mubr.f32.gmra.mrb[0].mxu0 %v1521
      %v1595 = vpop.f32.mrb[0].mxu0
      %v1596 = vadd.f32 0.0, %v1595
      %v1597 = vpop.f32.mrb[0].mxu0
      %1598 = vmatprep.mubr.f32.mxu0 0.0
      %1599 = vmatmul.mubr.f32.gmra.mrb[0].mxu0 %v1524
      %v1600 = vpop.f32.mrb[0].mxu0
      %v1601 = vadd.f32 0.0, %v1600
      %v1602 = vpop.f32.mrb[0].mxu0
      %1603 = vmatprep.mubr.f32.mxu0 0.0
      %1604 = vmatmul.mubr.f32.gmra.mrb[0].mxu0 %v1527
      %v1605 = vpop.f32.mrb[0].mxu0
      %v1606 = vadd.f32 0.0, %v1605
      %v1607 = vpop.f32.mrb[0].mxu0
      %1608 = vdwg.mxu0
      %v1609 = vrcp.pop %v1504
      %v1610 = vrcp.pop %v1507
      %v1611 = vrcp.pop %v1510
      %v1612 = vmul.f32 %v1596, %v1609
      %v1613 = vmul.f32 %v1601, %v1610
      %v1614 = vmul.f32 %v1606, %v1611
      %1615 = vrot.lane.b32.xlu0 %v893, 116
      %v1616 = vpop.permute.xlu0 %1615
      %1617 = vrot.lane.b32.xlu0 %v894, 116
      %v1618 = vpop.permute.xlu0 %1617
      %1619 = vrot.lane.b32.xlu0 %v895, 116
      %v1620 = vpop.permute.xlu0 %1619
      %1621 = vrot.lane.b32.xlu0 %v864, 84
      %v1622 = vpop.permute.xlu0 %1621
      %1623 = vrot.lane.b32.xlu0 %v869, 84
      %v1624 = vpop.permute.xlu0 %1623
      %1625 = vrot.lane.b32.xlu0 %v874, 84
      %v1626 = vpop.permute.xlu0 %1625
      %v1627 = vsel %vm923, %v1616, 0
      %v1629 = vsel %vm923, %v1618, 0
      %v1631 = vsel %vm923, %v1620, 0
      %v1633 = vsel %vm923, %v1622, 0
      %v1635 = vsel %vm923, %v1624, 0
      %v1637 = vsel %vm923, %v1626, 0
      %1639 = vmatprep.subr.mxu0 0.0
      %1640 = vmatpush1.xpose.msra.mxu0 %v1633
      %1641 = vmatprep.subr.mxu0 0.0
      %1642 = vmatpush1.xpose.msra.mxu0 %v1635
      %1643 = vmatprep.subr.mxu0 0.0
      %1644 = vmatpush1.xpose.msra.mxu0 %v1637
      %1645 = vmatprep.subr.mxu0 0.0
      %1646 = vmatpush1.xpose.msra.mxu0 0.0
      %1647 = vmatprep.subr.mxu0 0.0
      %1648 = vmatpush1.xpose.msra.mxu0 0.0
      %1649 = vmatprep.subr.mxu0 0.0
      %1650 = vmatpush1.xpose.msra.mxu0 0.0
      %1651 = vmatprep.subr.mxu0 0.0
      %1652 = vmatpush1.xpose.msra.mxu0 0.0
      %1653 = vmatprep.subr.mxu0 0.0
      %1654 = vmatpush1.xpose.msra.mxu0 0.0
      %1655 = vmatprep.subr.mxu0 0.0
      %1656 = vmatpush1.xpose.msra.mxu0 0.0
      %1657 = vmatprep.subr.mxu0 0.0
      %1658 = vmatpush1.xpose.msra.mxu0 0.0
      %1659 = vmatprep.subr.mxu0 0.0
      %1660 = vmatpush1.xpose.msra.mxu0 0.0
      %1661 = vmatprep.subr.mxu0 0.0
      %1662 = vmatpush1.xpose.msra.mxu0 0.0
      %1663 = vmatprep.subr.mxu0 0.0
      %1664 = vmatpush1.xpose.msra.mxu0 0.0
      %1665 = vmatprep.subr.mxu0 0.0
      %1666 = vmatpush1.xpose.msra.mxu0 0.0
      %1667 = vmatprep.subr.mxu0 0.0
      %1668 = vmatpush1.xpose.msra.mxu0 0.0
      %1669 = vmatprep.subr.mxu0 0.0
      %1670 = vmatpush1.xpose.msra.mxu0 0.0
      %1671 = vmatprep.subr.mxu0 0.0
      %1672 = vmatpush1.xpose.msra.mxu0 0.0
      %1673 = vmatprep.subr.mxu0 0.0
      %1674 = vmatpush1.xpose.msra.mxu0 0.0
      %1675 = vmatprep.subr.mxu0 0.0
      %1676 = vmatpush1.xpose.msra.mxu0 0.0
      %1677 = vmatprep.subr.mxu0 0.0
      %1678 = vmatpush1.xpose.msra.mxu0 0.0
      %1679 = vmatprep.subr.mxu0 0.0
      %1680 = vmatpush1.xpose.msra.mxu0 0.0
      %1681 = vmatprep.subr.mxu0 0.0
      %1682 = vmatpush1.xpose.msra.mxu0 0.0
      %1683 = vmatprep.subr.mxu0 0.0
      %1684 = vmatpush1.xpose.msra.mxu0 0.0
      %1685 = vmatprep.subr.mxu0 0.0
      %1686 = vmatpush1.xpose.msra.mxu0 0.0
      %1687 = vmatprep.subr.mxu0 0.0
      %1688 = vmatpush1.xpose.msra.mxu0 0.0
      %1689 = vmatprep.subr.mxu0 0.0
      %1690 = vmatpush1.xpose.msra.mxu0 0.0
      %1691 = vmatprep.subr.mxu0 0.0
      %1692 = vmatpush1.xpose.msra.mxu0 0.0
      %1693 = vmatprep.subr.mxu0 0.0
      %1694 = vmatpush1.xpose.msra.mxu0 0.0
      %1695 = vmatprep.subr.mxu0 0.0
      %1696 = vmatpush1.xpose.msra.mxu0 0.0
      %1697 = vmatprep.subr.mxu0 0.0
      %1698 = vmatpush1.xpose.msra.mxu0 0.0
      %1699 = vmatprep.subr.mxu0 0.0
      %1700 = vmatpush1.xpose.msra.mxu0 0.0
      %1701 = vmatprep.subr.mxu0 0.0
      %1702 = vmatpush1.xpose.msra.mxu0 0.0
      %1703 = vmatprep.mubr.f32.mxu0 0.0
      %1704 = vmatmul.mubr.f32.gmra.mrb[0].mxu0 %v1627
      %v1705 = vpop.f32.mrb[0].mxu0
      %v1706 = vadd.f32 0.0, %v1705
      %v1707 = vpop.f32.mrb[0].mxu0
      %1708 = vmatprep.mubr.f32.mxu0 0.0
      %1709 = vmatmul.mubr.f32.gmra.mrb[0].mxu0 %v1629
      %v1710 = vpop.f32.mrb[0].mxu0
      %v1711 = vadd.f32 0.0, %v1710
      %v1712 = vpop.f32.mrb[0].mxu0
      %1713 = vmatprep.mubr.f32.mxu0 0.0
      %1714 = vmatmul.mubr.f32.gmra.mrb[0].mxu0 %v1631
      %v1715 = vpop.f32.mrb[0].mxu0
      %v1716 = vadd.f32 0.0, %v1715
      %v1717 = vpop.f32.mrb[0].mxu0
      %1718 = vdwg.mxu0
      %v1719 = vmax.f32 %v1706, -10.0
      %v1720 = vmax.f32 %v1711, -10.0
      %v1721 = vmax.f32 %v1716, -10.0
      %v1722 = vmin.f32 %v1719, 10.0
      %v1723 = vmin.f32 %v1720, 10.0
      %v1724 = vmin.f32 %v1721, 10.0
      %v1725 = vmul.f32 %v1722, 1.442695
      %v1726 = vpow.pop %v1725
      %v1727 = vmul.f32 %v1723, 1.442695
      %v1728 = vpow.pop %v1727
      %v1729 = vmul.f32 %v1724, 1.442695
      %v1730 = vpow.pop %v1729
      %v1731 = vmul.f32 %v1726, %v535
      %v1732 = vmul.f32 %v1728, %v536
      %v1733 = vmul.f32 %v1730, %v537
      %v1734 = vsel %vm1034, %v1731, 0.0
      %1735 = vadd.xlane.f32.xlu0 %v1734
      %v1736 = vpop.xlane.xlu0 %1735
      %v1737 = vsel %vm1034, %v1732, 0.0
      %1738 = vadd.xlane.f32.xlu0 %v1737
      %v1739 = vpop.xlane.xlu0 %1738
      %v1740 = vsel %vm1034, %v1733, 0.0
      %1741 = vadd.xlane.f32.xlu0 %v1740
      %v1742 = vpop.xlane.xlu0 %1741
      %1743 = vrot.lane.b32.xlu0 %v911, 52
      %v1744 = vpop.permute.xlu0 %1743
      %1745 = vrot.lane.b32.xlu0 %v912, 52
      %v1746 = vpop.permute.xlu0 %1745
      %1747 = vrot.lane.b32.xlu0 %v913, 52
      %v1748 = vpop.permute.xlu0 %1747
      %v1753 = vsel %vm1034, %v1731, 0
      %v1756 = vsel %vm1034, %v1732, 0
      %v1759 = vsel %vm1034, %v1733, 0
      %1761 = vmatprep.subr.mxu0 0.0
      %1762 = vmatpush1.msra.mxu0 %v1744
      %1763 = vmatprep.subr.mxu0 0.0
      %1764 = vmatpush1.msra.mxu0 %v1746
      %1765 = vmatprep.subr.mxu0 0.0
      %1766 = vmatpush1.msra.mxu0 %v1748
      %1767 = vmatprep.subr.mxu0 0.0
      %1768 = vmatpush1.msra.mxu0 0.0
      %1769 = vmatprep.subr.mxu0 0.0
      %1770 = vmatpush1.msra.mxu0 0.0
      %1771 = vmatprep.subr.mxu0 0.0
      %1772 = vmatpush1.msra.mxu0 0.0
      %1773 = vmatprep.subr.mxu0 0.0
      %1774 = vmatpush1.msra.mxu0 0.0
      %1775 = vmatprep.subr.mxu0 0.0
      %1776 = vmatpush1.msra.mxu0 0.0
      %1777 = vmatprep.subr.mxu0 0.0
      %1778 = vmatpush1.msra.mxu0 0.0
      %1779 = vmatprep.subr.mxu0 0.0
      %1780 = vmatpush1.msra.mxu0 0.0
      %1781 = vmatprep.subr.mxu0 0.0
      %1782 = vmatpush1.msra.mxu0 0.0
      %1783 = vmatprep.subr.mxu0 0.0
      %1784 = vmatpush1.msra.mxu0 0.0
      %1785 = vmatprep.subr.mxu0 0.0
      %1786 = vmatpush1.msra.mxu0 0.0
      %1787 = vmatprep.subr.mxu0 0.0
      %1788 = vmatpush1.msra.mxu0 0.0
      %1789 = vmatprep.subr.mxu0 0.0
      %1790 = vmatpush1.msra.mxu0 0.0
      %1791 = vmatprep.subr.mxu0 0.0
      %1792 = vmatpush1.msra.mxu0 0.0
      %1793 = vmatprep.subr.mxu0 0.0
      %1794 = vmatpush1.msra.mxu0 0.0
      %1795 = vmatprep.subr.mxu0 0.0
      %1796 = vmatpush1.msra.mxu0 0.0
      %1797 = vmatprep.subr.mxu0 0.0
      %1798 = vmatpush1.msra.mxu0 0.0
      %1799 = vmatprep.subr.mxu0 0.0
      %1800 = vmatpush1.msra.mxu0 0.0
      %1801 = vmatprep.subr.mxu0 0.0
      %1802 = vmatpush1.msra.mxu0 0.0
      %1803 = vmatprep.subr.mxu0 0.0
      %1804 = vmatpush1.msra.mxu0 0.0
      %1805 = vmatprep.subr.mxu0 0.0
      %1806 = vmatpush1.msra.mxu0 0.0
      %1807 = vmatprep.subr.mxu0 0.0
      %1808 = vmatpush1.msra.mxu0 0.0
      %1809 = vmatprep.subr.mxu0 0.0
      %1810 = vmatpush1.msra.mxu0 0.0
      %1811 = vmatprep.subr.mxu0 0.0
      %1812 = vmatpush1.msra.mxu0 0.0
      %1813 = vmatprep.subr.mxu0 0.0
      %1814 = vmatpush1.msra.mxu0 0.0
      %1815 = vmatprep.subr.mxu0 0.0
      %1816 = vmatpush1.msra.mxu0 0.0
      %1817 = vmatprep.subr.mxu0 0.0
      %1818 = vmatpush1.msra.mxu0 0.0
      %1819 = vmatprep.subr.mxu0 0.0
      %1820 = vmatpush1.msra.mxu0 0.0
      %1821 = vmatprep.subr.mxu0 0.0
      %1822 = vmatpush1.msra.mxu0 0.0
      %1823 = vmatprep.subr.mxu0 0.0
      %1824 = vmatpush1.msra.mxu0 0.0
      %1825 = vmatprep.mubr.f32.mxu0 0.0
      %1826 = vmatmul.mubr.f32.gmra.mrb[0].mxu0 %v1753
      %v1827 = vpop.f32.mrb[0].mxu0
      %v1828 = vadd.f32 0.0, %v1827
      %v1829 = vpop.f32.mrb[0].mxu0
      %1830 = vmatprep.mubr.f32.mxu0 0.0
      %1831 = vmatmul.mubr.f32.gmra.mrb[0].mxu0 %v1756
      %v1832 = vpop.f32.mrb[0].mxu0
      %v1833 = vadd.f32 0.0, %v1832
      %v1834 = vpop.f32.mrb[0].mxu0
      %1835 = vmatprep.mubr.f32.mxu0 0.0
      %1836 = vmatmul.mubr.f32.gmra.mrb[0].mxu0 %v1759
      %v1837 = vpop.f32.mrb[0].mxu0
      %v1838 = vadd.f32 0.0, %v1837
      %v1839 = vpop.f32.mrb[0].mxu0
      %1840 = vdwg.mxu0
      %v1841 = vrcp.pop %v1736
      %v1842 = vrcp.pop %v1739
      %v1843 = vrcp.pop %v1742
      %v1844 = vmul.f32 %v1828, %v1841
      %v1845 = vmul.f32 %v1833, %v1842
      %v1846 = vmul.f32 %v1838, %v1843
      %1847 = vrot.lane.b32.xlu0 %v893, 112
      %v1848 = vpop.permute.xlu0 %1847
      %1849 = vrot.lane.b32.xlu0 %v894, 112
      %v1850 = vpop.permute.xlu0 %1849
      %1851 = vrot.lane.b32.xlu0 %v895, 112
      %v1852 = vpop.permute.xlu0 %1851
      %1853 = vrot.lane.b32.xlu0 %v864, 80
      %v1854 = vpop.permute.xlu0 %1853
      %1855 = vrot.lane.b32.xlu0 %v869, 80
      %v1856 = vpop.permute.xlu0 %1855
      %1857 = vrot.lane.b32.xlu0 %v874, 80
      %v1858 = vpop.permute.xlu0 %1857
      %v1859 = vsel %vm923, %v1848, 0
      %v1861 = vsel %vm923, %v1850, 0
      %v1863 = vsel %vm923, %v1852, 0
      %v1865 = vsel %vm923, %v1854, 0
      %v1867 = vsel %vm923, %v1856, 0
      %v1869 = vsel %vm923, %v1858, 0
      %1871 = vmatprep.subr.mxu0 0.0
      %1872 = vmatpush1.xpose.msra.mxu0 %v1865
      %1873 = vmatprep.subr.mxu0 0.0
      %1874 = vmatpush1.xpose.msra.mxu0 %v1867
      %1875 = vmatprep.subr.mxu0 0.0
      %1876 = vmatpush1.xpose.msra.mxu0 %v1869
      %1877 = vmatprep.subr.mxu0 0.0
      %1878 = vmatpush1.xpose.msra.mxu0 0.0
      %1879 = vmatprep.subr.mxu0 0.0
      %1880 = vmatpush1.xpose.msra.mxu0 0.0
      %1881 = vmatprep.subr.mxu0 0.0
      %1882 = vmatpush1.xpose.msra.mxu0 0.0
      %1883 = vmatprep.subr.mxu0 0.0
      %1884 = vmatpush1.xpose.msra.mxu0 0.0
      %1885 = vmatprep.subr.mxu0 0.0
      %1886 = vmatpush1.xpose.msra.mxu0 0.0
      %1887 = vmatprep.subr.mxu0 0.0
      %1888 = vmatpush1.xpose.msra.mxu0 0.0
      %1889 = vmatprep.subr.mxu0 0.0
      %1890 = vmatpush1.xpose.msra.mxu0 0.0
      %1891 = vmatprep.subr.mxu0 0.0
      %1892 = vmatpush1.xpose.msra.mxu0 0.0
      %1893 = vmatprep.subr.mxu0 0.0
      %1894 = vmatpush1.xpose.msra.mxu0 0.0
      %1895 = vmatprep.subr.mxu0 0.0
      %1896 = vmatpush1.xpose.msra.mxu0 0.0
      %1897 = vmatprep.subr.mxu0 0.0
      %1898 = vmatpush1.xpose.msra.mxu0 0.0
      %1899 = vmatprep.subr.mxu0 0.0
      %1900 = vmatpush1.xpose.msra.mxu0 0.0
      %1901 = vmatprep.subr.mxu0 0.0
      %1902 = vmatpush1.xpose.msra.mxu0 0.0
      %1903 = vmatprep.subr.mxu0 0.0
      %1904 = vmatpush1.xpose.msra.mxu0 0.0
      %1905 = vmatprep.subr.mxu0 0.0
      %1906 = vmatpush1.xpose.msra.mxu0 0.0
      %1907 = vmatprep.subr.mxu0 0.0
      %1908 = vmatpush1.xpose.msra.mxu0 0.0
      %1909 = vmatprep.subr.mxu0 0.0
      %1910 = vmatpush1.xpose.msra.mxu0 0.0
      %1911 = vmatprep.subr.mxu0 0.0
      %1912 = vmatpush1.xpose.msra.mxu0 0.0
      %1913 = vmatprep.subr.mxu0 0.0
      %1914 = vmatpush1.xpose.msra.mxu0 0.0
      %1915 = vmatprep.subr.mxu0 0.0
      %1916 = vmatpush1.xpose.msra.mxu0 0.0
      %1917 = vmatprep.subr.mxu0 0.0
      %1918 = vmatpush1.xpose.msra.mxu0 0.0
      %1919 = vmatprep.subr.mxu0 0.0
      %1920 = vmatpush1.xpose.msra.mxu0 0.0
      %1921 = vmatprep.subr.mxu0 0.0
      %1922 = vmatpush1.xpose.msra.mxu0 0.0
      %1923 = vmatprep.subr.mxu0 0.0
      %1924 = vmatpush1.xpose.msra.mxu0 0.0
      %1925 = vmatprep.subr.mxu0 0.0
      %1926 = vmatpush1.xpose.msra.mxu0 0.0
      %1927 = vmatprep.subr.mxu0 0.0
      %1928 = vmatpush1.xpose.msra.mxu0 0.0
      %1929 = vmatprep.subr.mxu0 0.0
      %1930 = vmatpush1.xpose.msra.mxu0 0.0
      %1931 = vmatprep.subr.mxu0 0.0
      %1932 = vmatpush1.xpose.msra.mxu0 0.0
      %1933 = vmatprep.subr.mxu0 0.0
      %1934 = vmatpush1.xpose.msra.mxu0 0.0
      %1935 = vmatprep.mubr.f32.mxu0 0.0
      %1936 = vmatmul.mubr.f32.gmra.mrb[0].mxu0 %v1859
      %v1937 = vpop.f32.mrb[0].mxu0
      %v1938 = vadd.f32 0.0, %v1937
      %v1939 = vpop.f32.mrb[0].mxu0
      %1940 = vmatprep.mubr.f32.mxu0 0.0
      %1941 = vmatmul.mubr.f32.gmra.mrb[0].mxu0 %v1861
      %v1942 = vpop.f32.mrb[0].mxu0
      %v1943 = vadd.f32 0.0, %v1942
      %v1944 = vpop.f32.mrb[0].mxu0
      %1945 = vmatprep.mubr.f32.mxu0 0.0
      %1946 = vmatmul.mubr.f32.gmra.mrb[0].mxu0 %v1863
      %v1947 = vpop.f32.mrb[0].mxu0
      %v1948 = vadd.f32 0.0, %v1947
      %v1949 = vpop.f32.mrb[0].mxu0
      %1950 = vdwg.mxu0
      %v1951 = vmax.f32 %v1938, -10.0
      %v1952 = vmax.f32 %v1943, -10.0
      %v1953 = vmax.f32 %v1948, -10.0
      %v1954 = vmin.f32 %v1951, 10.0
      %v1955 = vmin.f32 %v1952, 10.0
      %v1956 = vmin.f32 %v1953, 10.0
      %v1957 = vmul.f32 %v1954, 1.442695
      %v1958 = vpow.pop %v1957
      %v1959 = vmul.f32 %v1955, 1.442695
      %v1960 = vpow.pop %v1959
      %v1961 = vmul.f32 %v1956, 1.442695
      %v1962 = vpow.pop %v1961
      %v1963 = vmul.f32 %v1958, %v535
      %v1964 = vmul.f32 %v1960, %v536
      %v1965 = vmul.f32 %v1962, %v537
      %v1966 = vsel %vm1034, %v1963, 0.0
      %1967 = vadd.xlane.f32.xlu0 %v1966
      %v1968 = vpop.xlane.xlu0 %1967
      %v1969 = vsel %vm1034, %v1964, 0.0
      %1970 = vadd.xlane.f32.xlu0 %v1969
      %v1971 = vpop.xlane.xlu0 %1970
      %v1972 = vsel %vm1034, %v1965, 0.0
      %1973 = vadd.xlane.f32.xlu0 %v1972
      %v1974 = vpop.xlane.xlu0 %1973
      %1975 = vrot.lane.b32.xlu0 %v911, 48
      %v1976 = vpop.permute.xlu0 %1975
      %1977 = vrot.lane.b32.xlu0 %v912, 48
      %v1978 = vpop.permute.xlu0 %1977
      %1979 = vrot.lane.b32.xlu0 %v913, 48
      %v1980 = vpop.permute.xlu0 %1979
      %v1985 = vsel %vm1034, %v1963, 0
      %v1988 = vsel %vm1034, %v1964, 0
      %v1991 = vsel %vm1034, %v1965, 0
      %1993 = vmatprep.subr.mxu0 0.0
      %1994 = vmatpush1.msra.mxu0 %v1976
      %1995 = vmatprep.subr.mxu0 0.0
      %1996 = vmatpush1.msra.mxu0 %v1978
      %1997 = vmatprep.subr.mxu0 0.0
      %1998 = vmatpush1.msra.mxu0 %v1980
      %1999 = vmatprep.subr.mxu0 0.0
      %2000 = vmatpush1.msra.mxu0 0.0
      %2001 = vmatprep.subr.mxu0 0.0
      %2002 = vmatpush1.msra.mxu0 0.0
      %2003 = vmatprep.subr.mxu0 0.0
      %2004 = vmatpush1.msra.mxu0 0.0
      %2005 = vmatprep.subr.mxu0 0.0
      %2006 = vmatpush1.msra.mxu0 0.0
      %2007 = vmatprep.subr.mxu0 0.0
      %2008 = vmatpush1.msra.mxu0 0.0
      %2009 = vmatprep.subr.mxu0 0.0
      %2010 = vmatpush1.msra.mxu0 0.0
      %2011 = vmatprep.subr.mxu0 0.0
      %2012 = vmatpush1.msra.mxu0 0.0
      %2013 = vmatprep.subr.mxu0 0.0
      %2014 = vmatpush1.msra.mxu0 0.0
      %2015 = vmatprep.subr.mxu0 0.0
      %2016 = vmatpush1.msra.mxu0 0.0
      %2017 = vmatprep.subr.mxu0 0.0
      %2018 = vmatpush1.msra.mxu0 0.0
      %2019 = vmatprep.subr.mxu0 0.0
      %2020 = vmatpush1.msra.mxu0 0.0
      %2021 = vmatprep.subr.mxu0 0.0
      %2022 = vmatpush1.msra.mxu0 0.0
      %2023 = vmatprep.subr.mxu0 0.0
      %2024 = vmatpush1.msra.mxu0 0.0
      %2025 = vmatprep.subr.mxu0 0.0
      %2026 = vmatpush1.msra.mxu0 0.0
      %2027 = vmatprep.subr.mxu0 0.0
      %2028 = vmatpush1.msra.mxu0 0.0
      %2029 = vmatprep.subr.mxu0 0.0
      %2030 = vmatpush1.msra.mxu0 0.0
      %2031 = vmatprep.subr.mxu0 0.0
      %2032 = vmatpush1.msra.mxu0 0.0
      %2033 = vmatprep.subr.mxu0 0.0
      %2034 = vmatpush1.msra.mxu0 0.0
      %2035 = vmatprep.subr.mxu0 0.0
      %2036 = vmatpush1.msra.mxu0 0.0
      %2037 = vmatprep.subr.mxu0 0.0
      %2038 = vmatpush1.msra.mxu0 0.0
      %2039 = vmatprep.subr.mxu0 0.0
      %2040 = vmatpush1.msra.mxu0 0.0
      %2041 = vmatprep.subr.mxu0 0.0
      %2042 = vmatpush1.msra.mxu0 0.0
      %2043 = vmatprep.subr.mxu0 0.0
      %2044 = vmatpush1.msra.mxu0 0.0
      %2045 = vmatprep.subr.mxu0 0.0
      %2046 = vmatpush1.msra.mxu0 0.0
      %2047 = vmatprep.subr.mxu0 0.0
      %2048 = vmatpush1.msra.mxu0 0.0
      %2049 = vmatprep.subr.mxu0 0.0
      %2050 = vmatpush1.msra.mxu0 0.0
      %2051 = vmatprep.subr.mxu0 0.0
      %2052 = vmatpush1.msra.mxu0 0.0
      %2053 = vmatprep.subr.mxu0 0.0
      %2054 = vmatpush1.msra.mxu0 0.0
      %2055 = vmatprep.subr.mxu0 0.0
      %2056 = vmatpush1.msra.mxu0 0.0
      %2057 = vmatprep.mubr.f32.mxu0 0.0
      %2058 = vmatmul.mubr.f32.gmra.mrb[0].mxu0 %v1985
      %v2059 = vpop.f32.mrb[0].mxu0
      %v2060 = vadd.f32 0.0, %v2059
      %v2061 = vpop.f32.mrb[0].mxu0
      %2062 = vmatprep.mubr.f32.mxu0 0.0
      %2063 = vmatmul.mubr.f32.gmra.mrb[0].mxu0 %v1988
      %v2064 = vpop.f32.mrb[0].mxu0
      %v2065 = vadd.f32 0.0, %v2064
      %v2066 = vpop.f32.mrb[0].mxu0
      %2067 = vmatprep.mubr.f32.mxu0 0.0
      %2068 = vmatmul.mubr.f32.gmra.mrb[0].mxu0 %v1991
      %v2069 = vpop.f32.mrb[0].mxu0
      %v2070 = vadd.f32 0.0, %v2069
      %v2071 = vpop.f32.mrb[0].mxu0
      %2072 = vdwg.mxu0
      %v2073 = vrcp.pop %v1968
      %v2074 = vrcp.pop %v1971
      %v2075 = vrcp.pop %v1974
      %v2076 = vmul.f32 %v2060, %v2073
      %v2077 = vmul.f32 %v2065, %v2074
      %v2078 = vmul.f32 %v2070, %v2075
      %2079 = vrot.lane.b32.xlu0 %v893, 108
      %v2080 = vpop.permute.xlu0 %2079
      %2081 = vrot.lane.b32.xlu0 %v894, 108
      %v2082 = vpop.permute.xlu0 %2081
      %2083 = vrot.lane.b32.xlu0 %v895, 108
      %v2084 = vpop.permute.xlu0 %2083
      %2085 = vrot.lane.b32.xlu0 %v864, 76
      %v2086 = vpop.permute.xlu0 %2085
      %2087 = vrot.lane.b32.xlu0 %v869, 76
      %v2088 = vpop.permute.xlu0 %2087
      %2089 = vrot.lane.b32.xlu0 %v874, 76
      %v2090 = vpop.permute.xlu0 %2089
      %v2091 = vsel %vm923, %v2080, 0
      %v2093 = vsel %vm923, %v2082, 0
      %v2095 = vsel %vm923, %v2084, 0
      %v2097 = vsel %vm923, %v2086, 0
      %v2099 = vsel %vm923, %v2088, 0
      %v2101 = vsel %vm923, %v2090, 0
      %2103 = vmatprep.subr.mxu0 0.0
      %2104 = vmatpush1.xpose.msra.mxu0 %v2097
      %2105 = vmatprep.subr.mxu0 0.0
      %2106 = vmatpush1.xpose.msra.mxu0 %v2099
      %2107 = vmatprep.subr.mxu0 0.0
      %2108 = vmatpush1.xpose.msra.mxu0 %v2101
      %2109 = vmatprep.subr.mxu0 0.0
      %2110 = vmatpush1.xpose.msra.mxu0 0.0
      %2111 = vmatprep.subr.mxu0 0.0
      %2112 = vmatpush1.xpose.msra.mxu0 0.0
      %2113 = vmatprep.subr.mxu0 0.0
      %2114 = vmatpush1.xpose.msra.mxu0 0.0
      %2115 = vmatprep.subr.mxu0 0.0
      %2116 = vmatpush1.xpose.msra.mxu0 0.0
      %2117 = vmatprep.subr.mxu0 0.0
      %2118 = vmatpush1.xpose.msra.mxu0 0.0
      %2119 = vmatprep.subr.mxu0 0.0
      %2120 = vmatpush1.xpose.msra.mxu0 0.0
      %2121 = vmatprep.subr.mxu0 0.0
      %2122 = vmatpush1.xpose.msra.mxu0 0.0
      %2123 = vmatprep.subr.mxu0 0.0
      %2124 = vmatpush1.xpose.msra.mxu0 0.0
      %2125 = vmatprep.subr.mxu0 0.0
      %2126 = vmatpush1.xpose.msra.mxu0 0.0
      %2127 = vmatprep.subr.mxu0 0.0
      %2128 = vmatpush1.xpose.msra.mxu0 0.0
      %2129 = vmatprep.subr.mxu0 0.0
      %2130 = vmatpush1.xpose.msra.mxu0 0.0
      %2131 = vmatprep.subr.mxu0 0.0
      %2132 = vmatpush1.xpose.msra.mxu0 0.0
      %2133 = vmatprep.subr.mxu0 0.0
      %2134 = vmatpush1.xpose.msra.mxu0 0.0
      %2135 = vmatprep.subr.mxu0 0.0
      %2136 = vmatpush1.xpose.msra.mxu0 0.0
      %2137 = vmatprep.subr.mxu0 0.0
      %2138 = vmatpush1.xpose.msra.mxu0 0.0
      %2139 = vmatprep.subr.mxu0 0.0
      %2140 = vmatpush1.xpose.msra.mxu0 0.0
      %2141 = vmatprep.subr.mxu0 0.0
      %2142 = vmatpush1.xpose.msra.mxu0 0.0
      %2143 = vmatprep.subr.mxu0 0.0
      %2144 = vmatpush1.xpose.msra.mxu0 0.0
      %2145 = vmatprep.subr.mxu0 0.0
      %2146 = vmatpush1.xpose.msra.mxu0 0.0
      %2147 = vmatprep.subr.mxu0 0.0
      %2148 = vmatpush1.xpose.msra.mxu0 0.0
      %2149 = vmatprep.subr.mxu0 0.0
      %2150 = vmatpush1.xpose.msra.mxu0 0.0
      %2151 = vmatprep.subr.mxu0 0.0
      %2152 = vmatpush1.xpose.msra.mxu0 0.0
      %2153 = vmatprep.subr.mxu0 0.0
      %2154 = vmatpush1.xpose.msra.mxu0 0.0
      %2155 = vmatprep.subr.mxu0 0.0
      %2156 = vmatpush1.xpose.msra.mxu0 0.0
      %2157 = vmatprep.subr.mxu0 0.0
      %2158 = vmatpush1.xpose.msra.mxu0 0.0
      %2159 = vmatprep.subr.mxu0 0.0
      %2160 = vmatpush1.xpose.msra.mxu0 0.0
      %2161 = vmatprep.subr.mxu0 0.0
      %2162 = vmatpush1.xpose.msra.mxu0 0.0
      %2163 = vmatprep.subr.mxu0 0.0
      %2164 = vmatpush1.xpose.msra.mxu0 0.0
      %2165 = vmatprep.subr.mxu0 0.0
      %2166 = vmatpush1.xpose.msra.mxu0 0.0
      %2167 = vmatprep.mubr.f32.mxu0 0.0
      %2168 = vmatmul.mubr.f32.gmra.mrb[0].mxu0 %v2091
      %v2169 = vpop.f32.mrb[0].mxu0
      %v2170 = vadd.f32 0.0, %v2169
      %v2171 = vpop.f32.mrb[0].mxu0
      %2172 = vmatprep.mubr.f32.mxu0 0.0
      %2173 = vmatmul.mubr.f32.gmra.mrb[0].mxu0 %v2093
      %v2174 = vpop.f32.mrb[0].mxu0
      %v2175 = vadd.f32 0.0, %v2174
      %v2176 = vpop.f32.mrb[0].mxu0
      %2177 = vmatprep.mubr.f32.mxu0 0.0
      %2178 = vmatmul.mubr.f32.gmra.mrb[0].mxu0 %v2095
      %v2179 = vpop.f32.mrb[0].mxu0
      %v2180 = vadd.f32 0.0, %v2179
      %v2181 = vpop.f32.mrb[0].mxu0
      %2182 = vdwg.mxu0
      %v2183 = vmax.f32 %v2170, -10.0
      %v2184 = vmax.f32 %v2175, -10.0
      %v2185 = vmax.f32 %v2180, -10.0
      %v2186 = vmin.f32 %v2183, 10.0
      %v2187 = vmin.f32 %v2184, 10.0
      %v2188 = vmin.f32 %v2185, 10.0
      %v2189 = vmul.f32 %v2186, 1.442695
      %v2190 = vpow.pop %v2189
      %v2191 = vmul.f32 %v2187, 1.442695
      %v2192 = vpow.pop %v2191
      %v2193 = vmul.f32 %v2188, 1.442695
      %v2194 = vpow.pop %v2193
      %v2195 = vmul.f32 %v2190, %v535
      %v2196 = vmul.f32 %v2192, %v536
      %v2197 = vmul.f32 %v2194, %v537
      %v2198 = vsel %vm1034, %v2195, 0.0
      %2199 = vadd.xlane.f32.xlu0 %v2198
      %v2200 = vpop.xlane.xlu0 %2199
      %v2201 = vsel %vm1034, %v2196, 0.0
      %2202 = vadd.xlane.f32.xlu0 %v2201
      %v2203 = vpop.xlane.xlu0 %2202
      %v2204 = vsel %vm1034, %v2197, 0.0
      %2205 = vadd.xlane.f32.xlu0 %v2204
      %v2206 = vpop.xlane.xlu0 %2205
      %2207 = vrot.lane.b32.xlu0 %v911, 44
      %v2208 = vpop.permute.xlu0 %2207
      %2209 = vrot.lane.b32.xlu0 %v912, 44
      %v2210 = vpop.permute.xlu0 %2209
      %2211 = vrot.lane.b32.xlu0 %v913, 44
      %v2212 = vpop.permute.xlu0 %2211
      %v2217 = vsel %vm1034, %v2195, 0
      %v2220 = vsel %vm1034, %v2196, 0
      %v2223 = vsel %vm1034, %v2197, 0
      %2225 = vmatprep.subr.mxu0 0.0
      %2226 = vmatpush1.msra.mxu0 %v2208
      %2227 = vmatprep.subr.mxu0 0.0
      %2228 = vmatpush1.msra.mxu0 %v2210
      %2229 = vmatprep.subr.mxu0 0.0
      %2230 = vmatpush1.msra.mxu0 %v2212
      %2231 = vmatprep.subr.mxu0 0.0
      %2232 = vmatpush1.msra.mxu0 0.0
      %2233 = vmatprep.subr.mxu0 0.0
      %2234 = vmatpush1.msra.mxu0 0.0
      %2235 = vmatprep.subr.mxu0 0.0
      %2236 = vmatpush1.msra.mxu0 0.0
      %2237 = vmatprep.subr.mxu0 0.0
      %2238 = vmatpush1.msra.mxu0 0.0
      %2239 = vmatprep.subr.mxu0 0.0
      %2240 = vmatpush1.msra.mxu0 0.0
      %2241 = vmatprep.subr.mxu0 0.0
      %2242 = vmatpush1.msra.mxu0 0.0
      %2243 = vmatprep.subr.mxu0 0.0
      %2244 = vmatpush1.msra.mxu0 0.0
      %2245 = vmatprep.subr.mxu0 0.0
      %2246 = vmatpush1.msra.mxu0 0.0
      %2247 = vmatprep.subr.mxu0 0.0
      %2248 = vmatpush1.msra.mxu0 0.0
      %2249 = vmatprep.subr.mxu0 0.0
      %2250 = vmatpush1.msra.mxu0 0.0
      %2251 = vmatprep.subr.mxu0 0.0
      %2252 = vmatpush1.msra.mxu0 0.0
      %2253 = vmatprep.subr.mxu0 0.0
      %2254 = vmatpush1.msra.mxu0 0.0
      %2255 = vmatprep.subr.mxu0 0.0
      %2256 = vmatpush1.msra.mxu0 0.0
      %2257 = vmatprep.subr.mxu0 0.0
      %2258 = vmatpush1.msra.mxu0 0.0
      %2259 = vmatprep.subr.mxu0 0.0
      %2260 = vmatpush1.msra.mxu0 0.0
      %2261 = vmatprep.subr.mxu0 0.0
      %2262 = vmatpush1.msra.mxu0 0.0
      %2263 = vmatprep.subr.mxu0 0.0
      %2264 = vmatpush1.msra.mxu0 0.0
      %2265 = vmatprep.subr.mxu0 0.0
      %2266 = vmatpush1.msra.mxu0 0.0
      %2267 = vmatprep.subr.mxu0 0.0
      %2268 = vmatpush1.msra.mxu0 0.0
      %2269 = vmatprep.subr.mxu0 0.0
      %2270 = vmatpush1.msra.mxu0 0.0
      %2271 = vmatprep.subr.mxu0 0.0
      %2272 = vmatpush1.msra.mxu0 0.0
      %2273 = vmatprep.subr.mxu0 0.0
      %2274 = vmatpush1.msra.mxu0 0.0
      %2275 = vmatprep.subr.mxu0 0.0
      %2276 = vmatpush1.msra.mxu0 0.0
      %2277 = vmatprep.subr.mxu0 0.0
      %2278 = vmatpush1.msra.mxu0 0.0
      %2279 = vmatprep.subr.mxu0 0.0
      %2280 = vmatpush1.msra.mxu0 0.0
      %2281 = vmatprep.subr.mxu0 0.0
      %2282 = vmatpush1.msra.mxu0 0.0
      %2283 = vmatprep.subr.mxu0 0.0
      %2284 = vmatpush1.msra.mxu0 0.0
      %2285 = vmatprep.subr.mxu0 0.0
      %2286 = vmatpush1.msra.mxu0 0.0
      %2287 = vmatprep.subr.mxu0 0.0
      %2288 = vmatpush1.msra.mxu0 0.0
      %2289 = vmatprep.mubr.f32.mxu0 0.0
      %2290 = vmatmul.mubr.f32.gmra.mrb[0].mxu0 %v2217
      %v2291 = vpop.f32.mrb[0].mxu0
      %v2292 = vadd.f32 0.0, %v2291
      %v2293 = vpop.f32.mrb[0].mxu0
      %2294 = vmatprep.mubr.f32.mxu0 0.0
      %2295 = vmatmul.mubr.f32.gmra.mrb[0].mxu0 %v2220
      %v2296 = vpop.f32.mrb[0].mxu0
      %v2297 = vadd.f32 0.0, %v2296
      %v2298 = vpop.f32.mrb[0].mxu0
      %2299 = vmatprep.mubr.f32.mxu0 0.0
      %2300 = vmatmul.mubr.f32.gmra.mrb[0].mxu0 %v2223
      %v2301 = vpop.f32.mrb[0].mxu0
      %v2302 = vadd.f32 0.0, %v2301
      %v2303 = vpop.f32.mrb[0].mxu0
      %2304 = vdwg.mxu0
      %v2305 = vrcp.pop %v2200
      %v2306 = vrcp.pop %v2203
      %v2307 = vrcp.pop %v2206
      %v2308 = vmul.f32 %v2292, %v2305
      %v2309 = vmul.f32 %v2297, %v2306
      %v2310 = vmul.f32 %v2302, %v2307
      %2311 = vrot.lane.b32.xlu0 %v893, 104
      %v2312 = vpop.permute.xlu0 %2311
      %2313 = vrot.lane.b32.xlu0 %v894, 104
      %v2314 = vpop.permute.xlu0 %2313
      %2315 = vrot.lane.b32.xlu0 %v895, 104
      %v2316 = vpop.permute.xlu0 %2315
      %2317 = vrot.lane.b32.xlu0 %v864, 72
      %v2318 = vpop.permute.xlu0 %2317
      %2319 = vrot.lane.b32.xlu0 %v869, 72
      %v2320 = vpop.permute.xlu0 %2319
      %2321 = vrot.lane.b32.xlu0 %v874, 72
      %v2322 = vpop.permute.xlu0 %2321
      %v2323 = vsel %vm923, %v2312, 0
      %v2325 = vsel %vm923, %v2314, 0
      %v2327 = vsel %vm923, %v2316, 0
      %v2329 = vsel %vm923, %v2318, 0
      %v2331 = vsel %vm923, %v2320, 0
      %v2333 = vsel %vm923, %v2322, 0
      %2335 = vmatprep.subr.mxu0 0.0
      %2336 = vmatpush1.xpose.msra.mxu0 %v2329
      %2337 = vmatprep.subr.mxu0 0.0
      %2338 = vmatpush1.xpose.msra.mxu0 %v2331
      %2339 = vmatprep.subr.mxu0 0.0
      %2340 = vmatpush1.xpose.msra.mxu0 %v2333
      %2341 = vmatprep.subr.mxu0 0.0
      %2342 = vmatpush1.xpose.msra.mxu0 0.0
      %2343 = vmatprep.subr.mxu0 0.0
      %2344 = vmatpush1.xpose.msra.mxu0 0.0
      %2345 = vmatprep.subr.mxu0 0.0
      %2346 = vmatpush1.xpose.msra.mxu0 0.0
      %2347 = vmatprep.subr.mxu0 0.0
      %2348 = vmatpush1.xpose.msra.mxu0 0.0
      %2349 = vmatprep.subr.mxu0 0.0
      %2350 = vmatpush1.xpose.msra.mxu0 0.0
      %2351 = vmatprep.subr.mxu0 0.0
      %2352 = vmatpush1.xpose.msra.mxu0 0.0
      %2353 = vmatprep.subr.mxu0 0.0
      %2354 = vmatpush1.xpose.msra.mxu0 0.0
      %2355 = vmatprep.subr.mxu0 0.0
      %2356 = vmatpush1.xpose.msra.mxu0 0.0
      %2357 = vmatprep.subr.mxu0 0.0
      %2358 = vmatpush1.xpose.msra.mxu0 0.0
      %2359 = vmatprep.subr.mxu0 0.0
      %2360 = vmatpush1.xpose.msra.mxu0 0.0
      %2361 = vmatprep.subr.mxu0 0.0
      %2362 = vmatpush1.xpose.msra.mxu0 0.0
      %2363 = vmatprep.subr.mxu0 0.0
      %2364 = vmatpush1.xpose.msra.mxu0 0.0
      %2365 = vmatprep.subr.mxu0 0.0
      %2366 = vmatpush1.xpose.msra.mxu0 0.0
      %2367 = vmatprep.subr.mxu0 0.0
      %2368 = vmatpush1.xpose.msra.mxu0 0.0
      %2369 = vmatprep.subr.mxu0 0.0
      %2370 = vmatpush1.xpose.msra.mxu0 0.0
      %2371 = vmatprep.subr.mxu0 0.0
      %2372 = vmatpush1.xpose.msra.mxu0 0.0
      %2373 = vmatprep.subr.mxu0 0.0
      %2374 = vmatpush1.xpose.msra.mxu0 0.0
      %2375 = vmatprep.subr.mxu0 0.0
      %2376 = vmatpush1.xpose.msra.mxu0 0.0
      %2377 = vmatprep.subr.mxu0 0.0
      %2378 = vmatpush1.xpose.msra.mxu0 0.0
      %2379 = vmatprep.subr.mxu0 0.0
      %2380 = vmatpush1.xpose.msra.mxu0 0.0
      %2381 = vmatprep.subr.mxu0 0.0
      %2382 = vmatpush1.xpose.msra.mxu0 0.0
      %2383 = vmatprep.subr.mxu0 0.0
      %2384 = vmatpush1.xpose.msra.mxu0 0.0
      %2385 = vmatprep.subr.mxu0 0.0
      %2386 = vmatpush1.xpose.msra.mxu0 0.0
      %2387 = vmatprep.subr.mxu0 0.0
      %2388 = vmatpush1.xpose.msra.mxu0 0.0
      %2389 = vmatprep.subr.mxu0 0.0
      %2390 = vmatpush1.xpose.msra.mxu0 0.0
      %2391 = vmatprep.subr.mxu0 0.0
      %2392 = vmatpush1.xpose.msra.mxu0 0.0
      %2393 = vmatprep.subr.mxu0 0.0
      %2394 = vmatpush1.xpose.msra.mxu0 0.0
      %2395 = vmatprep.subr.mxu0 0.0
      %2396 = vmatpush1.xpose.msra.mxu0 0.0
      %2397 = vmatprep.subr.mxu0 0.0
      %2398 = vmatpush1.xpose.msra.mxu0 0.0
      %2399 = vmatprep.mubr.f32.mxu0 0.0
      %2400 = vmatmul.mubr.f32.gmra.mrb[0].mxu0 %v2323
      %v2401 = vpop.f32.mrb[0].mxu0
      %v2402 = vadd.f32 0.0, %v2401
      %v2403 = vpop.f32.mrb[0].mxu0
      %2404 = vmatprep.mubr.f32.mxu0 0.0
      %2405 = vmatmul.mubr.f32.gmra.mrb[0].mxu0 %v2325
      %v2406 = vpop.f32.mrb[0].mxu0
      %v2407 = vadd.f32 0.0, %v2406
      %v2408 = vpop.f32.mrb[0].mxu0
      %2409 = vmatprep.mubr.f32.mxu0 0.0
      %2410 = vmatmul.mubr.f32.gmra.mrb[0].mxu0 %v2327
      %v2411 = vpop.f32.mrb[0].mxu0
      %v2412 = vadd.f32 0.0, %v2411
      %v2413 = vpop.f32.mrb[0].mxu0
      %2414 = vdwg.mxu0
      %v2415 = vmax.f32 %v2402, -10.0
      %v2416 = vmax.f32 %v2407, -10.0
      %v2417 = vmax.f32 %v2412, -10.0
      %v2418 = vmin.f32 %v2415, 10.0
      %v2419 = vmin.f32 %v2416, 10.0
      %v2420 = vmin.f32 %v2417, 10.0
      %v2421 = vmul.f32 %v2418, 1.442695
      %v2422 = vpow.pop %v2421
      %v2423 = vmul.f32 %v2419, 1.442695
      %v2424 = vpow.pop %v2423
      %v2425 = vmul.f32 %v2420, 1.442695
      %v2426 = vpow.pop %v2425
      %v2427 = vmul.f32 %v2422, %v535
      %v2428 = vmul.f32 %v2424, %v536
      %v2429 = vmul.f32 %v2426, %v537
      %v2430 = vsel %vm1034, %v2427, 0.0
      %2431 = vadd.xlane.f32.xlu0 %v2430
      %v2432 = vpop.xlane.xlu0 %2431
      %v2433 = vsel %vm1034, %v2428, 0.0
      %2434 = vadd.xlane.f32.xlu0 %v2433
      %v2435 = vpop.xlane.xlu0 %2434
      %v2436 = vsel %vm1034, %v2429, 0.0
      %2437 = vadd.xlane.f32.xlu0 %v2436
      %v2438 = vpop.xlane.xlu0 %2437
      %2439 = vrot.lane.b32.xlu0 %v911, 40
      %v2440 = vpop.permute.xlu0 %2439
      %2441 = vrot.lane.b32.xlu0 %v912, 40
      %v2442 = vpop.permute.xlu0 %2441
      %2443 = vrot.lane.b32.xlu0 %v913, 40
      %v2444 = vpop.permute.xlu0 %2443
      %v2449 = vsel %vm1034, %v2427, 0
      %v2452 = vsel %vm1034, %v2428, 0
      %v2455 = vsel %vm1034, %v2429, 0
      %2457 = vmatprep.subr.mxu0 0.0
      %2458 = vmatpush1.msra.mxu0 %v2440
      %2459 = vmatprep.subr.mxu0 0.0
      %2460 = vmatpush1.msra.mxu0 %v2442
      %2461 = vmatprep.subr.mxu0 0.0
      %2462 = vmatpush1.msra.mxu0 %v2444
      %2463 = vmatprep.subr.mxu0 0.0
      %2464 = vmatpush1.msra.mxu0 0.0
      %2465 = vmatprep.subr.mxu0 0.0
      %2466 = vmatpush1.msra.mxu0 0.0
      %2467 = vmatprep.subr.mxu0 0.0
      %2468 = vmatpush1.msra.mxu0 0.0
      %2469 = vmatprep.subr.mxu0 0.0
      %2470 = vmatpush1.msra.mxu0 0.0
      %2471 = vmatprep.subr.mxu0 0.0
      %2472 = vmatpush1.msra.mxu0 0.0
      %2473 = vmatprep.subr.mxu0 0.0
      %2474 = vmatpush1.msra.mxu0 0.0
      %2475 = vmatprep.subr.mxu0 0.0
      %2476 = vmatpush1.msra.mxu0 0.0
      %2477 = vmatprep.subr.mxu0 0.0
      %2478 = vmatpush1.msra.mxu0 0.0
      %2479 = vmatprep.subr.mxu0 0.0
      %2480 = vmatpush1.msra.mxu0 0.0
      %2481 = vmatprep.subr.mxu0 0.0
      %2482 = vmatpush1.msra.mxu0 0.0
      %2483 = vmatprep.subr.mxu0 0.0
      %2484 = vmatpush1.msra.mxu0 0.0
      %2485 = vmatprep.subr.mxu0 0.0
      %2486 = vmatpush1.msra.mxu0 0.0
      %2487 = vmatprep.subr.mxu0 0.0
      %2488 = vmatpush1.msra.mxu0 0.0
      %2489 = vmatprep.subr.mxu0 0.0
      %2490 = vmatpush1.msra.mxu0 0.0
      %2491 = vmatprep.subr.mxu0 0.0
      %2492 = vmatpush1.msra.mxu0 0.0
      %2493 = vmatprep.subr.mxu0 0.0
      %2494 = vmatpush1.msra.mxu0 0.0
      %2495 = vmatprep.subr.mxu0 0.0
      %2496 = vmatpush1.msra.mxu0 0.0
      %2497 = vmatprep.subr.mxu0 0.0
      %2498 = vmatpush1.msra.mxu0 0.0
      %2499 = vmatprep.subr.mxu0 0.0
      %2500 = vmatpush1.msra.mxu0 0.0
      %2501 = vmatprep.subr.mxu0 0.0
      %2502 = vmatpush1.msra.mxu0 0.0
      %2503 = vmatprep.subr.mxu0 0.0
      %2504 = vmatpush1.msra.mxu0 0.0
      %2505 = vmatprep.subr.mxu0 0.0
      %2506 = vmatpush1.msra.mxu0 0.0
      %2507 = vmatprep.subr.mxu0 0.0
      %2508 = vmatpush1.msra.mxu0 0.0
      %2509 = vmatprep.subr.mxu0 0.0
      %2510 = vmatpush1.msra.mxu0 0.0
      %2511 = vmatprep.subr.mxu0 0.0
      %2512 = vmatpush1.msra.mxu0 0.0
      %2513 = vmatprep.subr.mxu0 0.0
      %2514 = vmatpush1.msra.mxu0 0.0
      %2515 = vmatprep.subr.mxu0 0.0
      %2516 = vmatpush1.msra.mxu0 0.0
      %2517 = vmatprep.subr.mxu0 0.0
      %2518 = vmatpush1.msra.mxu0 0.0
      %2519 = vmatprep.subr.mxu0 0.0
      %2520 = vmatpush1.msra.mxu0 0.0
      %2521 = vmatprep.mubr.f32.mxu0 0.0
      %2522 = vmatmul.mubr.f32.gmra.mrb[0].mxu0 %v2449
      %v2523 = vpop.f32.mrb[0].mxu0
      %v2524 = vadd.f32 0.0, %v2523
      %v2525 = vpop.f32.mrb[0].mxu0
      %2526 = vmatprep.mubr.f32.mxu0 0.0
      %2527 = vmatmul.mubr.f32.gmra.mrb[0].mxu0 %v2452
      %v2528 = vpop.f32.mrb[0].mxu0
      %v2529 = vadd.f32 0.0, %v2528
      %v2530 = vpop.f32.mrb[0].mxu0
      %2531 = vmatprep.mubr.f32.mxu0 0.0
      %2532 = vmatmul.mubr.f32.gmra.mrb[0].mxu0 %v2455
      %v2533 = vpop.f32.mrb[0].mxu0
      %v2534 = vadd.f32 0.0, %v2533
      %v2535 = vpop.f32.mrb[0].mxu0
      %2536 = vdwg.mxu0
      %v2537 = vrcp.pop %v2432
      %v2538 = vrcp.pop %v2435
      %v2539 = vrcp.pop %v2438
      %v2540 = vmul.f32 %v2524, %v2537
      %v2541 = vmul.f32 %v2529, %v2538
      %v2542 = vmul.f32 %v2534, %v2539
      %2543 = vrot.lane.b32.xlu0 %v893, 100
      %v2544 = vpop.permute.xlu0 %2543
      %2545 = vrot.lane.b32.xlu0 %v894, 100
      %v2546 = vpop.permute.xlu0 %2545
      %2547 = vrot.lane.b32.xlu0 %v895, 100
      %v2548 = vpop.permute.xlu0 %2547
      %2549 = vrot.lane.b32.xlu0 %v864, 68
      %v2550 = vpop.permute.xlu0 %2549
      %2551 = vrot.lane.b32.xlu0 %v869, 68
      %v2552 = vpop.permute.xlu0 %2551
      %2553 = vrot.lane.b32.xlu0 %v874, 68
      %v2554 = vpop.permute.xlu0 %2553
      %v2555 = vsel %vm923, %v2544, 0
      %v2557 = vsel %vm923, %v2546, 0
      %v2559 = vsel %vm923, %v2548, 0
      %v2561 = vsel %vm923, %v2550, 0
      %v2563 = vsel %vm923, %v2552, 0
      %v2565 = vsel %vm923, %v2554, 0
      %2567 = vmatprep.subr.mxu0 0.0
      %2568 = vmatpush1.xpose.msra.mxu0 %v2561
      %2569 = vmatprep.subr.mxu0 0.0
      %2570 = vmatpush1.xpose.msra.mxu0 %v2563
      %2571 = vmatprep.subr.mxu0 0.0
      %2572 = vmatpush1.xpose.msra.mxu0 %v2565
      %2573 = vmatprep.subr.mxu0 0.0
      %2574 = vmatpush1.xpose.msra.mxu0 0.0
      %2575 = vmatprep.subr.mxu0 0.0
      %2576 = vmatpush1.xpose.msra.mxu0 0.0
      %2577 = vmatprep.subr.mxu0 0.0
      %2578 = vmatpush1.xpose.msra.mxu0 0.0
      %2579 = vmatprep.subr.mxu0 0.0
      %2580 = vmatpush1.xpose.msra.mxu0 0.0
      %2581 = vmatprep.subr.mxu0 0.0
      %2582 = vmatpush1.xpose.msra.mxu0 0.0
      %2583 = vmatprep.subr.mxu0 0.0
      %2584 = vmatpush1.xpose.msra.mxu0 0.0
      %2585 = vmatprep.subr.mxu0 0.0
      %2586 = vmatpush1.xpose.msra.mxu0 0.0
      %2587 = vmatprep.subr.mxu0 0.0
      %2588 = vmatpush1.xpose.msra.mxu0 0.0
      %2589 = vmatprep.subr.mxu0 0.0
      %2590 = vmatpush1.xpose.msra.mxu0 0.0
      %2591 = vmatprep.subr.mxu0 0.0
      %2592 = vmatpush1.xpose.msra.mxu0 0.0
      %2593 = vmatprep.subr.mxu0 0.0
      %2594 = vmatpush1.xpose.msra.mxu0 0.0
      %2595 = vmatprep.subr.mxu0 0.0
      %2596 = vmatpush1.xpose.msra.mxu0 0.0
      %2597 = vmatprep.subr.mxu0 0.0
      %2598 = vmatpush1.xpose.msra.mxu0 0.0
      %2599 = vmatprep.subr.mxu0 0.0
      %2600 = vmatpush1.xpose.msra.mxu0 0.0
      %2601 = vmatprep.subr.mxu0 0.0
      %2602 = vmatpush1.xpose.msra.mxu0 0.0
      %2603 = vmatprep.subr.mxu0 0.0
      %2604 = vmatpush1.xpose.msra.mxu0 0.0
      %2605 = vmatprep.subr.mxu0 0.0
      %2606 = vmatpush1.xpose.msra.mxu0 0.0
      %2607 = vmatprep.subr.mxu0 0.0
      %2608 = vmatpush1.xpose.msra.mxu0 0.0
      %2609 = vmatprep.subr.mxu0 0.0
      %2610 = vmatpush1.xpose.msra.mxu0 0.0
      %2611 = vmatprep.subr.mxu0 0.0
      %2612 = vmatpush1.xpose.msra.mxu0 0.0
      %2613 = vmatprep.subr.mxu0 0.0
      %2614 = vmatpush1.xpose.msra.mxu0 0.0
      %2615 = vmatprep.subr.mxu0 0.0
      %2616 = vmatpush1.xpose.msra.mxu0 0.0
      %2617 = vmatprep.subr.mxu0 0.0
      %2618 = vmatpush1.xpose.msra.mxu0 0.0
      %2619 = vmatprep.subr.mxu0 0.0
      %2620 = vmatpush1.xpose.msra.mxu0 0.0
      %2621 = vmatprep.subr.mxu0 0.0
      %2622 = vmatpush1.xpose.msra.mxu0 0.0
      %2623 = vmatprep.subr.mxu0 0.0
      %2624 = vmatpush1.xpose.msra.mxu0 0.0
      %2625 = vmatprep.subr.mxu0 0.0
      %2626 = vmatpush1.xpose.msra.mxu0 0.0
      %2627 = vmatprep.subr.mxu0 0.0
      %2628 = vmatpush1.xpose.msra.mxu0 0.0
      %2629 = vmatprep.subr.mxu0 0.0
      %2630 = vmatpush1.xpose.msra.mxu0 0.0
      %2631 = vmatprep.mubr.f32.mxu0 0.0
      %2632 = vmatmul.mubr.f32.gmra.mrb[0].mxu0 %v2555
      %v2633 = vpop.f32.mrb[0].mxu0
      %v2634 = vadd.f32 0.0, %v2633
      %v2635 = vpop.f32.mrb[0].mxu0
      %2636 = vmatprep.mubr.f32.mxu0 0.0
      %2637 = vmatmul.mubr.f32.gmra.mrb[0].mxu0 %v2557
      %v2638 = vpop.f32.mrb[0].mxu0
      %v2639 = vadd.f32 0.0, %v2638
      %v2640 = vpop.f32.mrb[0].mxu0
      %2641 = vmatprep.mubr.f32.mxu0 0.0
      %2642 = vmatmul.mubr.f32.gmra.mrb[0].mxu0 %v2559
      %v2643 = vpop.f32.mrb[0].mxu0
      %v2644 = vadd.f32 0.0, %v2643
      %v2645 = vpop.f32.mrb[0].mxu0
      %2646 = vdwg.mxu0
      %v2647 = vmax.f32 %v2634, -10.0
      %v2648 = vmax.f32 %v2639, -10.0
      %v2649 = vmax.f32 %v2644, -10.0
      %v2650 = vmin.f32 %v2647, 10.0
      %v2651 = vmin.f32 %v2648, 10.0
      %v2652 = vmin.f32 %v2649, 10.0
      %v2653 = vmul.f32 %v2650, 1.442695
      %v2654 = vpow.pop %v2653
      %v2655 = vmul.f32 %v2651, 1.442695
      %v2656 = vpow.pop %v2655
      %v2657 = vmul.f32 %v2652, 1.442695
      %v2658 = vpow.pop %v2657
      %v2659 = vmul.f32 %v2654, %v535
      %v2660 = vmul.f32 %v2656, %v536
      %v2661 = vmul.f32 %v2658, %v537
      %v2662 = vsel %vm1034, %v2659, 0.0
      %2663 = vadd.xlane.f32.xlu0 %v2662
      %v2664 = vpop.xlane.xlu0 %2663
      %v2665 = vsel %vm1034, %v2660, 0.0
      %2666 = vadd.xlane.f32.xlu0 %v2665
      %v2667 = vpop.xlane.xlu0 %2666
      %v2668 = vsel %vm1034, %v2661, 0.0
      %2669 = vadd.xlane.f32.xlu0 %v2668
      %v2670 = vpop.xlane.xlu0 %2669
      %2671 = vrot.lane.b32.xlu0 %v911, 36
      %v2672 = vpop.permute.xlu0 %2671
      %2673 = vrot.lane.b32.xlu0 %v912, 36
      %v2674 = vpop.permute.xlu0 %2673
      %2675 = vrot.lane.b32.xlu0 %v913, 36
      %v2676 = vpop.permute.xlu0 %2675
      %v2681 = vsel %vm1034, %v2659, 0
      %v2684 = vsel %vm1034, %v2660, 0
      %v2687 = vsel %vm1034, %v2661, 0
      %2689 = vmatprep.subr.mxu0 0.0
      %2690 = vmatpush1.msra.mxu0 %v2672
      %2691 = vmatprep.subr.mxu0 0.0
      %2692 = vmatpush1.msra.mxu0 %v2674
      %2693 = vmatprep.subr.mxu0 0.0
      %2694 = vmatpush1.msra.mxu0 %v2676
      %2695 = vmatprep.subr.mxu0 0.0
      %2696 = vmatpush1.msra.mxu0 0.0
      %2697 = vmatprep.subr.mxu0 0.0
      %2698 = vmatpush1.msra.mxu0 0.0
      %2699 = vmatprep.subr.mxu0 0.0
      %2700 = vmatpush1.msra.mxu0 0.0
      %2701 = vmatprep.subr.mxu0 0.0
      %2702 = vmatpush1.msra.mxu0 0.0
      %2703 = vmatprep.subr.mxu0 0.0
      %2704 = vmatpush1.msra.mxu0 0.0
      %2705 = vmatprep.subr.mxu0 0.0
      %2706 = vmatpush1.msra.mxu0 0.0
      %2707 = vmatprep.subr.mxu0 0.0
      %2708 = vmatpush1.msra.mxu0 0.0
      %2709 = vmatprep.subr.mxu0 0.0
      %2710 = vmatpush1.msra.mxu0 0.0
      %2711 = vmatprep.subr.mxu0 0.0
      %2712 = vmatpush1.msra.mxu0 0.0
      %2713 = vmatprep.subr.mxu0 0.0
      %2714 = vmatpush1.msra.mxu0 0.0
      %2715 = vmatprep.subr.mxu0 0.0
      %2716 = vmatpush1.msra.mxu0 0.0
      %2717 = vmatprep.subr.mxu0 0.0
      %2718 = vmatpush1.msra.mxu0 0.0
      %2719 = vmatprep.subr.mxu0 0.0
      %2720 = vmatpush1.msra.mxu0 0.0
      %2721 = vmatprep.subr.mxu0 0.0
      %2722 = vmatpush1.msra.mxu0 0.0
      %2723 = vmatprep.subr.mxu0 0.0
      %2724 = vmatpush1.msra.mxu0 0.0
      %2725 = vmatprep.subr.mxu0 0.0
      %2726 = vmatpush1.msra.mxu0 0.0
      %2727 = vmatprep.subr.mxu0 0.0
      %2728 = vmatpush1.msra.mxu0 0.0
      %2729 = vmatprep.subr.mxu0 0.0
      %2730 = vmatpush1.msra.mxu0 0.0
      %2731 = vmatprep.subr.mxu0 0.0
      %2732 = vmatpush1.msra.mxu0 0.0
      %2733 = vmatprep.subr.mxu0 0.0
      %2734 = vmatpush1.msra.mxu0 0.0
      %2735 = vmatprep.subr.mxu0 0.0
      %2736 = vmatpush1.msra.mxu0 0.0
      %2737 = vmatprep.subr.mxu0 0.0
      %2738 = vmatpush1.msra.mxu0 0.0
      %2739 = vmatprep.subr.mxu0 0.0
      %2740 = vmatpush1.msra.mxu0 0.0
      %2741 = vmatprep.subr.mxu0 0.0
      %2742 = vmatpush1.msra.mxu0 0.0
      %2743 = vmatprep.subr.mxu0 0.0
      %2744 = vmatpush1.msra.mxu0 0.0
      %2745 = vmatprep.subr.mxu0 0.0
      %2746 = vmatpush1.msra.mxu0 0.0
      %2747 = vmatprep.subr.mxu0 0.0
      %2748 = vmatpush1.msra.mxu0 0.0
      %2749 = vmatprep.subr.mxu0 0.0
      %2750 = vmatpush1.msra.mxu0 0.0
      %2751 = vmatprep.subr.mxu0 0.0
      %2752 = vmatpush1.msra.mxu0 0.0
      %2753 = vmatprep.mubr.f32.mxu0 0.0
      %2754 = vmatmul.mubr.f32.gmra.mrb[0].mxu0 %v2681
      %v2755 = vpop.f32.mrb[0].mxu0
      %v2756 = vadd.f32 0.0, %v2755
      %v2757 = vpop.f32.mrb[0].mxu0
      %2758 = vmatprep.mubr.f32.mxu0 0.0
      %2759 = vmatmul.mubr.f32.gmra.mrb[0].mxu0 %v2684
      %v2760 = vpop.f32.mrb[0].mxu0
      %v2761 = vadd.f32 0.0, %v2760
      %v2762 = vpop.f32.mrb[0].mxu0
      %2763 = vmatprep.mubr.f32.mxu0 0.0
      %2764 = vmatmul.mubr.f32.gmra.mrb[0].mxu0 %v2687
      %v2765 = vpop.f32.mrb[0].mxu0
      %v2766 = vadd.f32 0.0, %v2765
      %v2767 = vpop.f32.mrb[0].mxu0
      %2768 = vdwg.mxu0
      %v2769 = vrcp.pop %v2664
      %v2770 = vrcp.pop %v2667
      %v2771 = vrcp.pop %v2670
      %v2772 = vmul.f32 %v2756, %v2769
      %v2773 = vmul.f32 %v2761, %v2770
      %v2774 = vmul.f32 %v2766, %v2771
      %2778 = vrot.lane.b32.xlu0 %v1380, 4
      %v2779 = vpop.permute.xlu0 %2778
      %2780 = vrot.lane.b32.xlu0 %v1381, 4
      %v2781 = vpop.permute.xlu0 %2780
      %2782 = vrot.lane.b32.xlu0 %v1382, 4
      %v2783 = vpop.permute.xlu0 %2782
      %2790 = vrot.lane.b32.xlu0 %v1612, 8
      %v2791 = vpop.permute.xlu0 %2790
      %2792 = vrot.lane.b32.xlu0 %v1613, 8
      %v2793 = vpop.permute.xlu0 %2792
      %2794 = vrot.lane.b32.xlu0 %v1614, 8
      %v2795 = vpop.permute.xlu0 %2794
      %2802 = vrot.lane.b32.xlu0 %v1844, 12
      %v2803 = vpop.permute.xlu0 %2802
      %2804 = vrot.lane.b32.xlu0 %v1845, 12
      %v2805 = vpop.permute.xlu0 %2804
      %2806 = vrot.lane.b32.xlu0 %v1846, 12
      %v2807 = vpop.permute.xlu0 %2806
      %2814 = vrot.lane.b32.xlu0 %v2076, 16
      %v2815 = vpop.permute.xlu0 %2814
      %2816 = vrot.lane.b32.xlu0 %v2077, 16
      %v2817 = vpop.permute.xlu0 %2816
      %2818 = vrot.lane.b32.xlu0 %v2078, 16
      %v2819 = vpop.permute.xlu0 %2818
      %2826 = vrot.lane.b32.xlu0 %v2308, 20
      %v2827 = vpop.permute.xlu0 %2826
      %2828 = vrot.lane.b32.xlu0 %v2309, 20
      %v2829 = vpop.permute.xlu0 %2828
      %2830 = vrot.lane.b32.xlu0 %v2310, 20
      %v2831 = vpop.permute.xlu0 %2830
      %2838 = vrot.lane.b32.xlu0 %v2540, 24
      %v2839 = vpop.permute.xlu0 %2838
      %2840 = vrot.lane.b32.xlu0 %v2541, 24
      %v2841 = vpop.permute.xlu0 %2840
      %2842 = vrot.lane.b32.xlu0 %v2542, 24
      %v2843 = vpop.permute.xlu0 %2842
      %2850 = vrot.lane.b32.xlu0 %v2772, 28
      %v2851 = vpop.permute.xlu0 %2850
      %2852 = vrot.lane.b32.xlu0 %v2773, 28
      %v2853 = vpop.permute.xlu0 %2852
      %2854 = vrot.lane.b32.xlu0 %v2774, 28
      %v2855 = vpop.permute.xlu0 %2854
      %v2859 = vsel %vm923, %v1148, %v2779
      %v2860 = vsel %vm923, %v1149, %v2781
      %v2861 = vsel %vm923, %v1150, %v2783
      %vm2862 = vcmask 64512
      %v2863 = vsel %vm2862, %v2859, %v2791
      %v2864 = vsel %vm2862, %v2860, %v2793
      %v2865 = vsel %vm2862, %v2861, %v2795
      %vm2866 = vcmask 97280
      %v2867 = vsel %vm2866, %v2863, %v2803
      %v2868 = vsel %vm2866, %v2864, %v2805
      %v2869 = vsel %vm2866, %v2865, %v2807
      %vm2870 = vcmask 130048
      %v2871 = vsel %vm2870, %v2867, %v2815
      %v2872 = vsel %vm2870, %v2868, %v2817
      %v2873 = vsel %vm2870, %v2869, %v2819
      %vm2874 = vcmask 162816
      %v2875 = vsel %vm2874, %v2871, %v2827
      %v2876 = vsel %vm2874, %v2872, %v2829
      %v2877 = vsel %vm2874, %v2873, %v2831
      %v2878 = vsel %vm1034, %v2875, %v2839
      %v2879 = vsel %vm1034, %v2876, %v2841
      %v2880 = vsel %vm1034, %v2877, %v2843
      %vm2881 = vcmask 228352
      %v2882 = vsel %vm2881, %v2878, %v2851
      %v2883 = vsel %vm2881, %v2879, %v2853
      %v2884 = vsel %vm2881, %v2880, %v2855
      %v2885 = vld [vmem:[%s513] sm:$0x3f]
      %v2886 = vld [vmem:[%s509] sm:$0xff]
      %v2887 = vld [vmem:[%s509 + $0x8] sm:$0xff]
      %v2888 = vld [vmem:[%s509 + $0x10] sm:$0xff]
      %v2889 = vld [vmem:[%s509 + $0x18] sm:$0xff]
      %v2891 = vsel %vm787, %v2882, 0
      %v2894 = vsel %vm787, %v2883, 0
      %v2897 = vsel %vm787, %v2884, 0
      %2899 = vmatprep.subr.mxu0 0.0
      %2900 = vmatpush1.msra.mxu0 %v2886
      %2901 = vmatprep.subr.mxu0 0.0
      %2902 = vmatpush1.msra.mxu0 %v2887
      %2903 = vmatprep.subr.mxu0 0.0
      %2904 = vmatpush1.msra.mxu0 %v2888
      %2905 = vmatprep.subr.mxu0 0.0
      %2906 = vmatpush1.msra.mxu0 %v2889
      %2907 = vmatprep.subr.mxu0 0.0
      %2908 = vmatpush1.msra.mxu0 0.0
      %2909 = vmatprep.subr.mxu0 0.0
      %2910 = vmatpush1.msra.mxu0 0.0
      %2911 = vmatprep.subr.mxu0 0.0
      %2912 = vmatpush1.msra.mxu0 0.0
      %2913 = vmatprep.subr.mxu0 0.0
      %2914 = vmatpush1.msra.mxu0 0.0
      %2915 = vmatprep.subr.mxu0 0.0
      %2916 = vmatpush1.msra.mxu0 0.0
      %2917 = vmatprep.subr.mxu0 0.0
      %2918 = vmatpush1.msra.mxu0 0.0
      %2919 = vmatprep.subr.mxu0 0.0
      %2920 = vmatpush1.msra.mxu0 0.0
      %2921 = vmatprep.subr.mxu0 0.0
      %2922 = vmatpush1.msra.mxu0 0.0
      %2923 = vmatprep.subr.mxu0 0.0
      %2924 = vmatpush1.msra.mxu0 0.0
      %2925 = vmatprep.subr.mxu0 0.0
      %2926 = vmatpush1.msra.mxu0 0.0
      %2927 = vmatprep.subr.mxu0 0.0
      %2928 = vmatpush1.msra.mxu0 0.0
      %2929 = vmatprep.subr.mxu0 0.0
      %2930 = vmatpush1.msra.mxu0 0.0
      %2931 = vmatprep.subr.mxu0 0.0
      %2932 = vmatpush1.msra.mxu0 0.0
      %2933 = vmatprep.subr.mxu0 0.0
      %2934 = vmatpush1.msra.mxu0 0.0
      %2935 = vmatprep.subr.mxu0 0.0
      %2936 = vmatpush1.msra.mxu0 0.0
      %2937 = vmatprep.subr.mxu0 0.0
      %2938 = vmatpush1.msra.mxu0 0.0
      %2939 = vmatprep.subr.mxu0 0.0
      %2940 = vmatpush1.msra.mxu0 0.0
      %2941 = vmatprep.subr.mxu0 0.0
      %2942 = vmatpush1.msra.mxu0 0.0
      %2943 = vmatprep.subr.mxu0 0.0
      %2944 = vmatpush1.msra.mxu0 0.0
      %2945 = vmatprep.subr.mxu0 0.0
      %2946 = vmatpush1.msra.mxu0 0.0
      %2947 = vmatprep.subr.mxu0 0.0
      %2948 = vmatpush1.msra.mxu0 0.0
      %2949 = vmatprep.subr.mxu0 0.0
      %2950 = vmatpush1.msra.mxu0 0.0
      %2951 = vmatprep.subr.mxu0 0.0
      %2952 = vmatpush1.msra.mxu0 0.0
      %2953 = vmatprep.subr.mxu0 0.0
      %2954 = vmatpush1.msra.mxu0 0.0
      %2955 = vmatprep.subr.mxu0 0.0
      %2956 = vmatpush1.msra.mxu0 0.0
      %2957 = vmatprep.subr.mxu0 0.0
      %2958 = vmatpush1.msra.mxu0 0.0
      %2959 = vmatprep.subr.mxu0 0.0
      %2960 = vmatpush1.msra.mxu0 0.0
      %2961 = vmatprep.subr.mxu0 0.0
      %2962 = vmatpush1.msra.mxu0 0.0
      %2963 = vmatprep.mubr.f32.mxu0 0.0
      %2964 = vmatmul.mubr.f32.gmra.mrb[0].mxu0 %v2891
      %v2965 = vpop.f32.mrb[0].mxu0
      %v2966 = vadd.f32 0.0, %v2965
      %v2967 = vpop.f32.mrb[0].mxu0
      %2968 = vmatprep.mubr.f32.mxu0 0.0
      %2969 = vmatmul.mubr.f32.gmra.mrb[0].mxu0 %v2894
      %v2970 = vpop.f32.mrb[0].mxu0
      %v2971 = vadd.f32 0.0, %v2970
      %v2972 = vpop.f32.mrb[0].mxu0
      %2973 = vmatprep.mubr.f32.mxu0 0.0
      %2974 = vmatmul.mubr.f32.gmra.mrb[0].mxu0 %v2897
      %v2975 = vpop.f32.mrb[0].mxu0
      %v2976 = vadd.f32 0.0, %v2975
      %v2977 = vpop.f32.mrb[0].mxu0
      %2978 = vdwg.mxu0
      %v2979 = vadd.f32 %v532, %v2966
      %v2980 = vadd.f32 %v533, %v2971
      %v2981 = vadd.f32 %v534, %v2976
      %v2982 = vlaneseq
      %v2983 = vshrl.u32 %v2982, 7
      %v2984 = vsub.s32 0, %v2983
      %v2985 = vrot.slane %v2885, %v2984
      %v2986 = vadd.f32 %v2979, %v2985
      %v2987 = vadd.f32 %v2980, %v2985
      %v2988 = vadd.f32 %v2981, %v2985
      %v2989 = vsel %vm787, %v2986, 0.0
      %2990 = vadd.xlane.f32.xlu0 %v2989
      %v2991 = vpop.xlane.xlu0 %2990
      %v2992 = vsel %vm787, %v2987, 0.0
      %2993 = vadd.xlane.f32.xlu0 %v2992
      %v2994 = vpop.xlane.xlu0 %2993
      %v2995 = vsel %vm787, %v2988, 0.0
      %2996 = vadd.xlane.f32.xlu0 %v2995
      %v2997 = vpop.xlane.xlu0 %2996
      %v2998 = vrcp.pop 32.0
      %v2999 = vmul.f32 %v2991, %v2998
      %v3000 = vmul.f32 %v2994, %v2998
      %v3001 = vmul.f32 %v2997, %v2998
      %v3002 = vmul.f32 %v2986, %v2986
      %v3003 = vmul.f32 %v2987, %v2987
      %v3004 = vmul.f32 %v2988, %v2988
      %v3005 = vsel %vm787, %v3002, 0.0
      %3006 = vadd.xlane.f32.xlu0 %v3005
      %v3007 = vpop.xlane.xlu0 %3006
      %v3008 = vsel %vm787, %v3003, 0.0
      %3009 = vadd.xlane.f32.xlu0 %v3008
      %v3010 = vpop.xlane.xlu0 %3009
      %v3011 = vsel %vm787, %v3004, 0.0
      %3012 = vadd.xlane.f32.xlu0 %v3011
      %v3013 = vpop.xlane.xlu0 %3012
      %v3014 = vmul.f32 %v3007, %v2998
      %v3015 = vmul.f32 %v3010, %v2998
      %v3016 = vmul.f32 %v3013, %v2998
      %v3017 = vmul.f32 %v2999, %v2999
      %v3018 = vmul.f32 %v3000, %v3000
      %v3019 = vmul.f32 %v3001, %v3001
      %v3020 = vsub.f32 %v3014, %v3017
      %v3021 = vsub.f32 %v3015, %v3018
      %v3022 = vsub.f32 %v3016, %v3019
      %v3023 = vmax.f32 %v3020, 0.0
      %v3024 = vmax.f32 %v3021, 0.0
      %v3025 = vmax.f32 %v3022, 0.0
      %v3026 = vsub.f32 %v2986, %v2999
      %v3027 = vsub.f32 %v2987, %v3000
      %v3028 = vsub.f32 %v2988, %v3001
      %v3029 = vadd.f32 %v3023, 1e-05
      %v3030 = vadd.f32 %v3024, 1e-05
      %v3031 = vadd.f32 %v3025, 1e-05
      %v3032 = vrsqrt.pop %v3029
      %v3033 = vrsqrt.pop %v3030
      %v3034 = vrsqrt.pop %v3031
      %v3035 = vmul.f32 %v3026, %v3032
      %v3036 = vmul.f32 %v3027, %v3033
      %v3037 = vmul.f32 %v3028, %v3034
      %v3038 = vlaneseq
      %v3039 = vshrl.u32 %v3038, 7
      %v3040 = vsub.s32 1, %v3039
      %v3041 = vrot.slane %v2885, %v3040
      %v3042 = vmul.f32 %v3035, %v3041
      %v3043 = vmul.f32 %v3036, %v3041
      %v3044 = vmul.f32 %v3037, %v3041
      %v3045 = vlaneseq
      %v3046 = vshrl.u32 %v3045, 7
      %v3047 = vsub.s32 2, %v3046
      %v3048 = vrot.slane %v2885, %v3047
      %v3049 = vadd.f32 %v3042, %v3048
      %v3050 = vadd.f32 %v3043, %v3048
      %v3051 = vadd.f32 %v3044, %v3048
      %v3052 = vld [vmem:[%s518] sm:$0xff]
      %v3053 = vld [vmem:[%s518 + $0x8] sm:$0xff]
      %v3054 = vld [vmem:[%s518 + $0x10] sm:$0xff]
      %v3055 = vld [vmem:[%s518 + $0x18] sm:$0xff]
      %v3056 = vld [vmem:[%s521] sm:$0x1]
      %v3058 = vlaneseq
      %v3059 = vshrl.u32 %v3058, 7
      %v3060 = vsub.s32 0, %v3059
      %v3061 = vrot.slane %v3056, %v3060
      %v3064 = vsel %vm787, %v3049, 0
      %v3067 = vsel %vm787, %v3050, 0
      %v3070 = vsel %vm787, %v3051, 0
      %3072 = vmatprep.subr.mxu0 0.0
      %3073 = vmatpush1.msra.mxu0 %v3052
      %3074 = vmatprep.subr.mxu0 0.0
      %3075 = vmatpush1.msra.mxu0 %v3053
      %3076 = vmatprep.subr.mxu0 0.0
      %3077 = vmatpush1.msra.mxu0 %v3054
      %3078 = vmatprep.subr.mxu0 0.0
      %3079 = vmatpush1.msra.mxu0 %v3055
      %3080 = vmatprep.subr.mxu0 0.0
      %3081 = vmatpush1.msra.mxu0 0.0
      %3082 = vmatprep.subr.mxu0 0.0
      %3083 = vmatpush1.msra.mxu0 0.0
      %3084 = vmatprep.subr.mxu0 0.0
      %3085 = vmatpush1.msra.mxu0 0.0
      %3086 = vmatprep.subr.mxu0 0.0
      %3087 = vmatpush1.msra.mxu0 0.0
      %3088 = vmatprep.subr.mxu0 0.0
      %3089 = vmatpush1.msra.mxu0 0.0
      %3090 = vmatprep.subr.mxu0 0.0
      %3091 = vmatpush1.msra.mxu0 0.0
      %3092 = vmatprep.subr.mxu0 0.0
      %3093 = vmatpush1.msra.mxu0 0.0
      %3094 = vmatprep.subr.mxu0 0.0
      %3095 = vmatpush1.msra.mxu0 0.0
      %3096 = vmatprep.subr.mxu0 0.0
      %3097 = vmatpush1.msra.mxu0 0.0
      %3098 = vmatprep.subr.mxu0 0.0
      %3099 = vmatpush1.msra.mxu0 0.0
      %3100 = vmatprep.subr.mxu0 0.0
      %3101 = vmatpush1.msra.mxu0 0.0
      %3102 = vmatprep.subr.mxu0 0.0
      %3103 = vmatpush1.msra.mxu0 0.0
      %3104 = vmatprep.subr.mxu0 0.0
      %3105 = vmatpush1.msra.mxu0 0.0
      %3106 = vmatprep.subr.mxu0 0.0
      %3107 = vmatpush1.msra.mxu0 0.0
      %3108 = vmatprep.subr.mxu0 0.0
      %3109 = vmatpush1.msra.mxu0 0.0
      %3110 = vmatprep.subr.mxu0 0.0
      %3111 = vmatpush1.msra.mxu0 0.0
      %3112 = vmatprep.subr.mxu0 0.0
      %3113 = vmatpush1.msra.mxu0 0.0
      %3114 = vmatprep.subr.mxu0 0.0
      %3115 = vmatpush1.msra.mxu0 0.0
      %3116 = vmatprep.subr.mxu0 0.0
      %3117 = vmatpush1.msra.mxu0 0.0
      %3118 = vmatprep.subr.mxu0 0.0
      %3119 = vmatpush1.msra.mxu0 0.0
      %3120 = vmatprep.subr.mxu0 0.0
      %3121 = vmatpush1.msra.mxu0 0.0
      %3122 = vmatprep.subr.mxu0 0.0
      %3123 = vmatpush1.msra.mxu0 0.0
      %3124 = vmatprep.subr.mxu0 0.0
      %3125 = vmatpush1.msra.mxu0 0.0
      %3126 = vmatprep.subr.mxu0 0.0
      %3127 = vmatpush1.msra.mxu0 0.0
      %3128 = vmatprep.subr.mxu0 0.0
      %3129 = vmatpush1.msra.mxu0 0.0
      %3130 = vmatprep.subr.mxu0 0.0
      %3131 = vmatpush1.msra.mxu0 0.0
      %3132 = vmatprep.subr.mxu0 0.0
      %3133 = vmatpush1.msra.mxu0 0.0
      %3134 = vmatprep.subr.mxu0 0.0
      %3135 = vmatpush1.msra.mxu0 0.0
      %3136 = vmatprep.mubr.f32.mxu0 0.0
      %3137 = vmatmul.mubr.f32.gmra.mrb[0].mxu0 %v3064
      %v3138 = vpop.f32.mrb[0].mxu0
      %v3139 = vadd.f32 %v3061, %v3138
      %v3140 = vpop.f32.mrb[0].mxu0
      %3141 = vmatprep.mubr.f32.mxu0 0.0
      %3142 = vmatmul.mubr.f32.gmra.mrb[0].mxu0 %v3067
      %v3143 = vpop.f32.mrb[0].mxu0
      %v3144 = vadd.f32 %v3061, %v3143
      %v3145 = vpop.f32.mrb[0].mxu0
      %3146 = vmatprep.mubr.f32.mxu0 0.0
      %3147 = vmatmul.mubr.f32.gmra.mrb[0].mxu0 %v3070
      %v3148 = vpop.f32.mrb[0].mxu0
      %v3149 = vadd.f32 %v3061, %v3148
      %v3150 = vpop.f32.mrb[0].mxu0
      %3151 = vdwg.mxu0
      %v3152 = vmax.f32 %v3139, 0.0
      %v3153 = vmax.f32 %v3144, 0.0
      %v3154 = vmax.f32 %v3149, 0.0
      %v3155 = vld [vmem:[%s526] sm:$0xff]
      %v3156 = vld [vmem:[%s526 + $0x8] sm:$0xff]
      %v3157 = vld [vmem:[%s526 + $0x10] sm:$0xff]
      %v3158 = vld [vmem:[%s526 + $0x18] sm:$0xff]
      %v3159 = vld [vmem:[%s526 + $0x20] sm:$0xff]
      %v3160 = vld [vmem:[%s526 + $0x28] sm:$0xff]
      %v3161 = vld [vmem:[%s526 + $0x30] sm:$0xff]
      %v3162 = vld [vmem:[%s526 + $0x38] sm:$0xff]
      %v3163 = vld [vmem:[%s526 + $0x40] sm:$0xff]
      %v3164 = vld [vmem:[%s526 + $0x48] sm:$0xff]
      %v3165 = vld [vmem:[%s526 + $0x50] sm:$0xff]
      %v3166 = vld [vmem:[%s526 + $0x58] sm:$0xff]
      %v3167 = vld [vmem:[%s526 + $0x60] sm:$0xff]
      %v3168 = vld [vmem:[%s526 + $0x68] sm:$0xff]
      %v3169 = vld [vmem:[%s526 + $0x70] sm:$0xff]
      %v3170 = vld [vmem:[%s526 + $0x78] sm:$0xff]
      %v3171 = vlaneseq
      %v3172 = vshrl.u32 %v3171, 7
      %v3173 = vsub.s32 3, %v3172
      %v3174 = vrot.slane %v2885, %v3173
      %3175 = vmatprep.subr.mxu0 0.0
      %3176 = vmatpush1.msra.mxu0 %v3155
      %3177 = vmatprep.subr.mxu0 0.0
      %3178 = vmatpush1.msra.mxu0 %v3156
      %3179 = vmatprep.subr.mxu0 0.0
      %3180 = vmatpush1.msra.mxu0 %v3157
      %3181 = vmatprep.subr.mxu0 0.0
      %3182 = vmatpush1.msra.mxu0 %v3158
      %3183 = vmatprep.subr.mxu0 0.0
      %3184 = vmatpush1.msra.mxu0 %v3159
      %3185 = vmatprep.subr.mxu0 0.0
      %3186 = vmatpush1.msra.mxu0 %v3160
      %3187 = vmatprep.subr.mxu0 0.0
      %3188 = vmatpush1.msra.mxu0 %v3161
      %3189 = vmatprep.subr.mxu0 0.0
      %3190 = vmatpush1.msra.mxu0 %v3162
      %3191 = vmatprep.subr.mxu0 0.0
      %3192 = vmatpush1.msra.mxu0 %v3163
      %3193 = vmatprep.subr.mxu0 0.0
      %3194 = vmatpush1.msra.mxu0 %v3164
      %3195 = vmatprep.subr.mxu0 0.0
      %3196 = vmatpush1.msra.mxu0 %v3165
      %3197 = vmatprep.subr.mxu0 0.0
      %3198 = vmatpush1.msra.mxu0 %v3166
      %3199 = vmatprep.subr.mxu0 0.0
      %3200 = vmatpush1.msra.mxu0 %v3167
      %3201 = vmatprep.subr.mxu0 0.0
      %3202 = vmatpush1.msra.mxu0 %v3168
      %3203 = vmatprep.subr.mxu0 0.0
      %3204 = vmatpush1.msra.mxu0 %v3169
      %3205 = vmatprep.subr.mxu0 0.0
      %3206 = vmatpush1.msra.mxu0 %v3170
      %3207 = vmatprep.subr.mxu0 0.0
      %3208 = vmatpush1.msra.mxu0 0.0
      %3209 = vmatprep.subr.mxu0 0.0
      %3210 = vmatpush1.msra.mxu0 0.0
      %3211 = vmatprep.subr.mxu0 0.0
      %3212 = vmatpush1.msra.mxu0 0.0
      %3213 = vmatprep.subr.mxu0 0.0
      %3214 = vmatpush1.msra.mxu0 0.0
      %3215 = vmatprep.subr.mxu0 0.0
      %3216 = vmatpush1.msra.mxu0 0.0
      %3217 = vmatprep.subr.mxu0 0.0
      %3218 = vmatpush1.msra.mxu0 0.0
      %3219 = vmatprep.subr.mxu0 0.0
      %3220 = vmatpush1.msra.mxu0 0.0
      %3221 = vmatprep.subr.mxu0 0.0
      %3222 = vmatpush1.msra.mxu0 0.0
      %3223 = vmatprep.subr.mxu0 0.0
      %3224 = vmatpush1.msra.mxu0 0.0
      %3225 = vmatprep.subr.mxu0 0.0
      %3226 = vmatpush1.msra.mxu0 0.0
      %3227 = vmatprep.subr.mxu0 0.0
      %3228 = vmatpush1.msra.mxu0 0.0
      %3229 = vmatprep.subr.mxu0 0.0
      %3230 = vmatpush1.msra.mxu0 0.0
      %3231 = vmatprep.subr.mxu0 0.0
      %3232 = vmatpush1.msra.mxu0 0.0
      %3233 = vmatprep.subr.mxu0 0.0
      %3234 = vmatpush1.msra.mxu0 0.0
      %3235 = vmatprep.subr.mxu0 0.0
      %3236 = vmatpush1.msra.mxu0 0.0
      %3237 = vmatprep.subr.mxu0 0.0
      %3238 = vmatpush1.msra.mxu0 0.0
      %3239 = vmatprep.mubr.f32.mxu0 0.0
      %3240 = vmatmul.mubr.f32.gmra.mrb[0].mxu0 %v3152
      %v3241 = vpop.f32.mrb[0].mxu0
      %v3242 = vadd.f32 %v3174, %v3241
      %v3243 = vpop.f32.mrb[0].mxu0
      %3244 = vmatprep.mubr.f32.mxu0 0.0
      %3245 = vmatmul.mubr.f32.gmra.mrb[0].mxu0 %v3153
      %v3246 = vpop.f32.mrb[0].mxu0
      %v3247 = vadd.f32 %v3174, %v3246
      %v3248 = vpop.f32.mrb[0].mxu0
      %3249 = vmatprep.mubr.f32.mxu0 0.0
      %3250 = vmatmul.mubr.f32.gmra.mrb[0].mxu0 %v3154
      %v3251 = vpop.f32.mrb[0].mxu0
      %v3252 = vadd.f32 %v3174, %v3251
      %v3253 = vpop.f32.mrb[0].mxu0
      %3254 = vdwg.mxu0
      %v3255 = vadd.f32 %v3049, %v3242
      %v3256 = vadd.f32 %v3050, %v3247
      %v3257 = vadd.f32 %v3051, %v3252
      %v3258 = vsel %vm787, %v3255, 0.0
      %3259 = vadd.xlane.f32.xlu0 %v3258
      %v3260 = vpop.xlane.xlu0 %3259
      %v3261 = vsel %vm787, %v3256, 0.0
      %3262 = vadd.xlane.f32.xlu0 %v3261
      %v3263 = vpop.xlane.xlu0 %3262
      %v3264 = vsel %vm787, %v3257, 0.0
      %3265 = vadd.xlane.f32.xlu0 %v3264
      %v3266 = vpop.xlane.xlu0 %3265
      %v3267 = vmul.f32 %v3260, %v2998
      %v3268 = vmul.f32 %v3263, %v2998
      %v3269 = vmul.f32 %v3266, %v2998
      %v3270 = vmul.f32 %v3255, %v3255
      %v3271 = vmul.f32 %v3256, %v3256
      %v3272 = vmul.f32 %v3257, %v3257
      %v3273 = vsel %vm787, %v3270, 0.0
      %3274 = vadd.xlane.f32.xlu0 %v3273
      %v3275 = vpop.xlane.xlu0 %3274
      %v3276 = vsel %vm787, %v3271, 0.0
      %3277 = vadd.xlane.f32.xlu0 %v3276
      %v3278 = vpop.xlane.xlu0 %3277
      %v3279 = vsel %vm787, %v3272, 0.0
      %3280 = vadd.xlane.f32.xlu0 %v3279
      %v3281 = vpop.xlane.xlu0 %3280
      %v3282 = vmul.f32 %v3275, %v2998
      %v3283 = vmul.f32 %v3278, %v2998
      %v3284 = vmul.f32 %v3281, %v2998
      %v3285 = vmul.f32 %v3267, %v3267
      %v3286 = vmul.f32 %v3268, %v3268
      %v3287 = vmul.f32 %v3269, %v3269
      %v3288 = vsub.f32 %v3282, %v3285
      %v3289 = vsub.f32 %v3283, %v3286
      %v3290 = vsub.f32 %v3284, %v3287
      %v3291 = vmax.f32 %v3288, 0.0
      %v3292 = vmax.f32 %v3289, 0.0
      %v3293 = vmax.f32 %v3290, 0.0
      %v3294 = vsub.f32 %v3255, %v3267
      %v3295 = vsub.f32 %v3256, %v3268
      %v3296 = vsub.f32 %v3257, %v3269
      %v3297 = vadd.f32 %v3291, 1e-05
      %v3298 = vadd.f32 %v3292, 1e-05
      %v3299 = vadd.f32 %v3293, 1e-05
      %v3300 = vrsqrt.pop %v3297
      %v3301 = vrsqrt.pop %v3298
      %v3302 = vrsqrt.pop %v3299
      %v3303 = vmul.f32 %v3294, %v3300
      %v3304 = vmul.f32 %v3295, %v3301
      %v3305 = vmul.f32 %v3296, %v3302
      %v3306 = vlaneseq
      %v3307 = vshrl.u32 %v3306, 7
      %v3308 = vsub.s32 4, %v3307
      %v3309 = vrot.slane %v2885, %v3308
      %v3310 = vmul.f32 %v3303, %v3309
      %v3311 = vmul.f32 %v3304, %v3309
      %v3312 = vmul.f32 %v3305, %v3309
      %v3313 = vlaneseq
      %v3314 = vshrl.u32 %v3313, 7
      %v3315 = vsub.s32 5, %v3314
      %v3316 = vrot.slane %v2885, %v3315
      %v3317 = vadd.f32 %v3310, %v3316
      %v3318 = vadd.f32 %v3311, %v3316
      %v3319 = vadd.f32 %v3312, %v3316
      %3320 = vst.msk [vmem:[%s531] sm:$0xff] %vm787, %v3317
      %3321 = vst.msk [vmem:[%s531 + $0x8] sm:$0xff] %vm787, %v3318
      %3322 = vst.msk [vmem:[%s531 + $0x10] sm:$0xff] %vm787, %v3319
      %p3323 = scmp.lt.s32.totalorder %s22, 1
      %s3324 = scalar_select %p3323, %s22, 1
      %s3325 = smul.addr %s3324, 3
      %s3326 = smul.addr %s3325, 8
      %s3327 = scalar_lea.vmem %s11, %s3326
      // Predicated region
      $region73: #{dual_rgat_forward.1} parent=63 // pred_check
        %p3328 = pneg %p316
      $region74: #{dual_rgat_forward.1} parent=63 // pred_check_branch
        %3330 = sbr.rel (%p3328) target = $region76
      $region75: #{dual_rgat_forward.1} parent=63 // pred_region
        _
      $region76: #{dual_rgat_forward.1} parent=63 // pred_fallthru
        _
    $region64: #{dual_rgat_forward.1} parent=5 // pred_fallthru
      _
    %p3331 = scmp.le.s32.totalorder 2, %s17
    // Predicated region
    $region77: #{dual_rgat_forward.1} parent=5 // pred_check
      %p3332 = pneg %p3331
    $region78: #{dual_rgat_forward.1} parent=5 // pred_check_branch
      %3334 = sbr.rel (%p3332) target = $region80
    $region79: #{dual_rgat_forward.1} parent=5 // pred_region
      %s3335 = ssub.s32 %s17, 2
      // Predicated region
      $region81: #{dual_rgat_forward.1} parent=79 // pred_check
        %p3336 = pneg %p322
      $region82: #{dual_rgat_forward.1} parent=79 // pred_check_branch
        %3338 = sbr.rel (%p3336) target = $region84
      $region83: #{dual_rgat_forward.1} parent=79 // pred_region
        %p3339 = scmp.lt.s32.totalorder %s23, 1
        %s3340 = scalar_select %p3339, %s23, 1
        %s3341 = smul.addr %s3340, 3
        %s3342 = smul.addr %s3341, 8
        %s3343 = scalar_lea.vmem %s11, %s3342
      $region84: #{dual_rgat_forward.1} parent=79 // pred_fallthru
        _
    $region80: #{dual_rgat_forward.1} parent=5 // pred_fallthru
      _
  $region6: #{dual_rgat_forward.1} parent=0 // loop_footer
    %s21 = sadd.s32 1, %s17
  $region7: #{dual_rgat_forward.1} parent=0 // loop_footer_branch
    %16 = sbr.rel target = $region3
  $region8: #{dual_rgat_forward.1} parent=0 // loop_exit
    _

</llo_original>
